<compile_context>
chip_gen: v7x
topology: tpu7x:2x2x1
jax: 0.10.0
libtpu: 0.0.40
codegen_flags: <defaults>
</compile_context>

<pallas_src>
import math

import jax
import jax.numpy as jnp
from jax.experimental import pallas as pl
from jax.experimental.pallas import tpu as pltpu


_VMEM_LIMIT = 32 * 1024 * 1024  # explicit; safe on v5e/v6e (128 MiB) and v7x (64 MiB) VMEM


def _round_up(x, m):
    return ((x + m - 1) // m) * m


# ----------------------------------------------------------------------------
# Pallas kernel 1: per-mode stacked-complex spectral mixing
#   out[m, r, :] = [t_r | t_i][m, r, :] @ [[w_r, w_i], [-w_i, w_r]][m]
# (single MXU push per block instead of 4 separate real dots)
# ----------------------------------------------------------------------------
def _spectral_mix_kernel(t_ref, w_ref, o_ref):
    # t: (TR, K) bf16, w: (K, N) bf16, o: (TR, N) f32
    o_ref[...] = jnp.dot(t_ref[...], w_ref[...], preferred_element_type=jnp.float32)


def _complex_mix(tr, ti, wr, wi, *, row_tile=512):
    """tr, ti: (M, R, Cin) real/imag of (x_ft * cond_emb); wr, wi: (M, Cin, Cout).
    Returns (real, imag), each (M, R, Cout)."""
    M, R, Cin = tr.shape
    Cout = wr.shape[-1]
    K = _round_up(2 * Cin, 128)            # lane-dense contraction dim
    N = _round_up(2 * Cout, 128)           # lane-dense output dim (unmasked vst)
    TR = min(row_tile, _round_up(R, 8))
    Rp = _round_up(R, TR)

    # Stacked input [t_r | t_i], zero-padded, bf16 MXU operand.
    t = jnp.concatenate([tr, ti], axis=-1)                                # (M, R, 2Cin)
    t = jnp.pad(t, ((0, 0), (0, Rp - R), (0, K - 2 * Cin))).astype(jnp.bfloat16)
    # Stacked complex weight [[w_r, w_i], [-w_i, w_r]], zero-padded, bf16.
    w = jnp.concatenate(
        [jnp.concatenate([wr, wi], axis=-1),
         jnp.concatenate([-wi, wr], axis=-1)], axis=1)                    # (M, 2Cin, 2Cout)
    w = jnp.pad(w, ((0, 0), (0, K - 2 * Cin), (0, N - 2 * Cout))).astype(jnp.bfloat16)

    cost = pl.CostEstimate(flops=2 * M * Rp * K * N, transcendentals=0,
                           bytes_accessed=t.size * 2 + w.size * 2 + M * Rp * N * 4)
    out = pl.pallas_call(
        _spectral_mix_kernel,
        out_shape=jax.ShapeDtypeStruct((M, Rp, N), jnp.float32),
        grid=(M, Rp // TR),                 # M outermost -> weight block stays VMEM-resident
        in_specs=[
            pl.BlockSpec((None, TR, K), lambda m, r: (m, r, 0)),
            pl.BlockSpec((None, K, N), lambda m, r: (m, 0, 0)),
        ],
        out_specs=pl.BlockSpec((None, TR, N), lambda m, r: (m, r, 0)),
        compiler_params=pltpu.CompilerParams(
            dimension_semantics=("parallel", "parallel"),
            vmem_limit_bytes=_VMEM_LIMIT),
        cost_estimate=cost,
    )(t, w)
    out = out[:, :R, :]
    return out[..., :Cout], out[..., Cout:2 * Cout]


# ----------------------------------------------------------------------------
# Pallas kernel 2: ff = Linear -> ReLU -> LayerNorm -> Linear, plus residual add
#   (bf16 MXU operands, f32 accumulation / LayerNorm / residual)
# ----------------------------------------------------------------------------
def _ff_residual_kernel(x_ref, res_ref, w1_ref, b1_ref, g_ref, beta_ref,
                        w2_ref, b2_ref, o_ref):
    x = x_ref[...]                                                        # (TR, C) bf16
    h = jnp.dot(x, w1_ref[...], preferred_element_type=jnp.float32) + b1_ref[...]
    h = jnp.maximum(h, 0.0)                                               # ReLU (f32)
    mean = jnp.mean(h, axis=-1, keepdims=True)                            # LayerNorm (f32)
    var = jnp.mean(jnp.square(h - mean), axis=-1, keepdims=True)
    hn = (h - mean) * jax.lax.rsqrt(var + 1e-5)
    hn = hn * g_ref[...] + beta_ref[...]
    out = jnp.dot(hn.astype(jnp.bfloat16), w2_ref[...],
                  preferred_element_type=jnp.float32) + b2_ref[...]
    o_ref[...] = out + res_ref[...]                                       # residual (f32)


def ff_residual(xf, resf, w1, b1, g, beta, w2, b2, *, row_tile=512):
    Nr, C = xf.shape
    Ce = w1.shape[1]
    TR = min(row_tile, _round_up(Nr, 8))
    Np = _round_up(Nr, TR)                 # pad rows instead of asserting divisibility
    x_p = jnp.pad(xf, ((0, Np - Nr), (0, 0))).astype(jnp.bfloat16)
    r_p = jnp.pad(resf, ((0, Np - Nr), (0, 0)))
    cost = pl.CostEstimate(
        flops=4 * Np * C * Ce, transcendentals=Np,
        bytes_accessed=Np * C * (2 + 4 + 4) + 2 * C * Ce * 2 + (3 * Ce + C) * 4)
    out = pl.pallas_call(
        _ff_residual_kernel,
        out_shape=jax.ShapeDtypeStruct((Np, C), jnp.float32),
        grid=(Np // TR,),
        in_specs=[
            pl.BlockSpec((TR, C), lambda i: (i, 0)),     # x (bf16)
            pl.BlockSpec((TR, C), lambda i: (i, 0)),     # residual (f32)
            pl.BlockSpec((C, Ce), lambda i: (0, 0)),     # w1 (bf16, VMEM-resident)
            pl.BlockSpec((1, Ce), lambda i: (0, 0)),     # b1
            pl.BlockSpec((1, Ce), lambda i: (0, 0)),     # gamma
            pl.BlockSpec((1, Ce), lambda i: (0, 0)),     # beta
            pl.BlockSpec((Ce, C), lambda i: (0, 0)),     # w2 (bf16, VMEM-resident)
            pl.BlockSpec((1, C), lambda i: (0, 0)),      # b2
        ],
        out_specs=pl.BlockSpec((TR, C), lambda i: (i, 0)),
        compiler_params=pltpu.CompilerParams(
            dimension_semantics=("parallel",),
            vmem_limit_bytes=_VMEM_LIMIT),
        cost_estimate=cost,
    )(x_p, r_p, w1.astype(jnp.bfloat16), b1, g, beta,
      w2.astype(jnp.bfloat16), b2)
    return out[:Nr]


# ----------------------------------------------------------------------------
# Parameter init (matches the PyTorch module's shapes; deterministic)
# ----------------------------------------------------------------------------
def init_params(key, in_channels, out_channels, cond_channels, n_modes):
    M1, M2 = n_modes
    ks = jax.random.split(key, 8)
    exp = 2  # FactorFNO2dBlock.expansion
    p = {}
    s1 = 1.0 / (cond_channels + 4 * M1)
    s2 = 1.0 / (cond_channels + 4 * M2)
    p["fl1_w"] = s1 * jax.random.normal(ks[0], (cond_channels, 2 * M1), jnp.float32)
    p["fl1_b"] = jnp.zeros((1, 2 * M1), jnp.float32)
    p["fl2_w"] = s2 * jax.random.normal(ks[1], (cond_channels, 2 * M2), jnp.float32)
    p["fl2_b"] = jnp.zeros((1, 2 * M2), jnp.float32)
    std1 = math.sqrt(2.0 / (out_channels * M1))
    std2 = math.sqrt(2.0 / (out_channels * M2))
    p["w1_r"] = std1 * jax.random.normal(ks[2], (in_channels, out_channels, M1), jnp.float32)
    p["w1_i"] = jnp.zeros((in_channels, out_channels, M1), jnp.float32)
    p["w2_r"] = std2 * jax.random.normal(ks[3], (in_channels, out_channels, M2), jnp.float32)
    p["w2_i"] = jnp.zeros((in_channels, out_channels, M2), jnp.float32)
    C, Ce = out_channels, out_channels * exp
    b1 = 1.0 / math.sqrt(C)
    b2 = 1.0 / math.sqrt(Ce)
    p["ff_w1"] = jax.random.uniform(ks[4], (C, Ce), jnp.float32, -b1, b1)
    p["ff_b1"] = jax.random.uniform(ks[5], (1, Ce), jnp.float32, -b1, b1)
    p["ln_g"] = jnp.ones((1, Ce), jnp.float32)
    p["ln_b"] = jnp.zeros((1, Ce), jnp.float32)
    p["ff_w2"] = jax.random.uniform(ks[6], (Ce, C), jnp.float32, -b2, b2)
    p["ff_b2"] = jax.random.uniform(ks[7], (1, C), jnp.float32, -b2, b2)
    return p


def _freq_linear(emb, w, b, mode):
    # (B, cond) @ (cond, 2*mode) + bias -> complex (B, mode).  Tiny glue matmul.
    h = emb @ w + b
    h = h.reshape(emb.shape[0], mode, 2)
    return h[..., 0], h[..., 1]


# ----------------------------------------------------------------------------
# Full FactorFNO2dBlock forward (freqlinear path)
# ----------------------------------------------------------------------------
def factor_fno2d_block(x, emb, params, n_modes):
    B, Cin, H, W = x.shape
    M1, M2 = n_modes
    Cout = params["w1_r"].shape[1]
    assert Cin == Cout  # residual add requires matching channels (as in the PyTorch module)

    e1r, e1i = _freq_linear(emb, params["fl1_w"], params["fl1_b"], M1)
    e2r, e2i = _freq_linear(emb, params["fl2_w"], params["fl2_b"], M2)
    emb1 = jax.lax.complex(e1r, e1i)                             # (B, M1)
    emb2 = jax.lax.complex(e2r, e2i)                             # (B, M2)

    x_nhwc = jnp.transpose(x, (0, 2, 3, 1))                      # channels-last once

    # ---- branch dim=-1 (FFT along W; uses cond_emb1 and weight_2, per PyTorch forward) ----
    xf = jnp.fft.rfft(x_nhwc, axis=2, norm="ortho")              # (B, H, Wf, Cin)
    Wf = xf.shape[2]
    t = xf[:, :, :M2, :] * emb1[:, None, :, None]                # tiny elementwise, plain JAX
    tr = jnp.transpose(jnp.real(t), (2, 0, 1, 3)).reshape(M2, B * H, Cin)
    ti = jnp.transpose(jnp.imag(t), (2, 0, 1, 3)).reshape(M2, B * H, Cin)
    wr = jnp.transpose(params["w2_r"], (2, 0, 1))                # (M2, Cin, Cout)
    wi = jnp.transpose(params["w2_i"], (2, 0, 1))
    our, oui = _complex_mix(tr, ti, wr, wi)                      # (M2, B*H, Cout)
    out_c = jax.lax.complex(our, oui).reshape(M2, B, H, Cout)
    out_c = jnp.transpose(out_c, (1, 2, 0, 3))                   # (B, H, M2, Cout)
    out_c = jnp.pad(out_c, ((0, 0), (0, 0), (0, Wf - M2), (0, 0)))
    xx = jnp.fft.irfft(out_c, n=W, axis=2, norm="ortho")         # (B, H, W, Cout)

    # ---- branch dim=-2 (FFT along H; uses cond_emb2 and weight_1) ----
    yf = jnp.fft.rfft(x_nhwc, axis=1, norm="ortho")              # (B, Hf, W, Cin)
    Hf = yf.shape[1]
    t2 = yf[:, :M1, :, :] * emb2[:, :, None, None]
    t2r = jnp.transpose(jnp.real(t2), (1, 0, 2, 3)).reshape(M1, B * W, Cin)
    t2i = jnp.transpose(jnp.imag(t2), (1, 0, 2, 3)).reshape(M1, B * W, Cin)
    vr = jnp.transpose(params["w1_r"], (2, 0, 1))                # (M1, Cin, Cout)
    vi = jnp.transpose(params["w1_i"], (2, 0, 1))
    pur, pui = _complex_mix(t2r, t2i, vr, vi)                    # (M1, B*W, Cout)
    out_c2 = jax.lax.complex(pur, pui).reshape(M1, B, W, Cout)
    out_c2 = jnp.transpose(out_c2, (1, 0, 2, 3))                 # (B, M1, W, Cout)
    out_c2 = jnp.pad(out_c2, ((0, 0), (0, Hf - M1), (0, 0), (0, 0)))
    xy = jnp.fft.irfft(out_c2, n=H, axis=1, norm="ortho")        # (B, H, W, Cout)

    f = xx + xy                                                  # f_conv output, NHWC

    # ---- ff(Linear-ReLU-LayerNorm-Linear) + residual, fused in one Pallas kernel ----
    f_flat = f.reshape(B * H * W, Cout)                          # channels already last
    res_flat = x_nhwc.reshape(B * H * W, Cin)
    out_flat = ff_residual(f_flat, res_flat,
                           params["ff_w1"], params["ff_b1"],
                           params["ln_g"], params["ln_b"],
                           params["ff_w2"], params["ff_b2"])
    return out_flat.reshape(B, H, W, Cout).transpose(0, 3, 1, 2)  # back to NCHW


# ----------------------------------------------------------------------------
# Pure-JAX f32 reference (mirrors the PyTorch semantics) for a sanity check
# ----------------------------------------------------------------------------
def reference_forward(x, emb, params, n_modes):
    B, Cin, H, W = x.shape
    M1, M2 = n_modes
    Cout = params["w1_r"].shape[1]
    e1r, e1i = _freq_linear(emb, params["fl1_w"], params["fl1_b"], M1)
    e2r, e2i = _freq_linear(emb, params["fl2_w"], params["fl2_b"], M2)
    emb1 = e1r + 1j * e1i
    emb2 = e2r + 1j * e2i
    w1 = params["w1_r"] + 1j * params["w1_i"]
    w2 = params["w2_r"] + 1j * params["w2_i"]

    x_ft = jnp.fft.rfft(x, axis=-1, norm="ortho")
    out_ft = jnp.zeros((B, Cout, H, x_ft.shape[-1]), jnp.complex64)
    t = x_ft[..., :M2] * emb1[:, None, None, :]
    out_ft = out_ft.at[..., :M2].set(jnp.einsum("bixy,ioy->boxy", t, w2))
    xx = jnp.fft.irfft(out_ft, n=W, axis=-1, norm="ortho")

    y_ft = jnp.fft.rfft(x, axis=-2, norm="ortho")
    out_ft2 = jnp.zeros((B, Cout, y_ft.shape[-2], W), jnp.complex64)
    t2 = y_ft[:, :, :M1, :] * emb2[:, None, :, None]
    out_ft2 = out_ft2.at[:, :, :M1, :].set(jnp.einsum("bixy,iox->boxy", t2, w1))
    xy = jnp.fft.irfft(out_ft2, n=H, axis=-2, norm="ortho")

    f = xx + xy
    xf = jnp.transpose(f, (0, 2, 3, 1)).reshape(B * H * W, Cout)
    h = xf @ params["ff_w1"] + params["ff_b1"]
    h = jnp.maximum(h, 0.0)
    mean = h.mean(-1, keepdims=True)
    var = jnp.square(h - mean).mean(-1, keepdims=True)
    hn = (h - mean) / jnp.sqrt(var + 1e-5) * params["ln_g"] + params["ln_b"]
    o = hn @ params["ff_w2"] + params["ff_b2"]
    o = o + jnp.transpose(x, (0, 2, 3, 1)).reshape(B * H * W, Cin)
    return o.reshape(B, H, W, Cout).transpose(0, 3, 1, 2)


if __name__ == "__main__":
    B, Cin, Cout, H, W = 2, 4, 4, 16, 16
    cond_channels = 3
    n_modes = (5, 5)

    params = init_params(jax.random.PRNGKey(0), Cin, Cout, cond_channels, n_modes)
    kx, ke = jax.random.split(jax.random.PRNGKey(1))
    x = jax.random.normal(kx, (B, Cin, H, W), jnp.float32)
    emb = jax.random.normal(ke, (B, cond_channels), jnp.float32)

    fwd = jax.jit(factor_fno2d_block, static_argnums=(3,))
    out = jax.block_until_ready(fwd(x, emb, params, n_modes))

    ref = reference_forward(x, emb, params, n_modes)
    err = float(jnp.max(jnp.abs(out - ref)))
    assert out.shape == (B, Cout, H, W)
    # Tolerance accounts for bf16 MXU operands (rel ~4e-3) with f32 accumulation,
    # amplified through LayerNorm + the second linear; a wrong kernel would be off by O(1).
    assert err < 3e-2, f"mismatch vs f32 reference: {err}"
    print("KERNEL_OK")
</pallas_src>

<mosaic_0001>
module attributes {stable_mosaic.version = 11 : i64} {
  func.func @_spectral_mix_kernel(%arg0: i32, %arg1: i32, %arg2: memref<1x32x128xbf16, #tpu.memory_space<vmem>>, %arg3: memref<1x128x128xbf16, #tpu.memory_space<vmem>>, %arg4: memref<1x32x128xf32, #tpu.memory_space<vmem>>) attributes {dimension_semantics = [#tpu.dimension_semantics<parallel>, #tpu.dimension_semantics<parallel>], iteration_bounds = array<i64: 5, 1>, scalar_prefetch = 0 : i64, scratch_operands = 0 : i64, tpu.core_type = #tpu.core_type<tc>, window_params = [{transform_indices = @transform_0, window_bounds = array<i64: 1, 32, 128>}, {transform_indices = @transform_1, window_bounds = array<i64: 1, 128, 128>}, {transform_indices = @transform_2, window_bounds = array<i64: 1, 32, 128>}]} {
    %c0 = arith.constant 0 : index
    %c0_0 = arith.constant 0 : index
    %c0_1 = arith.constant 0 : index
    %0 = vector.load %arg2[%c0, %c0_0, %c0_1] : memref<1x32x128xbf16, #tpu.memory_space<vmem>>, vector<1x32x128xbf16>
    %1 = vector.shape_cast %0 : vector<1x32x128xbf16> to vector<32x128xbf16>
    %c0_2 = arith.constant 0 : index
    %c0_3 = arith.constant 0 : index
    %c0_4 = arith.constant 0 : index
    %2 = vector.load %arg3[%c0_2, %c0_3, %c0_4] : memref<1x128x128xbf16, #tpu.memory_space<vmem>>, vector<1x128x128xbf16>
    %3 = vector.shape_cast %2 : vector<1x128x128xbf16> to vector<128x128xbf16>
    %cst = arith.constant dense<0.000000e+00> : vector<32x128xf32>
    %4 = tpu.matmul %1, %3, %cst {dimension_numbers = #tpu.dot_dimension_numbers<[1], [0], [0], [1], [0, 0, 1, 1], [], []>} : vector<32x128xbf16>, vector<128x128xbf16>, vector<32x128xf32> -> vector<32x128xf32>
    %c0_5 = arith.constant 0 : index
    %c0_6 = arith.constant 0 : index
    %c0_7 = arith.constant 0 : index
    %5 = vector.load %arg4[%c0_5, %c0_6, %c0_7] : memref<1x32x128xf32, #tpu.memory_space<vmem>>, vector<1x32x128xf32>
    %6 = vector.shape_cast %5 : vector<1x32x128xf32> to vector<32x128xf32>
    %7 = vector.shape_cast %4 : vector<32x128xf32> to vector<1x32x128xf32>
    tpu.vector_store %arg4[%c0_5, %c0_6, %c0_7], %7 {strides = array<i32>} : memref<1x32x128xf32, #tpu.memory_space<vmem>>, vector<1x32x128xf32>,
    return
  }
  func.func @transform_0(%arg0: i32, %arg1: i32) -> (i32, i32, i32) {
    %c0_i32 = arith.constant 0 : i32
    %c0_i32_0 = arith.constant 0 : i32
    return %arg0, %arg1, %c0_i32 : i32, i32, i32
  }
  func.func @transform_1(%arg0: i32, %arg1: i32) -> (i32, i32, i32) {
    %c0_i32 = arith.constant 0 : i32
    %c0_i32_0 = arith.constant 0 : i32
    %c0_i32_1 = arith.constant 0 : i32
    return %arg0, %c0_i32, %c0_i32_0 : i32, i32, i32
  }
  func.func @transform_2(%arg0: i32, %arg1: i32) -> (i32, i32, i32) {
    %c0_i32 = arith.constant 0 : i32
    %c0_i32_0 = arith.constant 0 : i32
    return %arg0, %arg1, %c0_i32 : i32, i32, i32
  }
}

module attributes {stable_mosaic.version = 11 : i64} {
  func.func @_ff_residual_kernel(%arg0: i32, %arg1: memref<512x4xbf16, #tpu.memory_space<vmem>>, %arg2: memref<512x4xf32, #tpu.memory_space<vmem>>, %arg3: memref<4x8xbf16, #tpu.memory_space<vmem>>, %arg4: memref<1x8xf32, #tpu.memory_space<vmem>>, %arg5: memref<1x8xf32, #tpu.memory_space<vmem>>, %arg6: memref<1x8xf32, #tpu.memory_space<vmem>>, %arg7: memref<8x4xbf16, #tpu.memory_space<vmem>>, %arg8: memref<1x4xf32, #tpu.memory_space<vmem>>, %arg9: memref<512x4xf32, #tpu.memory_space<vmem>>) attributes {dimension_semantics = [#tpu.dimension_semantics<parallel>], iteration_bounds = array<i64: 1>, scalar_prefetch = 0 : i64, scratch_operands = 0 : i64, tpu.core_type = #tpu.core_type<tc>, window_params = [{transform_indices = @transform_0, window_bounds = array<i64: 512, 4>}, {transform_indices = @transform_1, window_bounds = array<i64: 512, 4>}, {pipeline_mode = #tpu.pipeline_mode<synchronous>, transform_indices = @transform_2, window_bounds = array<i64: 4, 8>}, {pipeline_mode = #tpu.pipeline_mode<synchronous>, transform_indices = @transform_3, window_bounds = array<i64: 1, 8>}, {pipeline_mode = #tpu.pipeline_mode<synchronous>, transform_indices = @transform_4, window_bounds = array<i64: 1, 8>}, {pipeline_mode = #tpu.pipeline_mode<synchronous>, transform_indices = @transform_5, window_bounds = array<i64: 1, 8>}, {pipeline_mode = #tpu.pipeline_mode<synchronous>, transform_indices = @transform_6, window_bounds = array<i64: 8, 4>}, {pipeline_mode = #tpu.pipeline_mode<synchronous>, transform_indices = @transform_7, window_bounds = array<i64: 1, 4>}, {transform_indices = @transform_8, window_bounds = array<i64: 512, 4>}]} {
    %c0 = arith.constant 0 : index
    %c0_0 = arith.constant 0 : index
    %0 = vector.load %arg1[%c0, %c0_0] : memref<512x4xbf16, #tpu.memory_space<vmem>>, vector<512x4xbf16>
    %c0_1 = arith.constant 0 : index
    %c0_2 = arith.constant 0 : index
    %1 = vector.load %arg3[%c0_1, %c0_2] : memref<4x8xbf16, #tpu.memory_space<vmem>>, vector<4x8xbf16>
    %cst = arith.constant dense<0.000000e+00> : vector<512x8xf32>
    %2 = tpu.matmul %0, %1, %cst {dimension_numbers = #tpu.dot_dimension_numbers<[1], [0], [0], [1], [0, 0, 1, 1], [], []>} : vector<512x4xbf16>, vector<4x8xbf16>, vector<512x8xf32> -> vector<512x8xf32>
    %c0_3 = arith.constant 0 : index
    %c0_4 = arith.constant 0 : index
    %3 = vector.load %arg4[%c0_3, %c0_4] : memref<1x8xf32, #tpu.memory_space<vmem>>, vector<1x8xf32>
    %4 = vector.broadcast %3 : vector<1x8xf32> to vector<512x8xf32>
    %5 = arith.addf %2, %4 : vector<512x8xf32>
    %cst_5 = arith.constant 0.000000e+00 : f32
    %6 = vector.broadcast %cst_5 : f32 to vector<512x8xf32>
    %7 = arith.maximumf %5, %6 : vector<512x8xf32>
    %cst_6 = arith.constant dense<0.000000e+00> : vector<512xf32>
    %8 = vector.multi_reduction <add>, %7, %cst_6 [1] : vector<512x8xf32> to vector<512xf32>
    %9 = vector.shape_cast %8 : vector<512xf32> to vector<512x1xf32>
    %cst_7 = arith.constant 8.000000e+00 : f32
    %10 = vector.broadcast %cst_7 : f32 to vector<512x1xf32>
    %11 = arith.divf %9, %10 : vector<512x1xf32>
    %12 = vector.broadcast %11 : vector<512x1xf32> to vector<512x8xf32>
    %13 = arith.subf %7, %12 : vector<512x8xf32>
    %14 = arith.mulf %13, %13 : vector<512x8xf32>
    %cst_8 = arith.constant dense<0.000000e+00> : vector<512xf32>
    %15 = vector.multi_reduction <add>, %14, %cst_8 [1] : vector<512x8xf32> to vector<512xf32>
    %16 = vector.shape_cast %15 : vector<512xf32> to vector<512x1xf32>
    %cst_9 = arith.constant 8.000000e+00 : f32
    %17 = vector.broadcast %cst_9 : f32 to vector<512x1xf32>
    %18 = arith.divf %16, %17 : vector<512x1xf32>
    %19 = vector.broadcast %11 : vector<512x1xf32> to vector<512x8xf32>
    %20 = arith.subf %7, %19 : vector<512x8xf32>
    %cst_10 = arith.constant 9.99999974E-6 : f32
    %21 = vector.broadcast %cst_10 : f32 to vector<512x1xf32>
    %22 = arith.addf %18, %21 : vector<512x1xf32>
    %23 = math.rsqrt %22 : vector<512x1xf32>
    %24 = vector.broadcast %23 : vector<512x1xf32> to vector<512x8xf32>
    %25 = arith.mulf %20, %24 : vector<512x8xf32>
    %c0_11 = arith.constant 0 : index
    %c0_12 = arith.constant 0 : index
    %26 = vector.load %arg5[%c0_11, %c0_12] : memref<1x8xf32, #tpu.memory_space<vmem>>, vector<1x8xf32>
    %27 = vector.broadcast %26 : vector<1x8xf32> to vector<512x8xf32>
    %28 = arith.mulf %25, %27 : vector<512x8xf32>
    %c0_13 = arith.constant 0 : index
    %c0_14 = arith.constant 0 : index
    %29 = vector.load %arg6[%c0_13, %c0_14] : memref<1x8xf32, #tpu.memory_space<vmem>>, vector<1x8xf32>
    %30 = vector.broadcast %29 : vector<1x8xf32> to vector<512x8xf32>
    %31 = arith.addf %28, %30 : vector<512x8xf32>
    %32 = arith.truncf %31 : vector<512x8xf32> to vector<512x8xbf16>
    %c0_15 = arith.constant 0 : index
    %c0_16 = arith.constant 0 : index
    %33 = vector.load %arg7[%c0_15, %c0_16] : memref<8x4xbf16, #tpu.memory_space<vmem>>, vector<8x4xbf16>
    %cst_17 = arith.constant dense<0.000000e+00> : vector<512x4xf32>
    %34 = tpu.matmul %32, %33, %cst_17 {dimension_numbers = #tpu.dot_dimension_numbers<[1], [0], [0], [1], [0, 0, 1, 1], [], []>} : vector<512x8xbf16>, vector<8x4xbf16>, vector<512x4xf32> -> vector<512x4xf32>
    %c0_18 = arith.constant 0 : index
    %c0_19 = arith.constant 0 : index
    %35 = vector.load %arg8[%c0_18, %c0_19] : memref<1x4xf32, #tpu.memory_space<vmem>>, vector<1x4xf32>
    %36 = vector.broadcast %35 : vector<1x4xf32> to vector<512x4xf32>
    %37 = arith.addf %34, %36 : vector<512x4xf32>
    %c0_20 = arith.constant 0 : index
    %c0_21 = arith.constant 0 : index
    %38 = vector.load %arg2[%c0_20, %c0_21] : memref<512x4xf32, #tpu.memory_space<vmem>>, vector<512x4xf32>
    %39 = arith.addf %37, %38 : vector<512x4xf32>
    %c0_22 = arith.constant 0 : index
    %c0_23 = arith.constant 0 : index
    %40 = vector.load %arg9[%c0_22, %c0_23] : memref<512x4xf32, #tpu.memory_space<vmem>>, vector<512x4xf32>
    tpu.vector_store %arg9[%c0_22, %c0_23], %39 {strides = array<i32>} : memref<512x4xf32, #tpu.memory_space<vmem>>, vector<512x4xf32>,
    return
  }
  func.func @transform_0(%arg0: i32) -> (i32, i32) {
    %c0_i32 = arith.constant 0 : i32
    %c0_i32_0 = arith.constant 0 : i32
    return %arg0, %c0_i32 : i32, i32
  }
  func.func @transform_1(%arg0: i32) -> (i32, i32) {
    %c0_i32 = arith.constant 0 : i32
    %c0_i32_0 = arith.constant 0 : i32
    return %arg0, %c0_i32 : i32, i32
  }
  func.func @transform_2(%arg0: i32) -> (i32, i32) {
    %c0_i32 = arith.constant 0 : i32
    %c0_i32_0 = arith.constant 0 : i32
    %c0_i32_1 = arith.constant 0 : i32
    return %c0_i32, %c0_i32_0 : i32, i32
  }
  func.func @transform_3(%arg0: i32) -> (i32, i32) {
    %c0_i32 = arith.constant 0 : i32
    %c0_i32_0 = arith.constant 0 : i32
    %c0_i32_1 = arith.constant 0 : i32
    return %c0_i32, %c0_i32_0 : i32, i32
  }
  func.func @transform_4(%arg0: i32) -> (i32, i32) {
    %c0_i32 = arith.constant 0 : i32
    %c0_i32_0 = arith.constant 0 : i32
    %c0_i32_1 = arith.constant 0 : i32
    return %c0_i32, %c0_i32_0 : i32, i32
  }
  func.func @transform_5(%arg0: i32) -> (i32, i32) {
    %c0_i32 = arith.constant 0 : i32
    %c0_i32_0 = arith.constant 0 : i32
    %c0_i32_1 = arith.constant 0 : i32
    return %c0_i32, %c0_i32_0 : i32, i32
  }
  func.func @transform_6(%arg0: i32) -> (i32, i32) {
    %c0_i32 = arith.constant 0 : i32
    %c0_i32_0 = arith.constant 0 : i32
    %c0_i32_1 = arith.constant 0 : i32
    return %c0_i32, %c0_i32_0 : i32, i32
  }
  func.func @transform_7(%arg0: i32) -> (i32, i32) {
    %c0_i32 = arith.constant 0 : i32
    %c0_i32_0 = arith.constant 0 : i32
    %c0_i32_1 = arith.constant 0 : i32
    return %c0_i32, %c0_i32_0 : i32, i32
  }
  func.func @transform_8(%arg0: i32) -> (i32, i32) {
    %c0_i32 = arith.constant 0 : i32
    %c0_i32_0 = arith.constant 0 : i32
    return %arg0, %c0_i32 : i32, i32
  }
}

</mosaic_0001>

<llo_original>
// kernel: neg.1
$region0: #{neg.1}
  #allocation0 [shape = 's32[1]{0}', space=sflag, size = 0x4, scoped, tag = 'scoped memory for neg.1']
  %s0 = inlined_call_operand.vmem [shape: f32[4,4,5], index: 0, kind: input, shape index: {}]
  %s1 = inlined_call_operand.vmem [shape: bf16[4,4,5], index: 1, kind: output, shape index: {}]
  %v2 = vld [vmem:[%s0] sm:$0xf]
  %3 = xla_tuple %v2
  %4 = xla_tuple %3
  %v5 = vxor.u32 %v2, 2147483648
  %6 = xla_tuple %v5
  %v7 = vpack.c.bf16 0.0, %v5
  %8 = vst [vmem:[%s1] sm:$0x3] %v7
  %s9 = scalar_lea.vmem %s0, 4
  %v10 = vld [vmem:[%s9] sm:$0xf]
  %11 = xla_tuple %v10
  %12 = xla_tuple %11
  %v13 = vxor.u32 %v10, 2147483648
  %14 = xla_tuple %v13
  %s15 = scalar_lea.vmem %s1, 2
  %v16 = vpack.c.bf16 0.0, %v13
  %17 = vst [vmem:[%s15] sm:$0x3] %v16
  %s18 = scalar_lea.vmem %s0, 8
  %v19 = vld [vmem:[%s18] sm:$0xf]
  %20 = xla_tuple %v19
  %21 = xla_tuple %20
  %v22 = vxor.u32 %v19, 2147483648
  %23 = xla_tuple %v22
  %s24 = scalar_lea.vmem %s1, 4
  %v25 = vpack.c.bf16 0.0, %v22
  %26 = vst [vmem:[%s24] sm:$0x3] %v25
  %s27 = scalar_lea.vmem %s0, 12
  %v28 = vld [vmem:[%s27] sm:$0xf]
  %29 = xla_tuple %v28
  %30 = xla_tuple %29
  %v31 = vxor.u32 %v28, 2147483648
  %32 = xla_tuple %v31
  %s33 = scalar_lea.vmem %s1, 6
  %v34 = vpack.c.bf16 0.0, %v31
  %35 = vst [vmem:[%s33] sm:$0x3] %v34

// kernel: reverse.7
$region0: #{reverse.7}
  %s0 = inlined_call_operand.vmem [shape: f32[2,16,4,7], index: 0, kind: input, shape index: {}]
  %s1 = inlined_call_operand.vmem [shape: f32[2,16,4,7], index: 1, kind: output, shape index: {}]
  %v2 = vlaneseq
  %v3 = vsub.s32 6, %v2
  %4 = vset.pattern.permute.xlu0 %v3
  $region1: #{reverse.7} parent=0
    #allocation0 [shape = 'u8[65536]{0}', space=vmem, size = 0x10000, scoped, tag = 'operand span for operand 0']
    #allocation1 [shape = 'u8[65536]{0}', space=vmem, size = 0x10000, scoped, tag = 'operand span for operand 1']
    // Predicated region
    $region2: #{reverse.7} parent=1 // pred_check
      _
    $region3: #{reverse.7} parent=1 // pred_check_branch
      %6 = sbr.rel (0) target = $region5
    $region4: #{reverse.7} parent=1 // pred_region
      // Predicated region
      $region6: #{reverse.7} parent=4 // pred_check
        _
      $region7: #{reverse.7} parent=4 // pred_check_branch
        %8 = sbr.rel (0) target = $region9
      $region8: #{reverse.7} parent=4 // pred_region
        // Predicated region
        $region21: #{reverse.7} parent=8 // pred_check
          _
        $region22: #{reverse.7} parent=8 // pred_check_branch
          %53 = sbr.rel (0) target = $region24
        $region23: #{reverse.7} parent=8 // pred_region
          loop: start=0, step=1, limit=1
          $region25: #{reverse.7} parent=23 // loop_pre_header
            _
          $region26: #{reverse.7} parent=23 // loop_header
            %s55 = sphi 0, %s59
            %p56 = scmp.ge.s32.totalorder %s55, 1
            %s60 = sphi %s0, %s0
            %s61 = sphi [#allocation0], [#allocation0]
          $region27: #{reverse.7} parent=23 // loop_header_branch
            %58 = sbr.rel (%p56) target = $region31
          $region28: #{reverse.7} parent=23 // loop_body
            %v62 = vld [vmem:[%s60] sm:$0xff]
            %63 = vst [vmem:[%s61] sm:$0xff] %v62
            %v64 = vld [vmem:[%s60 + $0x8] sm:$0xff]
            %65 = vst [vmem:[%s61 + $0x8] sm:$0xff] %v64
            %v66 = vld [vmem:[%s60 + $0x10] sm:$0xff]
            %67 = vst [vmem:[%s61 + $0x10] sm:$0xff] %v66
            %v68 = vld [vmem:[%s60 + $0x18] sm:$0xff]
            %69 = vst [vmem:[%s61 + $0x18] sm:$0xff] %v68
            %v70 = vld [vmem:[%s60 + $0x20] sm:$0xff]
            %71 = vst [vmem:[%s61 + $0x20] sm:$0xff] %v70
            %v72 = vld [vmem:[%s60 + $0x28] sm:$0xff]
            %73 = vst [vmem:[%s61 + $0x28] sm:$0xff] %v72
            %v74 = vld [vmem:[%s60 + $0x30] sm:$0xff]
            %75 = vst [vmem:[%s61 + $0x30] sm:$0xff] %v74
            %v76 = vld [vmem:[%s60 + $0x38] sm:$0xff]
            %77 = vst [vmem:[%s61 + $0x38] sm:$0xff] %v76
            %v78 = vld [vmem:[%s60 + $0x40] sm:$0xff]
            %79 = vst [vmem:[%s61 + $0x40] sm:$0xff] %v78
            %v80 = vld [vmem:[%s60 + $0x48] sm:$0xff]
            %81 = vst [vmem:[%s61 + $0x48] sm:$0xff] %v80
            %v82 = vld [vmem:[%s60 + $0x50] sm:$0xff]
            %83 = vst [vmem:[%s61 + $0x50] sm:$0xff] %v82
            %v84 = vld [vmem:[%s60 + $0x58] sm:$0xff]
            %85 = vst [vmem:[%s61 + $0x58] sm:$0xff] %v84
            %v86 = vld [vmem:[%s60 + $0x60] sm:$0xff]
            %87 = vst [vmem:[%s61 + $0x60] sm:$0xff] %v86
            %v88 = vld [vmem:[%s60 + $0x68] sm:$0xff]
            %89 = vst [vmem:[%s61 + $0x68] sm:$0xff] %v88
            %v90 = vld [vmem:[%s60 + $0x70] sm:$0xff]
            %91 = vst [vmem:[%s61 + $0x70] sm:$0xff] %v90
            %v92 = vld [vmem:[%s60 + $0x78] sm:$0xff]
            %93 = vst [vmem:[%s61 + $0x78] sm:$0xff] %v92
          $region29: #{reverse.7} parent=23 // loop_footer
            %s59 = sadd.s32 1, %s55
          $region30: #{reverse.7} parent=23 // loop_footer_branch
            %54 = sbr.rel target = $region26
          $region31: #{reverse.7} parent=23 // loop_exit
            _
        $region24: #{reverse.7} parent=8 // pred_fallthru
          _
        // Predicated region
        $region32: #{reverse.7} parent=8 // pred_check
          _
        $region33: #{reverse.7} parent=8 // pred_check_branch
          %95 = sbr.rel target = $region35
        $region34: #{reverse.7} parent=8 // pred_region
          _
        $region35: #{reverse.7} parent=8 // pred_fallthru
          _
      $region9: #{reverse.7} parent=4 // pred_fallthru
        _
      // Predicated region
      $region10: #{reverse.7} parent=4 // pred_check
        _
      $region11: #{reverse.7} parent=4 // pred_check_branch
        %10 = sbr.rel target = $region13
      $region12: #{reverse.7} parent=4 // pred_region
        loop: start=0, step=1, limit=1
        $region14: #{reverse.7} parent=12 // loop_pre_header
          _
        $region15: #{reverse.7} parent=12 // loop_header
          %s13 = sphi 0, %s17
          %p14 = scmp.ge.s32.totalorder %s13, 1
          %s18 = sphi %s0, %s0
          %s19 = sphi [#allocation0], [#allocation0]
        $region16: #{reverse.7} parent=12 // loop_header_branch
          %16 = sbr.rel (%p14) target = $region20
        $region17: #{reverse.7} parent=12 // loop_body
          %v20 = vld [vmem:[%s18] sm:$0xff]
          %21 = vst [vmem:[%s19] sm:$0xff] %v20
          %v22 = vld [vmem:[%s18 + $0x8] sm:$0xff]
          %23 = vst [vmem:[%s19 + $0x8] sm:$0xff] %v22
          %v24 = vld [vmem:[%s18 + $0x10] sm:$0xff]
          %25 = vst [vmem:[%s19 + $0x10] sm:$0xff] %v24
          %v26 = vld [vmem:[%s18 + $0x18] sm:$0xff]
          %27 = vst [vmem:[%s19 + $0x18] sm:$0xff] %v26
          %v28 = vld [vmem:[%s18 + $0x20] sm:$0xff]
          %29 = vst [vmem:[%s19 + $0x20] sm:$0xff] %v28
          %v30 = vld [vmem:[%s18 + $0x28] sm:$0xff]
          %31 = vst [vmem:[%s19 + $0x28] sm:$0xff] %v30
          %v32 = vld [vmem:[%s18 + $0x30] sm:$0xff]
          %33 = vst [vmem:[%s19 + $0x30] sm:$0xff] %v32
          %v34 = vld [vmem:[%s18 + $0x38] sm:$0xff]
          %35 = vst [vmem:[%s19 + $0x38] sm:$0xff] %v34
          %v36 = vld [vmem:[%s18 + $0x40] sm:$0xff]
          %37 = vst [vmem:[%s19 + $0x40] sm:$0xff] %v36
          %v38 = vld [vmem:[%s18 + $0x48] sm:$0xff]
          %39 = vst [vmem:[%s19 + $0x48] sm:$0xff] %v38
          %v40 = vld [vmem:[%s18 + $0x50] sm:$0xff]
          %41 = vst [vmem:[%s19 + $0x50] sm:$0xff] %v40
          %v42 = vld [vmem:[%s18 + $0x58] sm:$0xff]
          %43 = vst [vmem:[%s19 + $0x58] sm:$0xff] %v42
          %v44 = vld [vmem:[%s18 + $0x60] sm:$0xff]
          %45 = vst [vmem:[%s19 + $0x60] sm:$0xff] %v44
          %v46 = vld [vmem:[%s18 + $0x68] sm:$0xff]
          %47 = vst [vmem:[%s19 + $0x68] sm:$0xff] %v46
          %v48 = vld [vmem:[%s18 + $0x70] sm:$0xff]
          %49 = vst [vmem:[%s19 + $0x70] sm:$0xff] %v48
          %v50 = vld [vmem:[%s18 + $0x78] sm:$0xff]
          %51 = vst [vmem:[%s19 + $0x78] sm:$0xff] %v50
        $region18: #{reverse.7} parent=12 // loop_footer
          %s17 = sadd.s32 1, %s13
        $region19: #{reverse.7} parent=12 // loop_footer_branch
          %12 = sbr.rel target = $region15
        $region20: #{reverse.7} parent=12 // loop_exit
          _
      $region13: #{reverse.7} parent=4 // pred_fallthru
        _
    $region5: #{reverse.7} parent=1 // pred_fallthru
      _
    %96 = vnop
    %v97 = vld [vmem:[#allocation0] sm:$0xff]
    %98 = vperm.xlu0 %4, %v97
    %v99 = vpop.permute.xlu0 %98
    %100 = vst [vmem:[#allocation1] sm:$0xff] %v99
    %s101 = scalar_lea.vmem [#allocation1], 8
    %s102 = scalar_lea.vmem [#allocation0], 8
    %v103 = vld [vmem:[%s102] sm:$0xff]
    %104 = vperm.xlu0 %4, %v103
    %v105 = vpop.permute.xlu0 %104
    %106 = vst [vmem:[%s101] sm:$0xff] %v105
    %s107 = scalar_lea.vmem [#allocation1], 16
    %s108 = scalar_lea.vmem [#allocation0], 16
    %v109 = vld [vmem:[%s108] sm:$0xff]
    %110 = vperm.xlu0 %4, %v109
    %v111 = vpop.permute.xlu0 %110
    %112 = vst [vmem:[%s107] sm:$0xff] %v111
    %s113 = scalar_lea.vmem %s107, 8 [#allocation1]
    %s114 = scalar_lea.vmem %s108, 8 [#allocation0]
    %v115 = vld [vmem:[%s114] sm:$0xff]
    %116 = vperm.xlu0 %4, %v115
    %v117 = vpop.permute.xlu0 %116
    %118 = vst [vmem:[%s113] sm:$0xff] %v117
    %s119 = scalar_lea.vmem [#allocation1], 32
    %s120 = scalar_lea.vmem [#allocation0], 32
    %v121 = vld [vmem:[%s120] sm:$0xff]
    %122 = vperm.xlu0 %4, %v121
    %v123 = vpop.permute.xlu0 %122
    %124 = vst [vmem:[%s119] sm:$0xff] %v123
    %s125 = scalar_lea.vmem %s119, 8 [#allocation1]
    %s126 = scalar_lea.vmem %s120, 8 [#allocation0]
    %v127 = vld [vmem:[%s126] sm:$0xff]
    %128 = vperm.xlu0 %4, %v127
    %v129 = vpop.permute.xlu0 %128
    %130 = vst [vmem:[%s125] sm:$0xff] %v129
    %s131 = scalar_lea.vmem [#allocation1], 48
    %s132 = scalar_lea.vmem [#allocation0], 48
    %v133 = vld [vmem:[%s132] sm:$0xff]
    %134 = vperm.xlu0 %4, %v133
    %v135 = vpop.permute.xlu0 %134
    %136 = vst [vmem:[%s131] sm:$0xff] %v135
    %s137 = scalar_lea.vmem %s131, 8 [#allocation1]
    %s138 = scalar_lea.vmem %s132, 8 [#allocation0]
    %v139 = vld [vmem:[%s138] sm:$0xff]
    %140 = vperm.xlu0 %4, %v139
    %v141 = vpop.permute.xlu0 %140
    %142 = vst [vmem:[%s137] sm:$0xff] %v141
    %s143 = scalar_lea.vmem [#allocation1], 64
    %s144 = scalar_lea.vmem [#allocation0], 64
    %v145 = vld [vmem:[%s144] sm:$0xff]
    %146 = vperm.xlu0 %4, %v145
    %v147 = vpop.permute.xlu0 %146
    %148 = vst [vmem:[%s143] sm:$0xff] %v147
    %s149 = scalar_lea.vmem %s143, 8 [#allocation1]
    %s150 = scalar_lea.vmem %s144, 8 [#allocation0]
    %v151 = vld [vmem:[%s150] sm:$0xff]
    %152 = vperm.xlu0 %4, %v151
    %v153 = vpop.permute.xlu0 %152
    %154 = vst [vmem:[%s149] sm:$0xff] %v153
    %s155 = scalar_lea.vmem [#allocation1], 80
    %s156 = scalar_lea.vmem [#allocation0], 80
    %v157 = vld [vmem:[%s156] sm:$0xff]
    %158 = vperm.xlu0 %4, %v157
    %v159 = vpop.permute.xlu0 %158
    %160 = vst [vmem:[%s155] sm:$0xff] %v159
    %s161 = scalar_lea.vmem %s155, 8 [#allocation1]
    %s162 = scalar_lea.vmem %s156, 8 [#allocation0]
    %v163 = vld [vmem:[%s162] sm:$0xff]
    %164 = vperm.xlu0 %4, %v163
    %v165 = vpop.permute.xlu0 %164
    %166 = vst [vmem:[%s161] sm:$0xff] %v165
    %s167 = scalar_lea.vmem [#allocation1], 96
    %s168 = scalar_lea.vmem [#allocation0], 96
    %v169 = vld [vmem:[%s168] sm:$0xff]
    %170 = vperm.xlu0 %4, %v169
    %v171 = vpop.permute.xlu0 %170
    %172 = vst [vmem:[%s167] sm:$0xff] %v171
    %s173 = scalar_lea.vmem %s167, 8 [#allocation1]
    %s174 = scalar_lea.vmem %s168, 8 [#allocation0]
    %v175 = vld [vmem:[%s174] sm:$0xff]
    %176 = vperm.xlu0 %4, %v175
    %v177 = vpop.permute.xlu0 %176
    %178 = vst [vmem:[%s173] sm:$0xff] %v177
    %s179 = scalar_lea.vmem [#allocation1], 112
    %s180 = scalar_lea.vmem [#allocation0], 112
    %v181 = vld [vmem:[%s180] sm:$0xff]
    %182 = vperm.xlu0 %4, %v181
    %v183 = vpop.permute.xlu0 %182
    %184 = vst [vmem:[%s179] sm:$0xff] %v183
    %s185 = scalar_lea.vmem %s179, 8 [#allocation1]
    %s186 = scalar_lea.vmem %s180, 8 [#allocation0]
    %v187 = vld [vmem:[%s186] sm:$0xff]
    %188 = vperm.xlu0 %4, %v187
    %v189 = vpop.permute.xlu0 %188
    %190 = vst [vmem:[%s185] sm:$0xff] %v189
    // Predicated region
    $region36: #{reverse.7} parent=1 // pred_check
      _
    $region37: #{reverse.7} parent=1 // pred_check_branch
      %192 = sbr.rel (0) target = $region39
    $region38: #{reverse.7} parent=1 // pred_region
      // Predicated region
      $region40: #{reverse.7} parent=38 // pred_check
        _
      $region41: #{reverse.7} parent=38 // pred_check_branch
        %194 = sbr.rel (0) target = $region43
      $region42: #{reverse.7} parent=38 // pred_region
        // Predicated region
        $region55: #{reverse.7} parent=42 // pred_check
          _
        $region56: #{reverse.7} parent=42 // pred_check_branch
          %239 = sbr.rel (0) target = $region58
        $region57: #{reverse.7} parent=42 // pred_region
          loop: start=0, step=1, limit=1
          $region59: #{reverse.7} parent=57 // loop_pre_header
            _
          $region60: #{reverse.7} parent=57 // loop_header
            %s241 = sphi 0, %s245
            %p242 = scmp.ge.s32.totalorder %s241, 1
            %s246 = sphi [#allocation1], [#allocation1]
            %s247 = sphi %s1, %s1
          $region61: #{reverse.7} parent=57 // loop_header_branch
            %244 = sbr.rel (%p242) target = $region65
          $region62: #{reverse.7} parent=57 // loop_body
            %v248 = vld [vmem:[%s246] sm:$0xff]
            %249 = vst [vmem:[%s247] sm:$0xff] %v248
            %v250 = vld [vmem:[%s246 + $0x8] sm:$0xff]
            %251 = vst [vmem:[%s247 + $0x8] sm:$0xff] %v250
            %v252 = vld [vmem:[%s246 + $0x10] sm:$0xff]
            %253 = vst [vmem:[%s247 + $0x10] sm:$0xff] %v252
            %v254 = vld [vmem:[%s246 + $0x18] sm:$0xff]
            %255 = vst [vmem:[%s247 + $0x18] sm:$0xff] %v254
            %v256 = vld [vmem:[%s246 + $0x20] sm:$0xff]
            %257 = vst [vmem:[%s247 + $0x20] sm:$0xff] %v256
            %v258 = vld [vmem:[%s246 + $0x28] sm:$0xff]
            %259 = vst [vmem:[%s247 + $0x28] sm:$0xff] %v258
            %v260 = vld [vmem:[%s246 + $0x30] sm:$0xff]
            %261 = vst [vmem:[%s247 + $0x30] sm:$0xff] %v260
            %v262 = vld [vmem:[%s246 + $0x38] sm:$0xff]
            %263 = vst [vmem:[%s247 + $0x38] sm:$0xff] %v262
            %v264 = vld [vmem:[%s246 + $0x40] sm:$0xff]
            %265 = vst [vmem:[%s247 + $0x40] sm:$0xff] %v264
            %v266 = vld [vmem:[%s246 + $0x48] sm:$0xff]
            %267 = vst [vmem:[%s247 + $0x48] sm:$0xff] %v266
            %v268 = vld [vmem:[%s246 + $0x50] sm:$0xff]
            %269 = vst [vmem:[%s247 + $0x50] sm:$0xff] %v268
            %v270 = vld [vmem:[%s246 + $0x58] sm:$0xff]
            %271 = vst [vmem:[%s247 + $0x58] sm:$0xff] %v270
            %v272 = vld [vmem:[%s246 + $0x60] sm:$0xff]
            %273 = vst [vmem:[%s247 + $0x60] sm:$0xff] %v272
            %v274 = vld [vmem:[%s246 + $0x68] sm:$0xff]
            %275 = vst [vmem:[%s247 + $0x68] sm:$0xff] %v274
            %v276 = vld [vmem:[%s246 + $0x70] sm:$0xff]
            %277 = vst [vmem:[%s247 + $0x70] sm:$0xff] %v276
            %v278 = vld [vmem:[%s246 + $0x78] sm:$0xff]
            %279 = vst [vmem:[%s247 + $0x78] sm:$0xff] %v278
          $region63: #{reverse.7} parent=57 // loop_footer
            %s245 = sadd.s32 1, %s241
          $region64: #{reverse.7} parent=57 // loop_footer_branch
            %240 = sbr.rel target = $region60
          $region65: #{reverse.7} parent=57 // loop_exit
            _
        $region58: #{reverse.7} parent=42 // pred_fallthru
          _
        // Predicated region
        $region66: #{reverse.7} parent=42 // pred_check
          _
        $region67: #{reverse.7} parent=42 // pred_check_branch
          %281 = sbr.rel target = $region69
        $region68: #{reverse.7} parent=42 // pred_region
          _
        $region69: #{reverse.7} parent=42 // pred_fallthru
          _
      $region43: #{reverse.7} parent=38 // pred_fallthru
        _
      // Predicated region
      $region44: #{reverse.7} parent=38 // pred_check
        _
      $region45: #{reverse.7} parent=38 // pred_check_branch
        %196 = sbr.rel target = $region47
      $region46: #{reverse.7} parent=38 // pred_region
        loop: start=0, step=1, limit=1
        $region48: #{reverse.7} parent=46 // loop_pre_header
          _
        $region49: #{reverse.7} parent=46 // loop_header
          %s199 = sphi 0, %s203
          %p200 = scmp.ge.s32.totalorder %s199, 1
          %s204 = sphi [#allocation1], [#allocation1]
          %s205 = sphi %s1, %s1
        $region50: #{reverse.7} parent=46 // loop_header_branch
          %202 = sbr.rel (%p200) target = $region54
        $region51: #{reverse.7} parent=46 // loop_body
          %v206 = vld [vmem:[%s204] sm:$0xff]
          %207 = vst [vmem:[%s205] sm:$0xff] %v206
          %v208 = vld [vmem:[%s204 + $0x8] sm:$0xff]
          %209 = vst [vmem:[%s205 + $0x8] sm:$0xff] %v208
          %v210 = vld [vmem:[%s204 + $0x10] sm:$0xff]
          %211 = vst [vmem:[%s205 + $0x10] sm:$0xff] %v210
          %v212 = vld [vmem:[%s204 + $0x18] sm:$0xff]
          %213 = vst [vmem:[%s205 + $0x18] sm:$0xff] %v212
          %v214 = vld [vmem:[%s204 + $0x20] sm:$0xff]
          %215 = vst [vmem:[%s205 + $0x20] sm:$0xff] %v214
          %v216 = vld [vmem:[%s204 + $0x28] sm:$0xff]
          %217 = vst [vmem:[%s205 + $0x28] sm:$0xff] %v216
          %v218 = vld [vmem:[%s204 + $0x30] sm:$0xff]
          %219 = vst [vmem:[%s205 + $0x30] sm:$0xff] %v218
          %v220 = vld [vmem:[%s204 + $0x38] sm:$0xff]
          %221 = vst [vmem:[%s205 + $0x38] sm:$0xff] %v220
          %v222 = vld [vmem:[%s204 + $0x40] sm:$0xff]
          %223 = vst [vmem:[%s205 + $0x40] sm:$0xff] %v222
          %v224 = vld [vmem:[%s204 + $0x48] sm:$0xff]
          %225 = vst [vmem:[%s205 + $0x48] sm:$0xff] %v224
          %v226 = vld [vmem:[%s204 + $0x50] sm:$0xff]
          %227 = vst [vmem:[%s205 + $0x50] sm:$0xff] %v226
          %v228 = vld [vmem:[%s204 + $0x58] sm:$0xff]
          %229 = vst [vmem:[%s205 + $0x58] sm:$0xff] %v228
          %v230 = vld [vmem:[%s204 + $0x60] sm:$0xff]
          %231 = vst [vmem:[%s205 + $0x60] sm:$0xff] %v230
          %v232 = vld [vmem:[%s204 + $0x68] sm:$0xff]
          %233 = vst [vmem:[%s205 + $0x68] sm:$0xff] %v232
          %v234 = vld [vmem:[%s204 + $0x70] sm:$0xff]
          %235 = vst [vmem:[%s205 + $0x70] sm:$0xff] %v234
          %v236 = vld [vmem:[%s204 + $0x78] sm:$0xff]
          %237 = vst [vmem:[%s205 + $0x78] sm:$0xff] %v236
        $region52: #{reverse.7} parent=46 // loop_footer
          %s203 = sadd.s32 1, %s199
        $region53: #{reverse.7} parent=46 // loop_footer_branch
          %198 = sbr.rel target = $region49
        $region54: #{reverse.7} parent=46 // loop_exit
          _
      $region47: #{reverse.7} parent=38 // pred_fallthru
        _
    $region39: #{reverse.7} parent=1 // pred_fallthru
      _
    %282 = vnop

// kernel: factor_fno2d_block.4
$region0: #{factor_fno2d_block.4}
  #allocation0 [shape = 'u32[]', space=smem, size = 0x4, offset = 0x4, fixed_abs, tag = 'smem constant byte address 0x4 - core index']
  #allocation1 [shape = 'u32[144,128]{1,0:T(1,128)}', space=vmem, size = 0x12000, scoped, tag = 'internal scratch']
  %s0 = inlined_call_operand.vmem [shape: bf16[5,32,128], index: 0, kind: input, shape index: {}]
  %s1 = inlined_call_operand.vmem [shape: bf16[5,128,128], index: 1, kind: input, shape index: {}]
  %s2 = inlined_call_operand.vmem [shape: f32[5,32,128], index: 2, kind: output, shape index: {}]
  %s3 = sld [smem:[#allocation0]]
  $region41: #{factor_fno2d_block.4} parent=0
    _
  %s5 = ssub.s32 1, %s3
  %s6 = scalar_select 0, %s5, %s3
  loop: start=0, step=1, limit=7
  $region2: #{factor_fno2d_block.4} parent=0 // loop_pre_header
    _
  $region3: #{factor_fno2d_block.4} parent=0 // loop_header
    %s8 = sphi 0, %s12
    %p9 = scmp.ge.s32.totalorder %s8, 7
    %s15 = sphi 0, %s27
    %s16 = sphi 0, %s23
    %s17 = sphi 0, %s15
    %s18 = sphi 0, %s16
    %s19 = sphi 0, %s17
    %s20 = sphi 0, %s18
    %s32 = sphi 0, %s34
    %s35 = sphi 0, %s32
    %s36 = sphi 0, %s35
    %s52 = sphi 0, %s36
    %s58 = sphi 0, %s60
    %s61 = sphi 0, %s58
    %s62 = sphi 0, %s61
    %s78 = sphi 0, %s62
    %s86 = sphi 0, %s88
    %s89 = sphi 0, %s86
    %s90 = sphi 0, %s89
    %s106 = sphi 0, %s90
  $region4: #{factor_fno2d_block.4} parent=0 // loop_header_branch
    %11 = sbr.rel (%p9) target = $region8
  $region5: #{factor_fno2d_block.4} parent=0 // loop_body
    %s13 = ssub.s32 %s8, 1
    %s14 = ssub.s32 %s8, 2
    %s21 = sadd.s32 1, %s16
    %p22 = scmp.ge.s32.totalorder %s21, 1
    %s23 = scalar_select %p22, 0, %s21
    %s24 = sadd.s32 1, %s15
    %s25 = scalar_select %p22, %s24, %s15
    %p26 = scmp.ge.s32.totalorder %s25, 5
    %s27 = scalar_select %p26, 0, %s25
    %s28 = ssub.s32 %s15, %s27
    %s29 = ssub.s32 %s16, %s23
    %s30 = sor.u32 %s28, %s29
    %p31 = scmp.eq.s32.totalorder %s30, 0
    %s33 = sadd.s32 %s32, 1
    %s34 = scalar_select %p31, %s32, %s33
    %p37 = pneg %p31
    %p38 = scmp.eq.s32.totalorder %s8, 4
    %p39 = por %p37, %p38
    %p40 = scmp.ne.s32.totalorder %s32, %s35
    %p41 = scmp.eq.s32.totalorder %s8, 0
    %p42 = por %p40, %p41
    %p43 = scmp.ne.s32.totalorder %s32, %s35
    %p44 = scmp.eq.s32.totalorder %s13, 4
    %p45 = por %p43, %p44
    %p46 = scmp.ne.s32.totalorder %s35, %s36
    %p47 = scmp.eq.s32.totalorder %s13, 0
    %p48 = por %p46, %p47
    %p49 = scmp.ne.s32.totalorder %s35, %s36
    %p50 = scmp.eq.s32.totalorder %s14, 4
    %p51 = por %p49, %p50
    %p53 = scmp.ne.s32.totalorder %s36, %s52
    %p54 = scmp.eq.s32.totalorder %s14, 0
    %p55 = por %p53, %p54
    %s56 = ssub.s32 %s15, %s27
    %p57 = scmp.eq.s32.totalorder %s56, 0
    %s59 = sadd.s32 %s58, 1
    %s60 = scalar_select %p57, %s58, %s59
    %p63 = pneg %p57
    %p64 = scmp.eq.s32.totalorder %s8, 4
    %p65 = por %p63, %p64
    %p66 = scmp.ne.s32.totalorder %s58, %s61
    %p67 = scmp.eq.s32.totalorder %s8, 0
    %p68 = por %p66, %p67
    %p69 = scmp.ne.s32.totalorder %s58, %s61
    %p70 = scmp.eq.s32.totalorder %s13, 4
    %p71 = por %p69, %p70
    %p72 = scmp.ne.s32.totalorder %s61, %s62
    %p73 = scmp.eq.s32.totalorder %s13, 0
    %p74 = por %p72, %p73
    %p75 = scmp.ne.s32.totalorder %s61, %s62
    %p76 = scmp.eq.s32.totalorder %s14, 4
    %p77 = por %p75, %p76
    %p79 = scmp.ne.s32.totalorder %s62, %s78
    %p80 = scmp.eq.s32.totalorder %s14, 0
    %p81 = por %p79, %p80
    %s82 = ssub.s32 %s15, %s27
    %s83 = ssub.s32 %s16, %s23
    %s84 = sor.u32 %s82, %s83
    %p85 = scmp.eq.s32.totalorder %s84, 0
    %s87 = sadd.s32 %s86, 1
    %s88 = scalar_select %p85, %s86, %s87
    %p91 = pneg %p85
    %p92 = scmp.eq.s32.totalorder %s8, 4
    %p93 = por %p91, %p92
    %p94 = scmp.ne.s32.totalorder %s86, %s89
    %p95 = scmp.eq.s32.totalorder %s8, 0
    %p96 = por %p94, %p95
    %p97 = scmp.ne.s32.totalorder %s86, %s89
    %p98 = scmp.eq.s32.totalorder %s13, 4
    %p99 = por %p97, %p98
    %p100 = scmp.ne.s32.totalorder %s89, %s90
    %p101 = scmp.eq.s32.totalorder %s13, 0
    %p102 = por %p100, %p101
    %p103 = scmp.ne.s32.totalorder %s89, %s90
    %p104 = scmp.eq.s32.totalorder %s14, 4
    %p105 = por %p103, %p104
    %p107 = scmp.ne.s32.totalorder %s90, %s106
    %p108 = scmp.eq.s32.totalorder %s14, 0
    %p109 = por %p107, %p108
    %p110 = scmp.le.s32.totalorder 1, %s8
    %p111 = scmp.lt.s32.totalorder %s8, 6
    %p112 = pnand %p110, %p111
    %p113 = pneg %p112
    // Predicated region
    $region9: #{factor_fno2d_block.4} parent=5 // pred_check
      _
    $region10: #{factor_fno2d_block.4} parent=5 // pred_check_branch
      %115 = sbr.rel (%p112) target = $region12
    $region11: #{factor_fno2d_block.4} parent=5 // pred_region
      %s116 = ssub.s32 %s8, 1
    $region12: #{factor_fno2d_block.4} parent=5 // pred_fallthru
      _
    %p117 = scmp.lt.s32.totalorder %s8, 5
    // Predicated region
    $region13: #{factor_fno2d_block.4} parent=5 // pred_check
      %p118 = pneg %p117
    $region14: #{factor_fno2d_block.4} parent=5 // pred_check_branch
      %120 = sbr.rel (%p118) target = $region16
    $region15: #{factor_fno2d_block.4} parent=5 // pred_region
      // Predicated region
      $region17: #{factor_fno2d_block.4} parent=15 // pred_check
        %p121 = pneg %p42
      $region18: #{factor_fno2d_block.4} parent=15 // pred_check_branch
        %123 = sbr.rel (%p121) target = $region20
      $region19: #{factor_fno2d_block.4} parent=15 // pred_region
        %s124 = smul.u32 4, %s16
        %p125 = scmp.lt.s32.totalorder %s15, 4
        %s126 = scalar_select %p125, %s15, 4
        %p127 = scmp.lt.s32.totalorder %s124, 3
        %s128 = scalar_select %p127, %s124, 3
        %s129 = smul.addr %s126, 4
        %s130 = sadd.s32 %s128, %s129
        %s131 = smul.addr %s130, 4
        %s132 = scalar_lea.vmem %s0, %s131
        %s133 = smul.u32 4, %s16
      $region20: #{factor_fno2d_block.4} parent=15 // pred_fallthru
        _
      // Predicated region
      $region21: #{factor_fno2d_block.4} parent=15 // pred_check
        %p134 = pneg %p68
      $region22: #{factor_fno2d_block.4} parent=15 // pred_check_branch
        %136 = sbr.rel (%p134) target = $region24
      $region23: #{factor_fno2d_block.4} parent=15 // pred_region
        %p137 = scmp.lt.s32.totalorder %s15, 4
        %s138 = scalar_select %p137, %s15, 4
        %s139 = smul.addr %s138, 16
        %s140 = smul.addr %s139, 4
        %s141 = scalar_lea.vmem %s1, %s140
      $region24: #{factor_fno2d_block.4} parent=15 // pred_fallthru
        _
    $region16: #{factor_fno2d_block.4} parent=5 // pred_fallthru
      _
    %p142 = scmp.le.s32.totalorder 1, %s8
    %p143 = scmp.lt.s32.totalorder %s8, 6
    %p144 = pnand %p142, %p143
    %p145 = pneg %p144
    // Predicated region
    $region25: #{factor_fno2d_block.4} parent=5 // pred_check
      _
    $region26: #{factor_fno2d_block.4} parent=5 // pred_check_branch
      %147 = sbr.rel (%p144) target = $region28
    $region27: #{factor_fno2d_block.4} parent=5 // pred_region
      %s148 = ssub.s32 %s8, 1
      %s149 = smul.u32 4, %s18
      %p150 = scmp.lt.s32.totalorder %s17, 4
      %s151 = scalar_select %p150, %s17, 4
      %p152 = scmp.lt.s32.totalorder %s149, 3
      %s153 = scalar_select %p152, %s149, 3
      %s154 = smul.addr %s151, 4
      %s155 = sadd.s32 %s153, %s154
      %s156 = smul.addr %s155, 4
      %s157 = scalar_lea.vmem %s0, %s156
      %p158 = pneg %p48
      %p159 = pneg %p45
      %p160 = scmp.lt.s32.totalorder %s17, 4
      %s161 = scalar_select %p160, %s17, 4
      %s162 = smul.addr %s161, 16
      %s163 = smul.addr %s162, 4
      %s164 = scalar_lea.vmem %s1, %s163
      %p165 = pneg %p74
      %p166 = pneg %p71
      %p167 = pneg %p102
      %p168 = pneg %p99
      %s169 = smul.u32 4, %s18
      %p170 = scmp.lt.s32.totalorder %s17, 4
      %s171 = scalar_select %p170, %s17, 4
      %p172 = scmp.lt.s32.totalorder %s169, 3
      %s173 = scalar_select %p172, %s169, 3
      %s174 = smul.addr %s171, 4
      %s175 = sadd.s32 %s173, %s174
      %s176 = smul.addr %s175, 8
      %s177 = scalar_lea.vmem %s2, %s176
      %s178 = smul.u32 4, %s18
      %p179 = scmp.lt.s32.totalorder %s17, 4
      %s180 = scalar_select %p179, %s17, 4
      %p181 = scmp.lt.s32.totalorder %s178, 3
      %s182 = scalar_select %p181, %s178, 3
      %s183 = smul.addr %s180, 4
      %s184 = sadd.s32 %s182, %s183
      %s185 = smul.addr %s184, 4
      %s186 = scalar_lea.vmem %s0, %s185
      %s187 = smul.u32 4, %s18
      %p188 = scmp.lt.s32.totalorder %s17, 4
      %s189 = scalar_select %p188, %s17, 4
      %s190 = smul.addr %s189, 16
      %s191 = smul.addr %s190, 4
      %s192 = scalar_lea.vmem %s1, %s191
      %s193 = smul.u32 4, %s18
      %p194 = scmp.lt.s32.totalorder %s17, 4
      %s195 = scalar_select %p194, %s17, 4
      %p196 = scmp.lt.s32.totalorder %s193, 3
      %s197 = scalar_select %p196, %s193, 3
      %s198 = smul.addr %s195, 4
      %s199 = sadd.s32 %s197, %s198
      %s200 = smul.addr %s199, 8
      %s201 = scalar_lea.vmem %s2, %s200
      %s202 = smul.u32 4, %s18
      %v204 = vld [vmem:[%s186] sm:$0xf]
      %v205 = vld [vmem:[%s186 + $0x4] sm:$0xf]
      %v206 = vld [vmem:[%s186 + $0x8] sm:$0xf]
      %v207 = vld [vmem:[%s186 + $0xc] sm:$0xf]
      %v208 = vld [vmem:[%s192] sm:$0xf]
      %v209 = vld [vmem:[%s192 + $0x4] sm:$0xf]
      %v210 = vld [vmem:[%s192 + $0x8] sm:$0xf]
      %v211 = vld [vmem:[%s192 + $0xc] sm:$0xf]
      %v212 = vld [vmem:[%s192 + $0x10] sm:$0xf]
      %v213 = vld [vmem:[%s192 + $0x14] sm:$0xf]
      %v214 = vld [vmem:[%s192 + $0x18] sm:$0xf]
      %v215 = vld [vmem:[%s192 + $0x1c] sm:$0xf]
      %v216 = vld [vmem:[%s192 + $0x20] sm:$0xf]
      %v217 = vld [vmem:[%s192 + $0x24] sm:$0xf]
      %v218 = vld [vmem:[%s192 + $0x28] sm:$0xf]
      %v219 = vld [vmem:[%s192 + $0x2c] sm:$0xf]
      %v220 = vld [vmem:[%s192 + $0x30] sm:$0xf]
      %v221 = vld [vmem:[%s192 + $0x34] sm:$0xf]
      %v222 = vld [vmem:[%s192 + $0x38] sm:$0xf]
      %v223 = vld [vmem:[%s192 + $0x3c] sm:$0xf]
      %v228 = vunpack.c.l.b16 %v204
      %v229 = vunpack.c.l.b16 %v205
      %v230 = vunpack.c.l.b16 %v206
      %v231 = vunpack.c.l.b16 %v207
      %v232 = vpack.c.b16 %v229, %v228
      %v233 = vpack.c.b16 %v231, %v230
      %v252 = vunpack.c.l.b16 %v208
      %v253 = vunpack.c.l.b16 %v209
      %v254 = vunpack.c.l.b16 %v210
      %v255 = vunpack.c.l.b16 %v211
      %v256 = vunpack.c.l.b16 %v212
      %v257 = vunpack.c.l.b16 %v213
      %v258 = vunpack.c.l.b16 %v214
      %v259 = vunpack.c.l.b16 %v215
      %v260 = vunpack.c.l.b16 %v216
      %v261 = vunpack.c.l.b16 %v217
      %v262 = vunpack.c.l.b16 %v218
      %v263 = vunpack.c.l.b16 %v219
      %v264 = vunpack.c.l.b16 %v220
      %v265 = vunpack.c.l.b16 %v221
      %v266 = vunpack.c.l.b16 %v222
      %v267 = vunpack.c.l.b16 %v223
      %v268 = vpack.c.b16 %v253, %v252
      %v269 = vpack.c.b16 %v255, %v254
      %v270 = vpack.c.b16 %v257, %v256
      %v271 = vpack.c.b16 %v259, %v258
      %v272 = vpack.c.b16 %v261, %v260
      %v273 = vpack.c.b16 %v263, %v262
      %v274 = vpack.c.b16 %v265, %v264
      %v275 = vpack.c.b16 %v267, %v266
      %284 = vmatprep.subr.bf16.mxu0 0
      %285 = vmatpush1.bf16.msra.mxu0 %v268
      %286 = vmatprep.subr.bf16.mxu0 0
      %287 = vmatpush1.bf16.msra.mxu0 %v269
      %288 = vmatprep.subr.bf16.mxu0 0
      %289 = vmatpush1.bf16.msra.mxu0 %v270
      %290 = vmatprep.subr.bf16.mxu0 0
      %291 = vmatpush1.bf16.msra.mxu0 %v271
      %292 = vmatprep.subr.bf16.mxu0 0
      %293 = vmatpush1.bf16.msra.mxu0 %v272
      %294 = vmatprep.subr.bf16.mxu0 0
      %295 = vmatpush1.bf16.msra.mxu0 %v273
      %296 = vmatprep.subr.bf16.mxu0 0
      %297 = vmatpush1.bf16.msra.mxu0 %v274
      %298 = vmatprep.subr.bf16.mxu0 0
      %299 = vmatpush1.bf16.msra.mxu0 %v275
      %300 = vmatprep.subr.bf16.mxu0 0
      %301 = vmatpush1.bf16.msra.mxu0 0
      %302 = vmatprep.subr.bf16.mxu0 0
      %303 = vmatpush1.bf16.msra.mxu0 0
      %304 = vmatprep.subr.bf16.mxu0 0
      %305 = vmatpush1.bf16.msra.mxu0 0
      %306 = vmatprep.subr.bf16.mxu0 0
      %307 = vmatpush1.bf16.msra.mxu0 0
      %308 = vmatprep.subr.bf16.mxu0 0
      %309 = vmatpush1.bf16.msra.mxu0 0
      %310 = vmatprep.subr.bf16.mxu0 0
      %311 = vmatpush1.bf16.msra.mxu0 0
      %312 = vmatprep.subr.bf16.mxu0 0
      %313 = vmatpush1.bf16.msra.mxu0 0
      %314 = vmatprep.subr.bf16.mxu0 0
      %315 = vmatpush1.bf16.msra.mxu0 0
      %316 = vmatprep.mubr.bf16.mxu0 0
      %317 = vmatmul.mubr.bf16.gmra.mrb[0].mxu0 %v232
      %v318 = vpop.f32.mrb[0].mxu0
      %v319 = vadd.f32 0.0, %v318
      %v320 = vpop.f32.mrb[0].mxu0
      %v321 = vpop.f32.mrb[0].mxu0
      %v322 = vadd.f32 0.0, %v321
      %v323 = vpop.f32.mrb[0].mxu0
      %324 = vmatprep.mubr.bf16.mxu0 0
      %325 = vmatmul.mubr.bf16.gmra.mrb[0].mxu0 %v233
      %v326 = vpop.f32.mrb[0].mxu0
      %v327 = vadd.f32 0.0, %v326
      %v328 = vpop.f32.mrb[0].mxu0
      %v329 = vpop.f32.mrb[0].mxu0
      %v330 = vadd.f32 0.0, %v329
      %v331 = vpop.f32.mrb[0].mxu0
      %332 = vdwg.mxu0
      %333 = vst [vmem:[%s201] sm:$0xff] %v319
      %334 = vst [vmem:[%s201 + $0x8] sm:$0xff] %v322
      %335 = vst [vmem:[%s201 + $0x10] sm:$0xff] %v327
      %336 = vst [vmem:[%s201 + $0x18] sm:$0xff] %v330
      %s337 = smul.u32 4, %s18
      %p338 = scmp.lt.s32.totalorder %s17, 4
      %s339 = scalar_select %p338, %s17, 4
      %p340 = scmp.lt.s32.totalorder %s337, 3
      %s341 = scalar_select %p340, %s337, 3
      %s342 = smul.addr %s339, 4
      %s343 = sadd.s32 %s341, %s342
      %s344 = smul.addr %s343, 8
      %s345 = scalar_lea.vmem %s2, %s344
      // Predicated region
      $region29: #{factor_fno2d_block.4} parent=27 // pred_check
        %p346 = pneg %p99
      $region30: #{factor_fno2d_block.4} parent=27 // pred_check_branch
        %348 = sbr.rel (%p346) target = $region32
      $region31: #{factor_fno2d_block.4} parent=27 // pred_region
        %s349 = smul.u32 4, %s18
      $region32: #{factor_fno2d_block.4} parent=27 // pred_fallthru
        _
    $region28: #{factor_fno2d_block.4} parent=5 // pred_fallthru
      _
    %p350 = scmp.le.s32.totalorder 2, %s8
    // Predicated region
    $region33: #{factor_fno2d_block.4} parent=5 // pred_check
      %p351 = pneg %p350
    $region34: #{factor_fno2d_block.4} parent=5 // pred_check_branch
      %353 = sbr.rel (%p351) target = $region36
    $region35: #{factor_fno2d_block.4} parent=5 // pred_region
      %s354 = ssub.s32 %s8, 2
      // Predicated region
      $region37: #{factor_fno2d_block.4} parent=35 // pred_check
        %p355 = pneg %p105
      $region38: #{factor_fno2d_block.4} parent=35 // pred_check_branch
        %357 = sbr.rel (%p355) target = $region40
      $region39: #{factor_fno2d_block.4} parent=35 // pred_region
        %s358 = smul.u32 4, %s20
        %p359 = scmp.lt.s32.totalorder %s19, 4
        %s360 = scalar_select %p359, %s19, 4
        %p361 = scmp.lt.s32.totalorder %s358, 3
        %s362 = scalar_select %p361, %s358, 3
        %s363 = smul.addr %s360, 4
        %s364 = sadd.s32 %s362, %s363
        %s365 = smul.addr %s364, 8
        %s366 = scalar_lea.vmem %s2, %s365
      $region40: #{factor_fno2d_block.4} parent=35 // pred_fallthru
        _
    $region36: #{factor_fno2d_block.4} parent=5 // pred_fallthru
      _
  $region6: #{factor_fno2d_block.4} parent=0 // loop_footer
    %s12 = sadd.s32 1, %s8
  $region7: #{factor_fno2d_block.4} parent=0 // loop_footer_branch
    %7 = sbr.rel target = $region3
  $region8: #{factor_fno2d_block.4} parent=0 // loop_exit
    _

// kernel: factor_fno2d_block.5
$region0: #{factor_fno2d_block.5}
  #allocation0 [shape = 'u32[]', space=smem, size = 0x4, offset = 0x4, fixed_abs, tag = 'smem constant byte address 0x4 - core index']
  #allocation1 [shape = 'u32[144,128]{1,0:T(1,128)}', space=vmem, size = 0x12000, scoped, tag = 'internal scratch']
  %s0 = inlined_call_operand.vmem [shape: bf16[512,4], index: 0, kind: input, shape index: {}]
  %s1 = inlined_call_operand.vmem [shape: f32[512,4], index: 1, kind: input, shape index: {}]
  %s2 = inlined_call_operand.vmem [shape: bf16[4,8], index: 2, kind: input, shape index: {}]
  %s3 = inlined_call_operand.vmem [shape: f32[1,8], index: 3, kind: input, shape index: {}]
  %s4 = inlined_call_operand.vmem [shape: f32[1,8], index: 4, kind: input, shape index: {}]
  %s5 = inlined_call_operand.vmem [shape: f32[1,8], index: 5, kind: input, shape index: {}]
  %s6 = inlined_call_operand.vmem [shape: bf16[8,4], index: 6, kind: input, shape index: {}]
  %s7 = inlined_call_operand.vmem [shape: f32[1,4], index: 7, kind: input, shape index: {}]
  %s8 = inlined_call_operand.vmem [shape: f32[512,4], index: 8, kind: output, shape index: {}]
  %s9 = sld [smem:[#allocation0]]
  $region42: #{factor_fno2d_block.5} parent=0
    _
  %s11 = ssub.s32 1, %s9
  %s12 = scalar_select 0, %s11, %s9
  // Predicated region
  $region2: #{factor_fno2d_block.5} parent=0 // pred_check
    _
  $region3: #{factor_fno2d_block.5} parent=0 // pred_check_branch
    %14 = sbr.rel (0) target = $region5
  $region4: #{factor_fno2d_block.5} parent=0 // pred_region
    _
  $region5: #{factor_fno2d_block.5} parent=0 // pred_fallthru
    _
  // Predicated region
  $region6: #{factor_fno2d_block.5} parent=0 // pred_check
    _
  $region7: #{factor_fno2d_block.5} parent=0 // pred_check_branch
    %16 = sbr.rel (0) target = $region9
  $region8: #{factor_fno2d_block.5} parent=0 // pred_region
    _
  $region9: #{factor_fno2d_block.5} parent=0 // pred_fallthru
    _
  // Predicated region
  $region10: #{factor_fno2d_block.5} parent=0 // pred_check
    _
  $region11: #{factor_fno2d_block.5} parent=0 // pred_check_branch
    %18 = sbr.rel (0) target = $region13
  $region12: #{factor_fno2d_block.5} parent=0 // pred_region
    _
  $region13: #{factor_fno2d_block.5} parent=0 // pred_fallthru
    _
  // Predicated region
  $region14: #{factor_fno2d_block.5} parent=0 // pred_check
    _
  $region15: #{factor_fno2d_block.5} parent=0 // pred_check_branch
    %20 = sbr.rel (0) target = $region17
  $region16: #{factor_fno2d_block.5} parent=0 // pred_region
    _
  $region17: #{factor_fno2d_block.5} parent=0 // pred_fallthru
    _
  // Predicated region
  $region18: #{factor_fno2d_block.5} parent=0 // pred_check
    _
  $region19: #{factor_fno2d_block.5} parent=0 // pred_check_branch
    %22 = sbr.rel (0) target = $region21
  $region20: #{factor_fno2d_block.5} parent=0 // pred_region
    _
  $region21: #{factor_fno2d_block.5} parent=0 // pred_fallthru
    _
  // Predicated region
  $region22: #{factor_fno2d_block.5} parent=0 // pred_check
    _
  $region23: #{factor_fno2d_block.5} parent=0 // pred_check_branch
    %24 = sbr.rel (0) target = $region25
  $region24: #{factor_fno2d_block.5} parent=0 // pred_region
    _
  $region25: #{factor_fno2d_block.5} parent=0 // pred_fallthru
    _
  // Predicated region
  $region26: #{factor_fno2d_block.5} parent=0 // pred_check
    _
  $region27: #{factor_fno2d_block.5} parent=0 // pred_check_branch
    %26 = sbr.rel (0) target = $region29
  $region28: #{factor_fno2d_block.5} parent=0 // pred_region
    _
  $region29: #{factor_fno2d_block.5} parent=0 // pred_fallthru
    _
  // Predicated region
  $region30: #{factor_fno2d_block.5} parent=0 // pred_check
    _
  $region31: #{factor_fno2d_block.5} parent=0 // pred_check_branch
    %28 = sbr.rel (0) target = $region33
  $region32: #{factor_fno2d_block.5} parent=0 // pred_region
    _
  $region33: #{factor_fno2d_block.5} parent=0 // pred_fallthru
    _
  %v30 = vld [vmem:[%s0] sm:$0xf]
  %v31 = vld [vmem:[%s0 + $0x4] sm:$0xf]
  %v32 = vld [vmem:[%s0 + $0x8] sm:$0xf]
  %v33 = vld [vmem:[%s0 + $0xc] sm:$0xf]
  %v34 = vld [vmem:[%s0 + $0x10] sm:$0xf]
  %v35 = vld [vmem:[%s0 + $0x14] sm:$0xf]
  %v36 = vld [vmem:[%s0 + $0x18] sm:$0xf]
  %v37 = vld [vmem:[%s0 + $0x1c] sm:$0xf]
  %v38 = vld [vmem:[%s0 + $0x20] sm:$0xf]
  %v39 = vld [vmem:[%s0 + $0x24] sm:$0xf]
  %v40 = vld [vmem:[%s0 + $0x28] sm:$0xf]
  %v41 = vld [vmem:[%s0 + $0x2c] sm:$0xf]
  %v42 = vld [vmem:[%s0 + $0x30] sm:$0xf]
  %v43 = vld [vmem:[%s0 + $0x34] sm:$0xf]
  %v44 = vld [vmem:[%s0 + $0x38] sm:$0xf]
  %v45 = vld [vmem:[%s0 + $0x3c] sm:$0xf]
  %v46 = vld [vmem:[%s0 + $0x40] sm:$0xf]
  %v47 = vld [vmem:[%s0 + $0x44] sm:$0xf]
  %v48 = vld [vmem:[%s0 + $0x48] sm:$0xf]
  %v49 = vld [vmem:[%s0 + $0x4c] sm:$0xf]
  %v50 = vld [vmem:[%s0 + $0x50] sm:$0xf]
  %v51 = vld [vmem:[%s0 + $0x54] sm:$0xf]
  %v52 = vld [vmem:[%s0 + $0x58] sm:$0xf]
  %v53 = vld [vmem:[%s0 + $0x5c] sm:$0xf]
  %v54 = vld [vmem:[%s0 + $0x60] sm:$0xf]
  %v55 = vld [vmem:[%s0 + $0x64] sm:$0xf]
  %v56 = vld [vmem:[%s0 + $0x68] sm:$0xf]
  %v57 = vld [vmem:[%s0 + $0x6c] sm:$0xf]
  %v58 = vld [vmem:[%s0 + $0x70] sm:$0xf]
  %v59 = vld [vmem:[%s0 + $0x74] sm:$0xf]
  %v60 = vld [vmem:[%s0 + $0x78] sm:$0xf]
  %v61 = vld [vmem:[%s0 + $0x7c] sm:$0xf]
  %v62 = vld [vmem:[%s0 + $0x80] sm:$0xf]
  %v63 = vld [vmem:[%s0 + $0x84] sm:$0xf]
  %v64 = vld [vmem:[%s0 + $0x88] sm:$0xf]
  %v65 = vld [vmem:[%s0 + $0x8c] sm:$0xf]
  %v66 = vld [vmem:[%s0 + $0x90] sm:$0xf]
  %v67 = vld [vmem:[%s0 + $0x94] sm:$0xf]
  %v68 = vld [vmem:[%s0 + $0x98] sm:$0xf]
  %v69 = vld [vmem:[%s0 + $0x9c] sm:$0xf]
  %v70 = vld [vmem:[%s0 + $0xa0] sm:$0xf]
  %v71 = vld [vmem:[%s0 + $0xa4] sm:$0xf]
  %v72 = vld [vmem:[%s0 + $0xa8] sm:$0xf]
  %v73 = vld [vmem:[%s0 + $0xac] sm:$0xf]
  %v74 = vld [vmem:[%s0 + $0xb0] sm:$0xf]
  %v75 = vld [vmem:[%s0 + $0xb4] sm:$0xf]
  %v76 = vld [vmem:[%s0 + $0xb8] sm:$0xf]
  %v77 = vld [vmem:[%s0 + $0xbc] sm:$0xf]
  %v78 = vld [vmem:[%s0 + $0xc0] sm:$0xf]
  %v79 = vld [vmem:[%s0 + $0xc4] sm:$0xf]
  %v80 = vld [vmem:[%s0 + $0xc8] sm:$0xf]
  %v81 = vld [vmem:[%s0 + $0xcc] sm:$0xf]
  %v82 = vld [vmem:[%s0 + $0xd0] sm:$0xf]
  %v83 = vld [vmem:[%s0 + $0xd4] sm:$0xf]
  %v84 = vld [vmem:[%s0 + $0xd8] sm:$0xf]
  %v85 = vld [vmem:[%s0 + $0xdc] sm:$0xf]
  %v86 = vld [vmem:[%s0 + $0xe0] sm:$0xf]
  %v87 = vld [vmem:[%s0 + $0xe4] sm:$0xf]
  %v88 = vld [vmem:[%s0 + $0xe8] sm:$0xf]
  %v89 = vld [vmem:[%s0 + $0xec] sm:$0xf]
  %v90 = vld [vmem:[%s0 + $0xf0] sm:$0xf]
  %v91 = vld [vmem:[%s0 + $0xf4] sm:$0xf]
  %v92 = vld [vmem:[%s0 + $0xf8] sm:$0xf]
  %v93 = vld [vmem:[%s0 + $0xfc] sm:$0xf]
  %v94 = vld [vmem:[%s2] sm:$0x3]
  %v95 = vld [vmem:[%s3] sm:$0x1]
  %v97 = vlaneseq
  %v98 = vshrl.u32 %v97, 7
  %v99 = vsub.s32 0, %v98
  %v100 = vrot.slane %v95, %v99
  %v166 = vunpack.c.l.b16 %v30
  %v167 = vunpack.c.l.b16 %v31
  %v168 = vunpack.c.l.b16 %v32
  %v169 = vunpack.c.l.b16 %v33
  %v170 = vunpack.c.l.b16 %v34
  %v171 = vunpack.c.l.b16 %v35
  %v172 = vunpack.c.l.b16 %v36
  %v173 = vunpack.c.l.b16 %v37
  %v174 = vunpack.c.l.b16 %v38
  %v175 = vunpack.c.l.b16 %v39
  %v176 = vunpack.c.l.b16 %v40
  %v177 = vunpack.c.l.b16 %v41
  %v178 = vunpack.c.l.b16 %v42
  %v179 = vunpack.c.l.b16 %v43
  %v180 = vunpack.c.l.b16 %v44
  %v181 = vunpack.c.l.b16 %v45
  %v182 = vunpack.c.l.b16 %v46
  %v183 = vunpack.c.l.b16 %v47
  %v184 = vunpack.c.l.b16 %v48
  %v185 = vunpack.c.l.b16 %v49
  %v186 = vunpack.c.l.b16 %v50
  %v187 = vunpack.c.l.b16 %v51
  %v188 = vunpack.c.l.b16 %v52
  %v189 = vunpack.c.l.b16 %v53
  %v190 = vunpack.c.l.b16 %v54
  %v191 = vunpack.c.l.b16 %v55
  %v192 = vunpack.c.l.b16 %v56
  %v193 = vunpack.c.l.b16 %v57
  %v194 = vunpack.c.l.b16 %v58
  %v195 = vunpack.c.l.b16 %v59
  %v196 = vunpack.c.l.b16 %v60
  %v197 = vunpack.c.l.b16 %v61
  %v198 = vunpack.c.l.b16 %v62
  %v199 = vunpack.c.l.b16 %v63
  %v200 = vunpack.c.l.b16 %v64
  %v201 = vunpack.c.l.b16 %v65
  %v202 = vunpack.c.l.b16 %v66
  %v203 = vunpack.c.l.b16 %v67
  %v204 = vunpack.c.l.b16 %v68
  %v205 = vunpack.c.l.b16 %v69
  %v206 = vunpack.c.l.b16 %v70
  %v207 = vunpack.c.l.b16 %v71
  %v208 = vunpack.c.l.b16 %v72
  %v209 = vunpack.c.l.b16 %v73
  %v210 = vunpack.c.l.b16 %v74
  %v211 = vunpack.c.l.b16 %v75
  %v212 = vunpack.c.l.b16 %v76
  %v213 = vunpack.c.l.b16 %v77
  %v214 = vunpack.c.l.b16 %v78
  %v215 = vunpack.c.l.b16 %v79
  %v216 = vunpack.c.l.b16 %v80
  %v217 = vunpack.c.l.b16 %v81
  %v218 = vunpack.c.l.b16 %v82
  %v219 = vunpack.c.l.b16 %v83
  %v220 = vunpack.c.l.b16 %v84
  %v221 = vunpack.c.l.b16 %v85
  %v222 = vunpack.c.l.b16 %v86
  %v223 = vunpack.c.l.b16 %v87
  %v224 = vunpack.c.l.b16 %v88
  %v225 = vunpack.c.l.b16 %v89
  %v226 = vunpack.c.l.b16 %v90
  %v227 = vunpack.c.l.b16 %v91
  %v228 = vunpack.c.l.b16 %v92
  %v229 = vunpack.c.l.b16 %v93
  %v230 = vpack.c.b16 %v167, %v166
  %v231 = vpack.c.b16 %v169, %v168
  %v232 = vpack.c.b16 %v171, %v170
  %v233 = vpack.c.b16 %v173, %v172
  %v234 = vpack.c.b16 %v175, %v174
  %v235 = vpack.c.b16 %v177, %v176
  %v236 = vpack.c.b16 %v179, %v178
  %v237 = vpack.c.b16 %v181, %v180
  %v238 = vpack.c.b16 %v183, %v182
  %v239 = vpack.c.b16 %v185, %v184
  %v240 = vpack.c.b16 %v187, %v186
  %v241 = vpack.c.b16 %v189, %v188
  %v242 = vpack.c.b16 %v191, %v190
  %v243 = vpack.c.b16 %v193, %v192
  %v244 = vpack.c.b16 %v195, %v194
  %v245 = vpack.c.b16 %v197, %v196
  %v246 = vpack.c.b16 %v199, %v198
  %v247 = vpack.c.b16 %v201, %v200
  %v248 = vpack.c.b16 %v203, %v202
  %v249 = vpack.c.b16 %v205, %v204
  %v250 = vpack.c.b16 %v207, %v206
  %v251 = vpack.c.b16 %v209, %v208
  %v252 = vpack.c.b16 %v211, %v210
  %v253 = vpack.c.b16 %v213, %v212
  %v254 = vpack.c.b16 %v215, %v214
  %v255 = vpack.c.b16 %v217, %v216
  %v256 = vpack.c.b16 %v219, %v218
  %v257 = vpack.c.b16 %v221, %v220
  %v258 = vpack.c.b16 %v223, %v222
  %v259 = vpack.c.b16 %v225, %v224
  %v260 = vpack.c.b16 %v227, %v226
  %v261 = vpack.c.b16 %v229, %v228
  %vm262 = vcmask 31744
  %v264 = vsel %vm262, %v230, 0
  %v267 = vsel %vm262, %v231, 0
  %v270 = vsel %vm262, %v232, 0
  %v273 = vsel %vm262, %v233, 0
  %v276 = vsel %vm262, %v234, 0
  %v279 = vsel %vm262, %v235, 0
  %v282 = vsel %vm262, %v236, 0
  %v285 = vsel %vm262, %v237, 0
  %v288 = vsel %vm262, %v238, 0
  %v291 = vsel %vm262, %v239, 0
  %v294 = vsel %vm262, %v240, 0
  %v297 = vsel %vm262, %v241, 0
  %v300 = vsel %vm262, %v242, 0
  %v303 = vsel %vm262, %v243, 0
  %v306 = vsel %vm262, %v244, 0
  %v309 = vsel %vm262, %v245, 0
  %v312 = vsel %vm262, %v246, 0
  %v315 = vsel %vm262, %v247, 0
  %v318 = vsel %vm262, %v248, 0
  %v321 = vsel %vm262, %v249, 0
  %v324 = vsel %vm262, %v250, 0
  %v327 = vsel %vm262, %v251, 0
  %v330 = vsel %vm262, %v252, 0
  %v333 = vsel %vm262, %v253, 0
  %v336 = vsel %vm262, %v254, 0
  %v339 = vsel %vm262, %v255, 0
  %v342 = vsel %vm262, %v256, 0
  %v345 = vsel %vm262, %v257, 0
  %v348 = vsel %vm262, %v258, 0
  %v351 = vsel %vm262, %v259, 0
  %v354 = vsel %vm262, %v260, 0
  %v357 = vsel %vm262, %v261, 0
  %vm359 = vcmask 1041408
  %v361 = vsel %vm359, %v94, 0
  %363 = vmatprep.subr.bf16.mxu0 0
  %364 = vmatpush1.bf16.msra.mxu0 %v361
  %365 = vmatprep.subr.bf16.mxu0 0
  %366 = vmatpush1.bf16.msra.mxu0 0
  %367 = vmatprep.subr.bf16.mxu0 0
  %368 = vmatpush1.bf16.msra.mxu0 0
  %369 = vmatprep.subr.bf16.mxu0 0
  %370 = vmatpush1.bf16.msra.mxu0 0
  %371 = vmatprep.subr.bf16.mxu0 0
  %372 = vmatpush1.bf16.msra.mxu0 0
  %373 = vmatprep.subr.bf16.mxu0 0
  %374 = vmatpush1.bf16.msra.mxu0 0
  %375 = vmatprep.subr.bf16.mxu0 0
  %376 = vmatpush1.bf16.msra.mxu0 0
  %377 = vmatprep.subr.bf16.mxu0 0
  %378 = vmatpush1.bf16.msra.mxu0 0
  %379 = vmatprep.subr.bf16.mxu0 0
  %380 = vmatpush1.bf16.msra.mxu0 0
  %381 = vmatprep.subr.bf16.mxu0 0
  %382 = vmatpush1.bf16.msra.mxu0 0
  %383 = vmatprep.subr.bf16.mxu0 0
  %384 = vmatpush1.bf16.msra.mxu0 0
  %385 = vmatprep.subr.bf16.mxu0 0
  %386 = vmatpush1.bf16.msra.mxu0 0
  %387 = vmatprep.subr.bf16.mxu0 0
  %388 = vmatpush1.bf16.msra.mxu0 0
  %389 = vmatprep.subr.bf16.mxu0 0
  %390 = vmatpush1.bf16.msra.mxu0 0
  %391 = vmatprep.subr.bf16.mxu0 0
  %392 = vmatpush1.bf16.msra.mxu0 0
  %393 = vmatprep.subr.bf16.mxu0 0
  %394 = vmatpush1.bf16.msra.mxu0 0
  %395 = vmatprep.mubr.bf16.mxu0 0
  %396 = vmatmul.mubr.bf16.gmra.mrb[0].mxu0 %v264
  %v397 = vpop.f32.mrb[0].mxu0
  %v398 = vadd.f32 %v100, %v397
  %v399 = vpop.f32.mrb[0].mxu0
  %v400 = vpop.f32.mrb[0].mxu0
  %v401 = vadd.f32 %v100, %v400
  %v402 = vpop.f32.mrb[0].mxu0
  %403 = vmatprep.mubr.bf16.mxu0 0
  %404 = vmatmul.mubr.bf16.gmra.mrb[0].mxu0 %v267
  %v405 = vpop.f32.mrb[0].mxu0
  %v406 = vadd.f32 %v100, %v405
  %v407 = vpop.f32.mrb[0].mxu0
  %v408 = vpop.f32.mrb[0].mxu0
  %v409 = vadd.f32 %v100, %v408
  %v410 = vpop.f32.mrb[0].mxu0
  %411 = vmatprep.mubr.bf16.mxu0 0
  %412 = vmatmul.mubr.bf16.gmra.mrb[0].mxu0 %v270
  %v413 = vpop.f32.mrb[0].mxu0
  %v414 = vadd.f32 %v100, %v413
  %v415 = vpop.f32.mrb[0].mxu0
  %v416 = vpop.f32.mrb[0].mxu0
  %v417 = vadd.f32 %v100, %v416
  %v418 = vpop.f32.mrb[0].mxu0
  %419 = vmatprep.mubr.bf16.mxu0 0
  %420 = vmatmul.mubr.bf16.gmra.mrb[0].mxu0 %v273
  %v421 = vpop.f32.mrb[0].mxu0
  %v422 = vadd.f32 %v100, %v421
  %v423 = vpop.f32.mrb[0].mxu0
  %v424 = vpop.f32.mrb[0].mxu0
  %v425 = vadd.f32 %v100, %v424
  %v426 = vpop.f32.mrb[0].mxu0
  %427 = vmatprep.mubr.bf16.mxu0 0
  %428 = vmatmul.mubr.bf16.gmra.mrb[0].mxu0 %v276
  %v429 = vpop.f32.mrb[0].mxu0
  %v430 = vadd.f32 %v100, %v429
  %v431 = vpop.f32.mrb[0].mxu0
  %v432 = vpop.f32.mrb[0].mxu0
  %v433 = vadd.f32 %v100, %v432
  %v434 = vpop.f32.mrb[0].mxu0
  %435 = vmatprep.mubr.bf16.mxu0 0
  %436 = vmatmul.mubr.bf16.gmra.mrb[0].mxu0 %v279
  %v437 = vpop.f32.mrb[0].mxu0
  %v438 = vadd.f32 %v100, %v437
  %v439 = vpop.f32.mrb[0].mxu0
  %v440 = vpop.f32.mrb[0].mxu0
  %v441 = vadd.f32 %v100, %v440
  %v442 = vpop.f32.mrb[0].mxu0
  %443 = vmatprep.mubr.bf16.mxu0 0
  %444 = vmatmul.mubr.bf16.gmra.mrb[0].mxu0 %v282
  %v445 = vpop.f32.mrb[0].mxu0
  %v446 = vadd.f32 %v100, %v445
  %v447 = vpop.f32.mrb[0].mxu0
  %v448 = vpop.f32.mrb[0].mxu0
  %v449 = vadd.f32 %v100, %v448
  %v450 = vpop.f32.mrb[0].mxu0
  %451 = vmatprep.mubr.bf16.mxu0 0
  %452 = vmatmul.mubr.bf16.gmra.mrb[0].mxu0 %v285
  %v453 = vpop.f32.mrb[0].mxu0
  %v454 = vadd.f32 %v100, %v453
  %v455 = vpop.f32.mrb[0].mxu0
  %v456 = vpop.f32.mrb[0].mxu0
  %v457 = vadd.f32 %v100, %v456
  %v458 = vpop.f32.mrb[0].mxu0
  %459 = vmatprep.mubr.bf16.mxu0 0
  %460 = vmatmul.mubr.bf16.gmra.mrb[0].mxu0 %v288
  %v461 = vpop.f32.mrb[0].mxu0
  %v462 = vadd.f32 %v100, %v461
  %v463 = vpop.f32.mrb[0].mxu0
  %v464 = vpop.f32.mrb[0].mxu0
  %v465 = vadd.f32 %v100, %v464
  %v466 = vpop.f32.mrb[0].mxu0
  %467 = vmatprep.mubr.bf16.mxu0 0
  %468 = vmatmul.mubr.bf16.gmra.mrb[0].mxu0 %v291
  %v469 = vpop.f32.mrb[0].mxu0
  %v470 = vadd.f32 %v100, %v469
  %v471 = vpop.f32.mrb[0].mxu0
  %v472 = vpop.f32.mrb[0].mxu0
  %v473 = vadd.f32 %v100, %v472
  %v474 = vpop.f32.mrb[0].mxu0
  %475 = vmatprep.mubr.bf16.mxu0 0
  %476 = vmatmul.mubr.bf16.gmra.mrb[0].mxu0 %v294
  %v477 = vpop.f32.mrb[0].mxu0
  %v478 = vadd.f32 %v100, %v477
  %v479 = vpop.f32.mrb[0].mxu0
  %v480 = vpop.f32.mrb[0].mxu0
  %v481 = vadd.f32 %v100, %v480
  %v482 = vpop.f32.mrb[0].mxu0
  %483 = vmatprep.mubr.bf16.mxu0 0
  %484 = vmatmul.mubr.bf16.gmra.mrb[0].mxu0 %v297
  %v485 = vpop.f32.mrb[0].mxu0
  %v486 = vadd.f32 %v100, %v485
  %v487 = vpop.f32.mrb[0].mxu0
  %v488 = vpop.f32.mrb[0].mxu0
  %v489 = vadd.f32 %v100, %v488
  %v490 = vpop.f32.mrb[0].mxu0
  %491 = vmatprep.mubr.bf16.mxu0 0
  %492 = vmatmul.mubr.bf16.gmra.mrb[0].mxu0 %v300
  %v493 = vpop.f32.mrb[0].mxu0
  %v494 = vadd.f32 %v100, %v493
  %v495 = vpop.f32.mrb[0].mxu0
  %v496 = vpop.f32.mrb[0].mxu0
  %v497 = vadd.f32 %v100, %v496
  %v498 = vpop.f32.mrb[0].mxu0
  %499 = vmatprep.mubr.bf16.mxu0 0
  %500 = vmatmul.mubr.bf16.gmra.mrb[0].mxu0 %v303
  %v501 = vpop.f32.mrb[0].mxu0
  %v502 = vadd.f32 %v100, %v501
  %v503 = vpop.f32.mrb[0].mxu0
  %v504 = vpop.f32.mrb[0].mxu0
  %v505 = vadd.f32 %v100, %v504
  %v506 = vpop.f32.mrb[0].mxu0
  %507 = vmatprep.mubr.bf16.mxu0 0
  %508 = vmatmul.mubr.bf16.gmra.mrb[0].mxu0 %v306
  %v509 = vpop.f32.mrb[0].mxu0
  %v510 = vadd.f32 %v100, %v509
  %v511 = vpop.f32.mrb[0].mxu0
  %v512 = vpop.f32.mrb[0].mxu0
  %v513 = vadd.f32 %v100, %v512
  %v514 = vpop.f32.mrb[0].mxu0
  %515 = vmatprep.mubr.bf16.mxu0 0
  %516 = vmatmul.mubr.bf16.gmra.mrb[0].mxu0 %v309
  %v517 = vpop.f32.mrb[0].mxu0
  %v518 = vadd.f32 %v100, %v517
  %v519 = vpop.f32.mrb[0].mxu0
  %v520 = vpop.f32.mrb[0].mxu0
  %v521 = vadd.f32 %v100, %v520
  %v522 = vpop.f32.mrb[0].mxu0
  %523 = vmatprep.mubr.bf16.mxu0 0
  %524 = vmatmul.mubr.bf16.gmra.mrb[0].mxu0 %v312
  %v525 = vpop.f32.mrb[0].mxu0
  %v526 = vadd.f32 %v100, %v525
  %v527 = vpop.f32.mrb[0].mxu0
  %v528 = vpop.f32.mrb[0].mxu0
  %v529 = vadd.f32 %v100, %v528
  %v530 = vpop.f32.mrb[0].mxu0
  %531 = vmatprep.mubr.bf16.mxu0 0
  %532 = vmatmul.mubr.bf16.gmra.mrb[0].mxu0 %v315
  %v533 = vpop.f32.mrb[0].mxu0
  %v534 = vadd.f32 %v100, %v533
  %v535 = vpop.f32.mrb[0].mxu0
  %v536 = vpop.f32.mrb[0].mxu0
  %v537 = vadd.f32 %v100, %v536
  %v538 = vpop.f32.mrb[0].mxu0
  %539 = vmatprep.mubr.bf16.mxu0 0
  %540 = vmatmul.mubr.bf16.gmra.mrb[0].mxu0 %v318
  %v541 = vpop.f32.mrb[0].mxu0
  %v542 = vadd.f32 %v100, %v541
  %v543 = vpop.f32.mrb[0].mxu0
  %v544 = vpop.f32.mrb[0].mxu0
  %v545 = vadd.f32 %v100, %v544
  %v546 = vpop.f32.mrb[0].mxu0
  %547 = vmatprep.mubr.bf16.mxu0 0
  %548 = vmatmul.mubr.bf16.gmra.mrb[0].mxu0 %v321
  %v549 = vpop.f32.mrb[0].mxu0
  %v550 = vadd.f32 %v100, %v549
  %v551 = vpop.f32.mrb[0].mxu0
  %v552 = vpop.f32.mrb[0].mxu0
  %v553 = vadd.f32 %v100, %v552
  %v554 = vpop.f32.mrb[0].mxu0
  %555 = vmatprep.mubr.bf16.mxu0 0
  %556 = vmatmul.mubr.bf16.gmra.mrb[0].mxu0 %v324
  %v557 = vpop.f32.mrb[0].mxu0
  %v558 = vadd.f32 %v100, %v557
  %v559 = vpop.f32.mrb[0].mxu0
  %v560 = vpop.f32.mrb[0].mxu0
  %v561 = vadd.f32 %v100, %v560
  %v562 = vpop.f32.mrb[0].mxu0
  %563 = vmatprep.mubr.bf16.mxu0 0
  %564 = vmatmul.mubr.bf16.gmra.mrb[0].mxu0 %v327
  %v565 = vpop.f32.mrb[0].mxu0
  %v566 = vadd.f32 %v100, %v565
  %v567 = vpop.f32.mrb[0].mxu0
  %v568 = vpop.f32.mrb[0].mxu0
  %v569 = vadd.f32 %v100, %v568
  %v570 = vpop.f32.mrb[0].mxu0
  %571 = vmatprep.mubr.bf16.mxu0 0
  %572 = vmatmul.mubr.bf16.gmra.mrb[0].mxu0 %v330
  %v573 = vpop.f32.mrb[0].mxu0
  %v574 = vadd.f32 %v100, %v573
  %v575 = vpop.f32.mrb[0].mxu0
  %v576 = vpop.f32.mrb[0].mxu0
  %v577 = vadd.f32 %v100, %v576
  %v578 = vpop.f32.mrb[0].mxu0
  %579 = vmatprep.mubr.bf16.mxu0 0
  %580 = vmatmul.mubr.bf16.gmra.mrb[0].mxu0 %v333
  %v581 = vpop.f32.mrb[0].mxu0
  %v582 = vadd.f32 %v100, %v581
  %v583 = vpop.f32.mrb[0].mxu0
  %v584 = vpop.f32.mrb[0].mxu0
  %v585 = vadd.f32 %v100, %v584
  %v586 = vpop.f32.mrb[0].mxu0
  %587 = vmatprep.mubr.bf16.mxu0 0
  %588 = vmatmul.mubr.bf16.gmra.mrb[0].mxu0 %v336
  %v589 = vpop.f32.mrb[0].mxu0
  %v590 = vadd.f32 %v100, %v589
  %v591 = vpop.f32.mrb[0].mxu0
  %v592 = vpop.f32.mrb[0].mxu0
  %v593 = vadd.f32 %v100, %v592
  %v594 = vpop.f32.mrb[0].mxu0
  %595 = vmatprep.mubr.bf16.mxu0 0
  %596 = vmatmul.mubr.bf16.gmra.mrb[0].mxu0 %v339
  %v597 = vpop.f32.mrb[0].mxu0
  %v598 = vadd.f32 %v100, %v597
  %v599 = vpop.f32.mrb[0].mxu0
  %v600 = vpop.f32.mrb[0].mxu0
  %v601 = vadd.f32 %v100, %v600
  %v602 = vpop.f32.mrb[0].mxu0
  %603 = vmatprep.mubr.bf16.mxu0 0
  %604 = vmatmul.mubr.bf16.gmra.mrb[0].mxu0 %v342
  %v605 = vpop.f32.mrb[0].mxu0
  %v606 = vadd.f32 %v100, %v605
  %v607 = vpop.f32.mrb[0].mxu0
  %v608 = vpop.f32.mrb[0].mxu0
  %v609 = vadd.f32 %v100, %v608
  %v610 = vpop.f32.mrb[0].mxu0
  %611 = vmatprep.mubr.bf16.mxu0 0
  %612 = vmatmul.mubr.bf16.gmra.mrb[0].mxu0 %v345
  %v613 = vpop.f32.mrb[0].mxu0
  %v614 = vadd.f32 %v100, %v613
  %v615 = vpop.f32.mrb[0].mxu0
  %v616 = vpop.f32.mrb[0].mxu0
  %v617 = vadd.f32 %v100, %v616
  %v618 = vpop.f32.mrb[0].mxu0
  %619 = vmatprep.mubr.bf16.mxu0 0
  %620 = vmatmul.mubr.bf16.gmra.mrb[0].mxu0 %v348
  %v621 = vpop.f32.mrb[0].mxu0
  %v622 = vadd.f32 %v100, %v621
  %v623 = vpop.f32.mrb[0].mxu0
  %v624 = vpop.f32.mrb[0].mxu0
  %v625 = vadd.f32 %v100, %v624
  %v626 = vpop.f32.mrb[0].mxu0
  %627 = vmatprep.mubr.bf16.mxu0 0
  %628 = vmatmul.mubr.bf16.gmra.mrb[0].mxu0 %v351
  %v629 = vpop.f32.mrb[0].mxu0
  %v630 = vadd.f32 %v100, %v629
  %v631 = vpop.f32.mrb[0].mxu0
  %v632 = vpop.f32.mrb[0].mxu0
  %v633 = vadd.f32 %v100, %v632
  %v634 = vpop.f32.mrb[0].mxu0
  %635 = vmatprep.mubr.bf16.mxu0 0
  %636 = vmatmul.mubr.bf16.gmra.mrb[0].mxu0 %v354
  %v637 = vpop.f32.mrb[0].mxu0
  %v638 = vadd.f32 %v100, %v637
  %v639 = vpop.f32.mrb[0].mxu0
  %v640 = vpop.f32.mrb[0].mxu0
  %v641 = vadd.f32 %v100, %v640
  %v642 = vpop.f32.mrb[0].mxu0
  %643 = vmatprep.mubr.bf16.mxu0 0
  %644 = vmatmul.mubr.bf16.gmra.mrb[0].mxu0 %v357
  %v645 = vpop.f32.mrb[0].mxu0
  %v646 = vadd.f32 %v100, %v645
  %v647 = vpop.f32.mrb[0].mxu0
  %v648 = vpop.f32.mrb[0].mxu0
  %v649 = vadd.f32 %v100, %v648
  %v650 = vpop.f32.mrb[0].mxu0
  %651 = vdwg.mxu0
  %v652 = vmax.f32 %v398, 0.0
  %v653 = vmax.f32 %v401, 0.0
  %v654 = vmax.f32 %v406, 0.0
  %v655 = vmax.f32 %v409, 0.0
  %v656 = vmax.f32 %v414, 0.0
  %v657 = vmax.f32 %v417, 0.0
  %v658 = vmax.f32 %v422, 0.0
  %v659 = vmax.f32 %v425, 0.0
  %v660 = vmax.f32 %v430, 0.0
  %v661 = vmax.f32 %v433, 0.0
  %v662 = vmax.f32 %v438, 0.0
  %v663 = vmax.f32 %v441, 0.0
  %v664 = vmax.f32 %v446, 0.0
  %v665 = vmax.f32 %v449, 0.0
  %v666 = vmax.f32 %v454, 0.0
  %v667 = vmax.f32 %v457, 0.0
  %v668 = vmax.f32 %v462, 0.0
  %v669 = vmax.f32 %v465, 0.0
  %v670 = vmax.f32 %v470, 0.0
  %v671 = vmax.f32 %v473, 0.0
  %v672 = vmax.f32 %v478, 0.0
  %v673 = vmax.f32 %v481, 0.0
  %v674 = vmax.f32 %v486, 0.0
  %v675 = vmax.f32 %v489, 0.0
  %v676 = vmax.f32 %v494, 0.0
  %v677 = vmax.f32 %v497, 0.0
  %v678 = vmax.f32 %v502, 0.0
  %v679 = vmax.f32 %v505, 0.0
  %v680 = vmax.f32 %v510, 0.0
  %v681 = vmax.f32 %v513, 0.0
  %v682 = vmax.f32 %v518, 0.0
  %v683 = vmax.f32 %v521, 0.0
  %v684 = vmax.f32 %v526, 0.0
  %v685 = vmax.f32 %v529, 0.0
  %v686 = vmax.f32 %v534, 0.0
  %v687 = vmax.f32 %v537, 0.0
  %v688 = vmax.f32 %v542, 0.0
  %v689 = vmax.f32 %v545, 0.0
  %v690 = vmax.f32 %v550, 0.0
  %v691 = vmax.f32 %v553, 0.0
  %v692 = vmax.f32 %v558, 0.0
  %v693 = vmax.f32 %v561, 0.0
  %v694 = vmax.f32 %v566, 0.0
  %v695 = vmax.f32 %v569, 0.0
  %v696 = vmax.f32 %v574, 0.0
  %v697 = vmax.f32 %v577, 0.0
  %v698 = vmax.f32 %v582, 0.0
  %v699 = vmax.f32 %v585, 0.0
  %v700 = vmax.f32 %v590, 0.0
  %v701 = vmax.f32 %v593, 0.0
  %v702 = vmax.f32 %v598, 0.0
  %v703 = vmax.f32 %v601, 0.0
  %v704 = vmax.f32 %v606, 0.0
  %v705 = vmax.f32 %v609, 0.0
  %v706 = vmax.f32 %v614, 0.0
  %v707 = vmax.f32 %v617, 0.0
  %v708 = vmax.f32 %v622, 0.0
  %v709 = vmax.f32 %v625, 0.0
  %v710 = vmax.f32 %v630, 0.0
  %v711 = vmax.f32 %v633, 0.0
  %v712 = vmax.f32 %v638, 0.0
  %v713 = vmax.f32 %v641, 0.0
  %v714 = vmax.f32 %v646, 0.0
  %v715 = vmax.f32 %v649, 0.0
  %vm716 = vcmask 64512
  %v717 = vsel %vm716, %v652, 0.0
  %718 = vadd.xlane.f32.xlu0 %v717
  %v719 = vpop.xlane.xlu0 %718
  %v720 = vsel %vm716, %v653, 0.0
  %721 = vadd.xlane.f32.xlu0 %v720
  %v722 = vpop.xlane.xlu0 %721
  %v723 = vsel %vm716, %v654, 0.0
  %724 = vadd.xlane.f32.xlu0 %v723
  %v725 = vpop.xlane.xlu0 %724
  %v726 = vsel %vm716, %v655, 0.0
  %727 = vadd.xlane.f32.xlu0 %v726
  %v728 = vpop.xlane.xlu0 %727
  %v729 = vsel %vm716, %v656, 0.0
  %730 = vadd.xlane.f32.xlu0 %v729
  %v731 = vpop.xlane.xlu0 %730
  %v732 = vsel %vm716, %v657, 0.0
  %733 = vadd.xlane.f32.xlu0 %v732
  %v734 = vpop.xlane.xlu0 %733
  %v735 = vsel %vm716, %v658, 0.0
  %736 = vadd.xlane.f32.xlu0 %v735
  %v737 = vpop.xlane.xlu0 %736
  %v738 = vsel %vm716, %v659, 0.0
  %739 = vadd.xlane.f32.xlu0 %v738
  %v740 = vpop.xlane.xlu0 %739
  %v741 = vsel %vm716, %v660, 0.0
  %742 = vadd.xlane.f32.xlu0 %v741
  %v743 = vpop.xlane.xlu0 %742
  %v744 = vsel %vm716, %v661, 0.0
  %745 = vadd.xlane.f32.xlu0 %v744
  %v746 = vpop.xlane.xlu0 %745
  %v747 = vsel %vm716, %v662, 0.0
  %748 = vadd.xlane.f32.xlu0 %v747
  %v749 = vpop.xlane.xlu0 %748
  %v750 = vsel %vm716, %v663, 0.0
  %751 = vadd.xlane.f32.xlu0 %v750
  %v752 = vpop.xlane.xlu0 %751
  %v753 = vsel %vm716, %v664, 0.0
  %754 = vadd.xlane.f32.xlu0 %v753
  %v755 = vpop.xlane.xlu0 %754
  %v756 = vsel %vm716, %v665, 0.0
  %757 = vadd.xlane.f32.xlu0 %v756
  %v758 = vpop.xlane.xlu0 %757
  %v759 = vsel %vm716, %v666, 0.0
  %760 = vadd.xlane.f32.xlu0 %v759
  %v761 = vpop.xlane.xlu0 %760
  %v762 = vsel %vm716, %v667, 0.0
  %763 = vadd.xlane.f32.xlu0 %v762
  %v764 = vpop.xlane.xlu0 %763
  %v765 = vsel %vm716, %v668, 0.0
  %766 = vadd.xlane.f32.xlu0 %v765
  %v767 = vpop.xlane.xlu0 %766
  %v768 = vsel %vm716, %v669, 0.0
  %769 = vadd.xlane.f32.xlu0 %v768
  %v770 = vpop.xlane.xlu0 %769
  %v771 = vsel %vm716, %v670, 0.0
  %772 = vadd.xlane.f32.xlu0 %v771
  %v773 = vpop.xlane.xlu0 %772
  %v774 = vsel %vm716, %v671, 0.0
  %775 = vadd.xlane.f32.xlu0 %v774
  %v776 = vpop.xlane.xlu0 %775
  %v777 = vsel %vm716, %v672, 0.0
  %778 = vadd.xlane.f32.xlu0 %v777
  %v779 = vpop.xlane.xlu0 %778
  %v780 = vsel %vm716, %v673, 0.0
  %781 = vadd.xlane.f32.xlu0 %v780
  %v782 = vpop.xlane.xlu0 %781
  %v783 = vsel %vm716, %v674, 0.0
  %784 = vadd.xlane.f32.xlu0 %v783
  %v785 = vpop.xlane.xlu0 %784
  %v786 = vsel %vm716, %v675, 0.0
  %787 = vadd.xlane.f32.xlu0 %v786
  %v788 = vpop.xlane.xlu0 %787
  %v789 = vsel %vm716, %v676, 0.0
  %790 = vadd.xlane.f32.xlu0 %v789
  %v791 = vpop.xlane.xlu0 %790
  %v792 = vsel %vm716, %v677, 0.0
  %793 = vadd.xlane.f32.xlu0 %v792
  %v794 = vpop.xlane.xlu0 %793
  %v795 = vsel %vm716, %v678, 0.0
  %796 = vadd.xlane.f32.xlu0 %v795
  %v797 = vpop.xlane.xlu0 %796
  %v798 = vsel %vm716, %v679, 0.0
  %799 = vadd.xlane.f32.xlu0 %v798
  %v800 = vpop.xlane.xlu0 %799
  %v801 = vsel %vm716, %v680, 0.0
  %802 = vadd.xlane.f32.xlu0 %v801
  %v803 = vpop.xlane.xlu0 %802
  %v804 = vsel %vm716, %v681, 0.0
  %805 = vadd.xlane.f32.xlu0 %v804
  %v806 = vpop.xlane.xlu0 %805
  %v807 = vsel %vm716, %v682, 0.0
  %808 = vadd.xlane.f32.xlu0 %v807
  %v809 = vpop.xlane.xlu0 %808
  %v810 = vsel %vm716, %v683, 0.0
  %811 = vadd.xlane.f32.xlu0 %v810
  %v812 = vpop.xlane.xlu0 %811
  %v813 = vsel %vm716, %v684, 0.0
  %814 = vadd.xlane.f32.xlu0 %v813
  %v815 = vpop.xlane.xlu0 %814
  %v816 = vsel %vm716, %v685, 0.0
  %817 = vadd.xlane.f32.xlu0 %v816
  %v818 = vpop.xlane.xlu0 %817
  %v819 = vsel %vm716, %v686, 0.0
  %820 = vadd.xlane.f32.xlu0 %v819
  %v821 = vpop.xlane.xlu0 %820
  %v822 = vsel %vm716, %v687, 0.0
  %823 = vadd.xlane.f32.xlu0 %v822
  %v824 = vpop.xlane.xlu0 %823
  %v825 = vsel %vm716, %v688, 0.0
  %826 = vadd.xlane.f32.xlu0 %v825
  %v827 = vpop.xlane.xlu0 %826
  %v828 = vsel %vm716, %v689, 0.0
  %829 = vadd.xlane.f32.xlu0 %v828
  %v830 = vpop.xlane.xlu0 %829
  %v831 = vsel %vm716, %v690, 0.0
  %832 = vadd.xlane.f32.xlu0 %v831
  %v833 = vpop.xlane.xlu0 %832
  %v834 = vsel %vm716, %v691, 0.0
  %835 = vadd.xlane.f32.xlu0 %v834
  %v836 = vpop.xlane.xlu0 %835
  %v837 = vsel %vm716, %v692, 0.0
  %838 = vadd.xlane.f32.xlu0 %v837
  %v839 = vpop.xlane.xlu0 %838
  %v840 = vsel %vm716, %v693, 0.0
  %841 = vadd.xlane.f32.xlu0 %v840
  %v842 = vpop.xlane.xlu0 %841
  %v843 = vsel %vm716, %v694, 0.0
  %844 = vadd.xlane.f32.xlu0 %v843
  %v845 = vpop.xlane.xlu0 %844
  %v846 = vsel %vm716, %v695, 0.0
  %847 = vadd.xlane.f32.xlu0 %v846
  %v848 = vpop.xlane.xlu0 %847
  %v849 = vsel %vm716, %v696, 0.0
  %850 = vadd.xlane.f32.xlu0 %v849
  %v851 = vpop.xlane.xlu0 %850
  %v852 = vsel %vm716, %v697, 0.0
  %853 = vadd.xlane.f32.xlu0 %v852
  %v854 = vpop.xlane.xlu0 %853
  %v855 = vsel %vm716, %v698, 0.0
  %856 = vadd.xlane.f32.xlu0 %v855
  %v857 = vpop.xlane.xlu0 %856
  %v858 = vsel %vm716, %v699, 0.0
  %859 = vadd.xlane.f32.xlu0 %v858
  %v860 = vpop.xlane.xlu0 %859
  %v861 = vsel %vm716, %v700, 0.0
  %862 = vadd.xlane.f32.xlu0 %v861
  %v863 = vpop.xlane.xlu0 %862
  %v864 = vsel %vm716, %v701, 0.0
  %865 = vadd.xlane.f32.xlu0 %v864
  %v866 = vpop.xlane.xlu0 %865
  %v867 = vsel %vm716, %v702, 0.0
  %868 = vadd.xlane.f32.xlu0 %v867
  %v869 = vpop.xlane.xlu0 %868
  %v870 = vsel %vm716, %v703, 0.0
  %871 = vadd.xlane.f32.xlu0 %v870
  %v872 = vpop.xlane.xlu0 %871
  %v873 = vsel %vm716, %v704, 0.0
  %874 = vadd.xlane.f32.xlu0 %v873
  %v875 = vpop.xlane.xlu0 %874
  %v876 = vsel %vm716, %v705, 0.0
  %877 = vadd.xlane.f32.xlu0 %v876
  %v878 = vpop.xlane.xlu0 %877
  %v879 = vsel %vm716, %v706, 0.0
  %880 = vadd.xlane.f32.xlu0 %v879
  %v881 = vpop.xlane.xlu0 %880
  %v882 = vsel %vm716, %v707, 0.0
  %883 = vadd.xlane.f32.xlu0 %v882
  %v884 = vpop.xlane.xlu0 %883
  %v885 = vsel %vm716, %v708, 0.0
  %886 = vadd.xlane.f32.xlu0 %v885
  %v887 = vpop.xlane.xlu0 %886
  %v888 = vsel %vm716, %v709, 0.0
  %889 = vadd.xlane.f32.xlu0 %v888
  %v890 = vpop.xlane.xlu0 %889
  %v891 = vsel %vm716, %v710, 0.0
  %892 = vadd.xlane.f32.xlu0 %v891
  %v893 = vpop.xlane.xlu0 %892
  %v894 = vsel %vm716, %v711, 0.0
  %895 = vadd.xlane.f32.xlu0 %v894
  %v896 = vpop.xlane.xlu0 %895
  %v897 = vsel %vm716, %v712, 0.0
  %898 = vadd.xlane.f32.xlu0 %v897
  %v899 = vpop.xlane.xlu0 %898
  %v900 = vsel %vm716, %v713, 0.0
  %901 = vadd.xlane.f32.xlu0 %v900
  %v902 = vpop.xlane.xlu0 %901
  %v903 = vsel %vm716, %v714, 0.0
  %904 = vadd.xlane.f32.xlu0 %v903
  %v905 = vpop.xlane.xlu0 %904
  %v906 = vsel %vm716, %v715, 0.0
  %907 = vadd.xlane.f32.xlu0 %v906
  %v908 = vpop.xlane.xlu0 %907
  %v909 = vrcp.pop 8.0
  %v910 = vmul.f32 %v719, %v909
  %v911 = vmul.f32 %v722, %v909
  %v912 = vmul.f32 %v725, %v909
  %v913 = vmul.f32 %v728, %v909
  %v914 = vmul.f32 %v731, %v909
  %v915 = vmul.f32 %v734, %v909
  %v916 = vmul.f32 %v737, %v909
  %v917 = vmul.f32 %v740, %v909
  %v918 = vmul.f32 %v743, %v909
  %v919 = vmul.f32 %v746, %v909
  %v920 = vmul.f32 %v749, %v909
  %v921 = vmul.f32 %v752, %v909
  %v922 = vmul.f32 %v755, %v909
  %v923 = vmul.f32 %v758, %v909
  %v924 = vmul.f32 %v761, %v909
  %v925 = vmul.f32 %v764, %v909
  %v926 = vmul.f32 %v767, %v909
  %v927 = vmul.f32 %v770, %v909
  %v928 = vmul.f32 %v773, %v909
  %v929 = vmul.f32 %v776, %v909
  %v930 = vmul.f32 %v779, %v909
  %v931 = vmul.f32 %v782, %v909
  %v932 = vmul.f32 %v785, %v909
  %v933 = vmul.f32 %v788, %v909
  %v934 = vmul.f32 %v791, %v909
  %v935 = vmul.f32 %v794, %v909
  %v936 = vmul.f32 %v797, %v909
  %v937 = vmul.f32 %v800, %v909
  %v938 = vmul.f32 %v803, %v909
  %v939 = vmul.f32 %v806, %v909
  %v940 = vmul.f32 %v809, %v909
  %v941 = vmul.f32 %v812, %v909
  %v942 = vmul.f32 %v815, %v909
  %v943 = vmul.f32 %v818, %v909
  %v944 = vmul.f32 %v821, %v909
  %v945 = vmul.f32 %v824, %v909
  %v946 = vmul.f32 %v827, %v909
  %v947 = vmul.f32 %v830, %v909
  %v948 = vmul.f32 %v833, %v909
  %v949 = vmul.f32 %v836, %v909
  %v950 = vmul.f32 %v839, %v909
  %v951 = vmul.f32 %v842, %v909
  %v952 = vmul.f32 %v845, %v909
  %v953 = vmul.f32 %v848, %v909
  %v954 = vmul.f32 %v851, %v909
  %v955 = vmul.f32 %v854, %v909
  %v956 = vmul.f32 %v857, %v909
  %v957 = vmul.f32 %v860, %v909
  %v958 = vmul.f32 %v863, %v909
  %v959 = vmul.f32 %v866, %v909
  %v960 = vmul.f32 %v869, %v909
  %v961 = vmul.f32 %v872, %v909
  %v962 = vmul.f32 %v875, %v909
  %v963 = vmul.f32 %v878, %v909
  %v964 = vmul.f32 %v881, %v909
  %v965 = vmul.f32 %v884, %v909
  %v966 = vmul.f32 %v887, %v909
  %v967 = vmul.f32 %v890, %v909
  %v968 = vmul.f32 %v893, %v909
  %v969 = vmul.f32 %v896, %v909
  %v970 = vmul.f32 %v899, %v909
  %v971 = vmul.f32 %v902, %v909
  %v972 = vmul.f32 %v905, %v909
  %v973 = vmul.f32 %v908, %v909
  %v974 = vsub.f32 %v652, %v910
  %v975 = vsub.f32 %v653, %v911
  %v976 = vsub.f32 %v654, %v912
  %v977 = vsub.f32 %v655, %v913
  %v978 = vsub.f32 %v656, %v914
  %v979 = vsub.f32 %v657, %v915
  %v980 = vsub.f32 %v658, %v916
  %v981 = vsub.f32 %v659, %v917
  %v982 = vsub.f32 %v660, %v918
  %v983 = vsub.f32 %v661, %v919
  %v984 = vsub.f32 %v662, %v920
  %v985 = vsub.f32 %v663, %v921
  %v986 = vsub.f32 %v664, %v922
  %v987 = vsub.f32 %v665, %v923
  %v988 = vsub.f32 %v666, %v924
  %v989 = vsub.f32 %v667, %v925
  %v990 = vsub.f32 %v668, %v926
  %v991 = vsub.f32 %v669, %v927
  %v992 = vsub.f32 %v670, %v928
  %v993 = vsub.f32 %v671, %v929
  %v994 = vsub.f32 %v672, %v930
  %v995 = vsub.f32 %v673, %v931
  %v996 = vsub.f32 %v674, %v932
  %v997 = vsub.f32 %v675, %v933
  %v998 = vsub.f32 %v676, %v934
  %v999 = vsub.f32 %v677, %v935
  %v1000 = vsub.f32 %v678, %v936
  %v1001 = vsub.f32 %v679, %v937
  %v1002 = vsub.f32 %v680, %v938
  %v1003 = vsub.f32 %v681, %v939
  %v1004 = vsub.f32 %v682, %v940
  %v1005 = vsub.f32 %v683, %v941
  %v1006 = vsub.f32 %v684, %v942
  %v1007 = vsub.f32 %v685, %v943
  %v1008 = vsub.f32 %v686, %v944
  %v1009 = vsub.f32 %v687, %v945
  %v1010 = vsub.f32 %v688, %v946
  %v1011 = vsub.f32 %v689, %v947
  %v1012 = vsub.f32 %v690, %v948
  %v1013 = vsub.f32 %v691, %v949
  %v1014 = vsub.f32 %v692, %v950
  %v1015 = vsub.f32 %v693, %v951
  %v1016 = vsub.f32 %v694, %v952
  %v1017 = vsub.f32 %v695, %v953
  %v1018 = vsub.f32 %v696, %v954
  %v1019 = vsub.f32 %v697, %v955
  %v1020 = vsub.f32 %v698, %v956
  %v1021 = vsub.f32 %v699, %v957
  %v1022 = vsub.f32 %v700, %v958
  %v1023 = vsub.f32 %v701, %v959
  %v1024 = vsub.f32 %v702, %v960
  %v1025 = vsub.f32 %v703, %v961
  %v1026 = vsub.f32 %v704, %v962
  %v1027 = vsub.f32 %v705, %v963
  %v1028 = vsub.f32 %v706, %v964
  %v1029 = vsub.f32 %v707, %v965
  %v1030 = vsub.f32 %v708, %v966
  %v1031 = vsub.f32 %v709, %v967
  %v1032 = vsub.f32 %v710, %v968
  %v1033 = vsub.f32 %v711, %v969
  %v1034 = vsub.f32 %v712, %v970
  %v1035 = vsub.f32 %v713, %v971
  %v1036 = vsub.f32 %v714, %v972
  %v1037 = vsub.f32 %v715, %v973
  %v1038 = vmul.f32 %v974, %v974
  %v1039 = vmul.f32 %v975, %v975
  %v1040 = vmul.f32 %v976, %v976
  %v1041 = vmul.f32 %v977, %v977
  %v1042 = vmul.f32 %v978, %v978
  %v1043 = vmul.f32 %v979, %v979
  %v1044 = vmul.f32 %v980, %v980
  %v1045 = vmul.f32 %v981, %v981
  %v1046 = vmul.f32 %v982, %v982
  %v1047 = vmul.f32 %v983, %v983
  %v1048 = vmul.f32 %v984, %v984
  %v1049 = vmul.f32 %v985, %v985
  %v1050 = vmul.f32 %v986, %v986
  %v1051 = vmul.f32 %v987, %v987
  %v1052 = vmul.f32 %v988, %v988
  %v1053 = vmul.f32 %v989, %v989
  %v1054 = vmul.f32 %v990, %v990
  %v1055 = vmul.f32 %v991, %v991
  %v1056 = vmul.f32 %v992, %v992
  %v1057 = vmul.f32 %v993, %v993
  %v1058 = vmul.f32 %v994, %v994
  %v1059 = vmul.f32 %v995, %v995
  %v1060 = vmul.f32 %v996, %v996
  %v1061 = vmul.f32 %v997, %v997
  %v1062 = vmul.f32 %v998, %v998
  %v1063 = vmul.f32 %v999, %v999
  %v1064 = vmul.f32 %v1000, %v1000
  %v1065 = vmul.f32 %v1001, %v1001
  %v1066 = vmul.f32 %v1002, %v1002
  %v1067 = vmul.f32 %v1003, %v1003
  %v1068 = vmul.f32 %v1004, %v1004
  %v1069 = vmul.f32 %v1005, %v1005
  %v1070 = vmul.f32 %v1006, %v1006
  %v1071 = vmul.f32 %v1007, %v1007
  %v1072 = vmul.f32 %v1008, %v1008
  %v1073 = vmul.f32 %v1009, %v1009
  %v1074 = vmul.f32 %v1010, %v1010
  %v1075 = vmul.f32 %v1011, %v1011
  %v1076 = vmul.f32 %v1012, %v1012
  %v1077 = vmul.f32 %v1013, %v1013
  %v1078 = vmul.f32 %v1014, %v1014
  %v1079 = vmul.f32 %v1015, %v1015
  %v1080 = vmul.f32 %v1016, %v1016
  %v1081 = vmul.f32 %v1017, %v1017
  %v1082 = vmul.f32 %v1018, %v1018
  %v1083 = vmul.f32 %v1019, %v1019
  %v1084 = vmul.f32 %v1020, %v1020
  %v1085 = vmul.f32 %v1021, %v1021
  %v1086 = vmul.f32 %v1022, %v1022
  %v1087 = vmul.f32 %v1023, %v1023
  %v1088 = vmul.f32 %v1024, %v1024
  %v1089 = vmul.f32 %v1025, %v1025
  %v1090 = vmul.f32 %v1026, %v1026
  %v1091 = vmul.f32 %v1027, %v1027
  %v1092 = vmul.f32 %v1028, %v1028
  %v1093 = vmul.f32 %v1029, %v1029
  %v1094 = vmul.f32 %v1030, %v1030
  %v1095 = vmul.f32 %v1031, %v1031
  %v1096 = vmul.f32 %v1032, %v1032
  %v1097 = vmul.f32 %v1033, %v1033
  %v1098 = vmul.f32 %v1034, %v1034
  %v1099 = vmul.f32 %v1035, %v1035
  %v1100 = vmul.f32 %v1036, %v1036
  %v1101 = vmul.f32 %v1037, %v1037
  %v1102 = vsel %vm716, %v1038, 0.0
  %1103 = vadd.xlane.f32.xlu0 %v1102
  %v1104 = vpop.xlane.xlu0 %1103
  %v1105 = vsel %vm716, %v1039, 0.0
  %1106 = vadd.xlane.f32.xlu0 %v1105
  %v1107 = vpop.xlane.xlu0 %1106
  %v1108 = vsel %vm716, %v1040, 0.0
  %1109 = vadd.xlane.f32.xlu0 %v1108
  %v1110 = vpop.xlane.xlu0 %1109
  %v1111 = vsel %vm716, %v1041, 0.0
  %1112 = vadd.xlane.f32.xlu0 %v1111
  %v1113 = vpop.xlane.xlu0 %1112
  %v1114 = vsel %vm716, %v1042, 0.0
  %1115 = vadd.xlane.f32.xlu0 %v1114
  %v1116 = vpop.xlane.xlu0 %1115
  %v1117 = vsel %vm716, %v1043, 0.0
  %1118 = vadd.xlane.f32.xlu0 %v1117
  %v1119 = vpop.xlane.xlu0 %1118
  %v1120 = vsel %vm716, %v1044, 0.0
  %1121 = vadd.xlane.f32.xlu0 %v1120
  %v1122 = vpop.xlane.xlu0 %1121
  %v1123 = vsel %vm716, %v1045, 0.0
  %1124 = vadd.xlane.f32.xlu0 %v1123
  %v1125 = vpop.xlane.xlu0 %1124
  %v1126 = vsel %vm716, %v1046, 0.0
  %1127 = vadd.xlane.f32.xlu0 %v1126
  %v1128 = vpop.xlane.xlu0 %1127
  %v1129 = vsel %vm716, %v1047, 0.0
  %1130 = vadd.xlane.f32.xlu0 %v1129
  %v1131 = vpop.xlane.xlu0 %1130
  %v1132 = vsel %vm716, %v1048, 0.0
  %1133 = vadd.xlane.f32.xlu0 %v1132
  %v1134 = vpop.xlane.xlu0 %1133
  %v1135 = vsel %vm716, %v1049, 0.0
  %1136 = vadd.xlane.f32.xlu0 %v1135
  %v1137 = vpop.xlane.xlu0 %1136
  %v1138 = vsel %vm716, %v1050, 0.0
  %1139 = vadd.xlane.f32.xlu0 %v1138
  %v1140 = vpop.xlane.xlu0 %1139
  %v1141 = vsel %vm716, %v1051, 0.0
  %1142 = vadd.xlane.f32.xlu0 %v1141
  %v1143 = vpop.xlane.xlu0 %1142
  %v1144 = vsel %vm716, %v1052, 0.0
  %1145 = vadd.xlane.f32.xlu0 %v1144
  %v1146 = vpop.xlane.xlu0 %1145
  %v1147 = vsel %vm716, %v1053, 0.0
  %1148 = vadd.xlane.f32.xlu0 %v1147
  %v1149 = vpop.xlane.xlu0 %1148
  %v1150 = vsel %vm716, %v1054, 0.0
  %1151 = vadd.xlane.f32.xlu0 %v1150
  %v1152 = vpop.xlane.xlu0 %1151
  %v1153 = vsel %vm716, %v1055, 0.0
  %1154 = vadd.xlane.f32.xlu0 %v1153
  %v1155 = vpop.xlane.xlu0 %1154
  %v1156 = vsel %vm716, %v1056, 0.0
  %1157 = vadd.xlane.f32.xlu0 %v1156
  %v1158 = vpop.xlane.xlu0 %1157
  %v1159 = vsel %vm716, %v1057, 0.0
  %1160 = vadd.xlane.f32.xlu0 %v1159
  %v1161 = vpop.xlane.xlu0 %1160
  %v1162 = vsel %vm716, %v1058, 0.0
  %1163 = vadd.xlane.f32.xlu0 %v1162
  %v1164 = vpop.xlane.xlu0 %1163
  %v1165 = vsel %vm716, %v1059, 0.0
  %1166 = vadd.xlane.f32.xlu0 %v1165
  %v1167 = vpop.xlane.xlu0 %1166
  %v1168 = vsel %vm716, %v1060, 0.0
  %1169 = vadd.xlane.f32.xlu0 %v1168
  %v1170 = vpop.xlane.xlu0 %1169
  %v1171 = vsel %vm716, %v1061, 0.0
  %1172 = vadd.xlane.f32.xlu0 %v1171
  %v1173 = vpop.xlane.xlu0 %1172
  %v1174 = vsel %vm716, %v1062, 0.0
  %1175 = vadd.xlane.f32.xlu0 %v1174
  %v1176 = vpop.xlane.xlu0 %1175
  %v1177 = vsel %vm716, %v1063, 0.0
  %1178 = vadd.xlane.f32.xlu0 %v1177
  %v1179 = vpop.xlane.xlu0 %1178
  %v1180 = vsel %vm716, %v1064, 0.0
  %1181 = vadd.xlane.f32.xlu0 %v1180
  %v1182 = vpop.xlane.xlu0 %1181
  %v1183 = vsel %vm716, %v1065, 0.0
  %1184 = vadd.xlane.f32.xlu0 %v1183
  %v1185 = vpop.xlane.xlu0 %1184
  %v1186 = vsel %vm716, %v1066, 0.0
  %1187 = vadd.xlane.f32.xlu0 %v1186
  %v1188 = vpop.xlane.xlu0 %1187
  %v1189 = vsel %vm716, %v1067, 0.0
  %1190 = vadd.xlane.f32.xlu0 %v1189
  %v1191 = vpop.xlane.xlu0 %1190
  %v1192 = vsel %vm716, %v1068, 0.0
  %1193 = vadd.xlane.f32.xlu0 %v1192
  %v1194 = vpop.xlane.xlu0 %1193
  %v1195 = vsel %vm716, %v1069, 0.0
  %1196 = vadd.xlane.f32.xlu0 %v1195
  %v1197 = vpop.xlane.xlu0 %1196
  %v1198 = vsel %vm716, %v1070, 0.0
  %1199 = vadd.xlane.f32.xlu0 %v1198
  %v1200 = vpop.xlane.xlu0 %1199
  %v1201 = vsel %vm716, %v1071, 0.0
  %1202 = vadd.xlane.f32.xlu0 %v1201
  %v1203 = vpop.xlane.xlu0 %1202
  %v1204 = vsel %vm716, %v1072, 0.0
  %1205 = vadd.xlane.f32.xlu0 %v1204
  %v1206 = vpop.xlane.xlu0 %1205
  %v1207 = vsel %vm716, %v1073, 0.0
  %1208 = vadd.xlane.f32.xlu0 %v1207
  %v1209 = vpop.xlane.xlu0 %1208
  %v1210 = vsel %vm716, %v1074, 0.0
  %1211 = vadd.xlane.f32.xlu0 %v1210
  %v1212 = vpop.xlane.xlu0 %1211
  %v1213 = vsel %vm716, %v1075, 0.0
  %1214 = vadd.xlane.f32.xlu0 %v1213
  %v1215 = vpop.xlane.xlu0 %1214
  %v1216 = vsel %vm716, %v1076, 0.0
  %1217 = vadd.xlane.f32.xlu0 %v1216
  %v1218 = vpop.xlane.xlu0 %1217
  %v1219 = vsel %vm716, %v1077, 0.0
  %1220 = vadd.xlane.f32.xlu0 %v1219
  %v1221 = vpop.xlane.xlu0 %1220
  %v1222 = vsel %vm716, %v1078, 0.0
  %1223 = vadd.xlane.f32.xlu0 %v1222
  %v1224 = vpop.xlane.xlu0 %1223
  %v1225 = vsel %vm716, %v1079, 0.0
  %1226 = vadd.xlane.f32.xlu0 %v1225
  %v1227 = vpop.xlane.xlu0 %1226
  %v1228 = vsel %vm716, %v1080, 0.0
  %1229 = vadd.xlane.f32.xlu0 %v1228
  %v1230 = vpop.xlane.xlu0 %1229
  %v1231 = vsel %vm716, %v1081, 0.0
  %1232 = vadd.xlane.f32.xlu0 %v1231
  %v1233 = vpop.xlane.xlu0 %1232
  %v1234 = vsel %vm716, %v1082, 0.0
  %1235 = vadd.xlane.f32.xlu0 %v1234
  %v1236 = vpop.xlane.xlu0 %1235
  %v1237 = vsel %vm716, %v1083, 0.0
  %1238 = vadd.xlane.f32.xlu0 %v1237
  %v1239 = vpop.xlane.xlu0 %1238
  %v1240 = vsel %vm716, %v1084, 0.0
  %1241 = vadd.xlane.f32.xlu0 %v1240
  %v1242 = vpop.xlane.xlu0 %1241
  %v1243 = vsel %vm716, %v1085, 0.0
  %1244 = vadd.xlane.f32.xlu0 %v1243
  %v1245 = vpop.xlane.xlu0 %1244
  %v1246 = vsel %vm716, %v1086, 0.0
  %1247 = vadd.xlane.f32.xlu0 %v1246
  %v1248 = vpop.xlane.xlu0 %1247
  %v1249 = vsel %vm716, %v1087, 0.0
  %1250 = vadd.xlane.f32.xlu0 %v1249
  %v1251 = vpop.xlane.xlu0 %1250
  %v1252 = vsel %vm716, %v1088, 0.0
  %1253 = vadd.xlane.f32.xlu0 %v1252
  %v1254 = vpop.xlane.xlu0 %1253
  %v1255 = vsel %vm716, %v1089, 0.0
  %1256 = vadd.xlane.f32.xlu0 %v1255
  %v1257 = vpop.xlane.xlu0 %1256
  %v1258 = vsel %vm716, %v1090, 0.0
  %1259 = vadd.xlane.f32.xlu0 %v1258
  %v1260 = vpop.xlane.xlu0 %1259
  %v1261 = vsel %vm716, %v1091, 0.0
  %1262 = vadd.xlane.f32.xlu0 %v1261
  %v1263 = vpop.xlane.xlu0 %1262
  %v1264 = vsel %vm716, %v1092, 0.0
  %1265 = vadd.xlane.f32.xlu0 %v1264
  %v1266 = vpop.xlane.xlu0 %1265
  %v1267 = vsel %vm716, %v1093, 0.0
  %1268 = vadd.xlane.f32.xlu0 %v1267
  %v1269 = vpop.xlane.xlu0 %1268
  %v1270 = vsel %vm716, %v1094, 0.0
  %1271 = vadd.xlane.f32.xlu0 %v1270
  %v1272 = vpop.xlane.xlu0 %1271
  %v1273 = vsel %vm716, %v1095, 0.0
  %1274 = vadd.xlane.f32.xlu0 %v1273
  %v1275 = vpop.xlane.xlu0 %1274
  %v1276 = vsel %vm716, %v1096, 0.0
  %1277 = vadd.xlane.f32.xlu0 %v1276
  %v1278 = vpop.xlane.xlu0 %1277
  %v1279 = vsel %vm716, %v1097, 0.0
  %1280 = vadd.xlane.f32.xlu0 %v1279
  %v1281 = vpop.xlane.xlu0 %1280
  %v1282 = vsel %vm716, %v1098, 0.0
  %1283 = vadd.xlane.f32.xlu0 %v1282
  %v1284 = vpop.xlane.xlu0 %1283
  %v1285 = vsel %vm716, %v1099, 0.0
  %1286 = vadd.xlane.f32.xlu0 %v1285
  %v1287 = vpop.xlane.xlu0 %1286
  %v1288 = vsel %vm716, %v1100, 0.0
  %1289 = vadd.xlane.f32.xlu0 %v1288
  %v1290 = vpop.xlane.xlu0 %1289
  %v1291 = vsel %vm716, %v1101, 0.0
  %1292 = vadd.xlane.f32.xlu0 %v1291
  %v1293 = vpop.xlane.xlu0 %1292
  %v1294 = vmul.f32 %v1104, %v909
  %v1295 = vmul.f32 %v1107, %v909
  %v1296 = vmul.f32 %v1110, %v909
  %v1297 = vmul.f32 %v1113, %v909
  %v1298 = vmul.f32 %v1116, %v909
  %v1299 = vmul.f32 %v1119, %v909
  %v1300 = vmul.f32 %v1122, %v909
  %v1301 = vmul.f32 %v1125, %v909
  %v1302 = vmul.f32 %v1128, %v909
  %v1303 = vmul.f32 %v1131, %v909
  %v1304 = vmul.f32 %v1134, %v909
  %v1305 = vmul.f32 %v1137, %v909
  %v1306 = vmul.f32 %v1140, %v909
  %v1307 = vmul.f32 %v1143, %v909
  %v1308 = vmul.f32 %v1146, %v909
  %v1309 = vmul.f32 %v1149, %v909
  %v1310 = vmul.f32 %v1152, %v909
  %v1311 = vmul.f32 %v1155, %v909
  %v1312 = vmul.f32 %v1158, %v909
  %v1313 = vmul.f32 %v1161, %v909
  %v1314 = vmul.f32 %v1164, %v909
  %v1315 = vmul.f32 %v1167, %v909
  %v1316 = vmul.f32 %v1170, %v909
  %v1317 = vmul.f32 %v1173, %v909
  %v1318 = vmul.f32 %v1176, %v909
  %v1319 = vmul.f32 %v1179, %v909
  %v1320 = vmul.f32 %v1182, %v909
  %v1321 = vmul.f32 %v1185, %v909
  %v1322 = vmul.f32 %v1188, %v909
  %v1323 = vmul.f32 %v1191, %v909
  %v1324 = vmul.f32 %v1194, %v909
  %v1325 = vmul.f32 %v1197, %v909
  %v1326 = vmul.f32 %v1200, %v909
  %v1327 = vmul.f32 %v1203, %v909
  %v1328 = vmul.f32 %v1206, %v909
  %v1329 = vmul.f32 %v1209, %v909
  %v1330 = vmul.f32 %v1212, %v909
  %v1331 = vmul.f32 %v1215, %v909
  %v1332 = vmul.f32 %v1218, %v909
  %v1333 = vmul.f32 %v1221, %v909
  %v1334 = vmul.f32 %v1224, %v909
  %v1335 = vmul.f32 %v1227, %v909
  %v1336 = vmul.f32 %v1230, %v909
  %v1337 = vmul.f32 %v1233, %v909
  %v1338 = vmul.f32 %v1236, %v909
  %v1339 = vmul.f32 %v1239, %v909
  %v1340 = vmul.f32 %v1242, %v909
  %v1341 = vmul.f32 %v1245, %v909
  %v1342 = vmul.f32 %v1248, %v909
  %v1343 = vmul.f32 %v1251, %v909
  %v1344 = vmul.f32 %v1254, %v909
  %v1345 = vmul.f32 %v1257, %v909
  %v1346 = vmul.f32 %v1260, %v909
  %v1347 = vmul.f32 %v1263, %v909
  %v1348 = vmul.f32 %v1266, %v909
  %v1349 = vmul.f32 %v1269, %v909
  %v1350 = vmul.f32 %v1272, %v909
  %v1351 = vmul.f32 %v1275, %v909
  %v1352 = vmul.f32 %v1278, %v909
  %v1353 = vmul.f32 %v1281, %v909
  %v1354 = vmul.f32 %v1284, %v909
  %v1355 = vmul.f32 %v1287, %v909
  %v1356 = vmul.f32 %v1290, %v909
  %v1357 = vmul.f32 %v1293, %v909
  %v1358 = vadd.f32 %v1294, 1e-05
  %v1359 = vadd.f32 %v1295, 1e-05
  %v1360 = vadd.f32 %v1296, 1e-05
  %v1361 = vadd.f32 %v1297, 1e-05
  %v1362 = vadd.f32 %v1298, 1e-05
  %v1363 = vadd.f32 %v1299, 1e-05
  %v1364 = vadd.f32 %v1300, 1e-05
  %v1365 = vadd.f32 %v1301, 1e-05
  %v1366 = vadd.f32 %v1302, 1e-05
  %v1367 = vadd.f32 %v1303, 1e-05
  %v1368 = vadd.f32 %v1304, 1e-05
  %v1369 = vadd.f32 %v1305, 1e-05
  %v1370 = vadd.f32 %v1306, 1e-05
  %v1371 = vadd.f32 %v1307, 1e-05
  %v1372 = vadd.f32 %v1308, 1e-05
  %v1373 = vadd.f32 %v1309, 1e-05
  %v1374 = vadd.f32 %v1310, 1e-05
  %v1375 = vadd.f32 %v1311, 1e-05
  %v1376 = vadd.f32 %v1312, 1e-05
  %v1377 = vadd.f32 %v1313, 1e-05
  %v1378 = vadd.f32 %v1314, 1e-05
  %v1379 = vadd.f32 %v1315, 1e-05
  %v1380 = vadd.f32 %v1316, 1e-05
  %v1381 = vadd.f32 %v1317, 1e-05
  %v1382 = vadd.f32 %v1318, 1e-05
  %v1383 = vadd.f32 %v1319, 1e-05
  %v1384 = vadd.f32 %v1320, 1e-05
  %v1385 = vadd.f32 %v1321, 1e-05
  %v1386 = vadd.f32 %v1322, 1e-05
  %v1387 = vadd.f32 %v1323, 1e-05
  %v1388 = vadd.f32 %v1324, 1e-05
  %v1389 = vadd.f32 %v1325, 1e-05
  %v1390 = vadd.f32 %v1326, 1e-05
  %v1391 = vadd.f32 %v1327, 1e-05
  %v1392 = vadd.f32 %v1328, 1e-05
  %v1393 = vadd.f32 %v1329, 1e-05
  %v1394 = vadd.f32 %v1330, 1e-05
  %v1395 = vadd.f32 %v1331, 1e-05
  %v1396 = vadd.f32 %v1332, 1e-05
  %v1397 = vadd.f32 %v1333, 1e-05
  %v1398 = vadd.f32 %v1334, 1e-05
  %v1399 = vadd.f32 %v1335, 1e-05
  %v1400 = vadd.f32 %v1336, 1e-05
  %v1401 = vadd.f32 %v1337, 1e-05
  %v1402 = vadd.f32 %v1338, 1e-05
  %v1403 = vadd.f32 %v1339, 1e-05
  %v1404 = vadd.f32 %v1340, 1e-05
  %v1405 = vadd.f32 %v1341, 1e-05
  %v1406 = vadd.f32 %v1342, 1e-05
  %v1407 = vadd.f32 %v1343, 1e-05
  %v1408 = vadd.f32 %v1344, 1e-05
  %v1409 = vadd.f32 %v1345, 1e-05
  %v1410 = vadd.f32 %v1346, 1e-05
  %v1411 = vadd.f32 %v1347, 1e-05
  %v1412 = vadd.f32 %v1348, 1e-05
  %v1413 = vadd.f32 %v1349, 1e-05
  %v1414 = vadd.f32 %v1350, 1e-05
  %v1415 = vadd.f32 %v1351, 1e-05
  %v1416 = vadd.f32 %v1352, 1e-05
  %v1417 = vadd.f32 %v1353, 1e-05
  %v1418 = vadd.f32 %v1354, 1e-05
  %v1419 = vadd.f32 %v1355, 1e-05
  %v1420 = vadd.f32 %v1356, 1e-05
  %v1421 = vadd.f32 %v1357, 1e-05
  %v1422 = vrsqrt.pop %v1358
  %v1423 = vrsqrt.pop %v1359
  %v1424 = vrsqrt.pop %v1360
  %v1425 = vrsqrt.pop %v1361
  %v1426 = vrsqrt.pop %v1362
  %v1427 = vrsqrt.pop %v1363
  %v1428 = vrsqrt.pop %v1364
  %v1429 = vrsqrt.pop %v1365
  %v1430 = vrsqrt.pop %v1366
  %v1431 = vrsqrt.pop %v1367
  %v1432 = vrsqrt.pop %v1368
  %v1433 = vrsqrt.pop %v1369
  %v1434 = vrsqrt.pop %v1370
  %v1435 = vrsqrt.pop %v1371
  %v1436 = vrsqrt.pop %v1372
  %v1437 = vrsqrt.pop %v1373
  %v1438 = vrsqrt.pop %v1374
  %v1439 = vrsqrt.pop %v1375
  %v1440 = vrsqrt.pop %v1376
  %v1441 = vrsqrt.pop %v1377
  %v1442 = vrsqrt.pop %v1378
  %v1443 = vrsqrt.pop %v1379
  %v1444 = vrsqrt.pop %v1380
  %v1445 = vrsqrt.pop %v1381
  %v1446 = vrsqrt.pop %v1382
  %v1447 = vrsqrt.pop %v1383
  %v1448 = vrsqrt.pop %v1384
  %v1449 = vrsqrt.pop %v1385
  %v1450 = vrsqrt.pop %v1386
  %v1451 = vrsqrt.pop %v1387
  %v1452 = vrsqrt.pop %v1388
  %v1453 = vrsqrt.pop %v1389
  %v1454 = vrsqrt.pop %v1390
  %v1455 = vrsqrt.pop %v1391
  %v1456 = vrsqrt.pop %v1392
  %v1457 = vrsqrt.pop %v1393
  %v1458 = vrsqrt.pop %v1394
  %v1459 = vrsqrt.pop %v1395
  %v1460 = vrsqrt.pop %v1396
  %v1461 = vrsqrt.pop %v1397
  %v1462 = vrsqrt.pop %v1398
  %v1463 = vrsqrt.pop %v1399
  %v1464 = vrsqrt.pop %v1400
  %v1465 = vrsqrt.pop %v1401
  %v1466 = vrsqrt.pop %v1402
  %v1467 = vrsqrt.pop %v1403
  %v1468 = vrsqrt.pop %v1404
  %v1469 = vrsqrt.pop %v1405
  %v1470 = vrsqrt.pop %v1406
  %v1471 = vrsqrt.pop %v1407
  %v1472 = vrsqrt.pop %v1408
  %v1473 = vrsqrt.pop %v1409
  %v1474 = vrsqrt.pop %v1410
  %v1475 = vrsqrt.pop %v1411
  %v1476 = vrsqrt.pop %v1412
  %v1477 = vrsqrt.pop %v1413
  %v1478 = vrsqrt.pop %v1414
  %v1479 = vrsqrt.pop %v1415
  %v1480 = vrsqrt.pop %v1416
  %v1481 = vrsqrt.pop %v1417
  %v1482 = vrsqrt.pop %v1418
  %v1483 = vrsqrt.pop %v1419
  %v1484 = vrsqrt.pop %v1420
  %v1485 = vrsqrt.pop %v1421
  %v1486 = vmul.f32 %v974, %v1422
  %v1487 = vmul.f32 %v975, %v1423
  %v1488 = vmul.f32 %v976, %v1424
  %v1489 = vmul.f32 %v977, %v1425
  %v1490 = vmul.f32 %v978, %v1426
  %v1491 = vmul.f32 %v979, %v1427
  %v1492 = vmul.f32 %v980, %v1428
  %v1493 = vmul.f32 %v981, %v1429
  %v1494 = vmul.f32 %v982, %v1430
  %v1495 = vmul.f32 %v983, %v1431
  %v1496 = vmul.f32 %v984, %v1432
  %v1497 = vmul.f32 %v985, %v1433
  %v1498 = vmul.f32 %v986, %v1434
  %v1499 = vmul.f32 %v987, %v1435
  %v1500 = vmul.f32 %v988, %v1436
  %v1501 = vmul.f32 %v989, %v1437
  %v1502 = vmul.f32 %v990, %v1438
  %v1503 = vmul.f32 %v991, %v1439
  %v1504 = vmul.f32 %v992, %v1440
  %v1505 = vmul.f32 %v993, %v1441
  %v1506 = vmul.f32 %v994, %v1442
  %v1507 = vmul.f32 %v995, %v1443
  %v1508 = vmul.f32 %v996, %v1444
  %v1509 = vmul.f32 %v997, %v1445
  %v1510 = vmul.f32 %v998, %v1446
  %v1511 = vmul.f32 %v999, %v1447
  %v1512 = vmul.f32 %v1000, %v1448
  %v1513 = vmul.f32 %v1001, %v1449
  %v1514 = vmul.f32 %v1002, %v1450
  %v1515 = vmul.f32 %v1003, %v1451
  %v1516 = vmul.f32 %v1004, %v1452
  %v1517 = vmul.f32 %v1005, %v1453
  %v1518 = vmul.f32 %v1006, %v1454
  %v1519 = vmul.f32 %v1007, %v1455
  %v1520 = vmul.f32 %v1008, %v1456
  %v1521 = vmul.f32 %v1009, %v1457
  %v1522 = vmul.f32 %v1010, %v1458
  %v1523 = vmul.f32 %v1011, %v1459
  %v1524 = vmul.f32 %v1012, %v1460
  %v1525 = vmul.f32 %v1013, %v1461
  %v1526 = vmul.f32 %v1014, %v1462
  %v1527 = vmul.f32 %v1015, %v1463
  %v1528 = vmul.f32 %v1016, %v1464
  %v1529 = vmul.f32 %v1017, %v1465
  %v1530 = vmul.f32 %v1018, %v1466
  %v1531 = vmul.f32 %v1019, %v1467
  %v1532 = vmul.f32 %v1020, %v1468
  %v1533 = vmul.f32 %v1021, %v1469
  %v1534 = vmul.f32 %v1022, %v1470
  %v1535 = vmul.f32 %v1023, %v1471
  %v1536 = vmul.f32 %v1024, %v1472
  %v1537 = vmul.f32 %v1025, %v1473
  %v1538 = vmul.f32 %v1026, %v1474
  %v1539 = vmul.f32 %v1027, %v1475
  %v1540 = vmul.f32 %v1028, %v1476
  %v1541 = vmul.f32 %v1029, %v1477
  %v1542 = vmul.f32 %v1030, %v1478
  %v1543 = vmul.f32 %v1031, %v1479
  %v1544 = vmul.f32 %v1032, %v1480
  %v1545 = vmul.f32 %v1033, %v1481
  %v1546 = vmul.f32 %v1034, %v1482
  %v1547 = vmul.f32 %v1035, %v1483
  %v1548 = vmul.f32 %v1036, %v1484
  %v1549 = vmul.f32 %v1037, %v1485
  %v1550 = vld [vmem:[%s4] sm:$0x1]
  %v1552 = vlaneseq
  %v1553 = vshrl.u32 %v1552, 7
  %v1554 = vsub.s32 0, %v1553
  %v1555 = vrot.slane %v1550, %v1554
  %v1557 = vmul.f32 %v1486, %v1555
  %v1558 = vmul.f32 %v1487, %v1555
  %v1559 = vmul.f32 %v1488, %v1555
  %v1560 = vmul.f32 %v1489, %v1555
  %v1561 = vmul.f32 %v1490, %v1555
  %v1562 = vmul.f32 %v1491, %v1555
  %v1563 = vmul.f32 %v1492, %v1555
  %v1564 = vmul.f32 %v1493, %v1555
  %v1565 = vmul.f32 %v1494, %v1555
  %v1566 = vmul.f32 %v1495, %v1555
  %v1567 = vmul.f32 %v1496, %v1555
  %v1568 = vmul.f32 %v1497, %v1555
  %v1569 = vmul.f32 %v1498, %v1555
  %v1570 = vmul.f32 %v1499, %v1555
  %v1571 = vmul.f32 %v1500, %v1555
  %v1572 = vmul.f32 %v1501, %v1555
  %v1573 = vmul.f32 %v1502, %v1555
  %v1574 = vmul.f32 %v1503, %v1555
  %v1575 = vmul.f32 %v1504, %v1555
  %v1576 = vmul.f32 %v1505, %v1555
  %v1577 = vmul.f32 %v1506, %v1555
  %v1578 = vmul.f32 %v1507, %v1555
  %v1579 = vmul.f32 %v1508, %v1555
  %v1580 = vmul.f32 %v1509, %v1555
  %v1581 = vmul.f32 %v1510, %v1555
  %v1582 = vmul.f32 %v1511, %v1555
  %v1583 = vmul.f32 %v1512, %v1555
  %v1584 = vmul.f32 %v1513, %v1555
  %v1585 = vmul.f32 %v1514, %v1555
  %v1586 = vmul.f32 %v1515, %v1555
  %v1587 = vmul.f32 %v1516, %v1555
  %v1588 = vmul.f32 %v1517, %v1555
  %v1589 = vmul.f32 %v1518, %v1555
  %v1590 = vmul.f32 %v1519, %v1555
  %v1591 = vmul.f32 %v1520, %v1555
  %v1592 = vmul.f32 %v1521, %v1555
  %v1593 = vmul.f32 %v1522, %v1555
  %v1594 = vmul.f32 %v1523, %v1555
  %v1595 = vmul.f32 %v1524, %v1555
  %v1596 = vmul.f32 %v1525, %v1555
  %v1597 = vmul.f32 %v1526, %v1555
  %v1598 = vmul.f32 %v1527, %v1555
  %v1599 = vmul.f32 %v1528, %v1555
  %v1600 = vmul.f32 %v1529, %v1555
  %v1601 = vmul.f32 %v1530, %v1555
  %v1602 = vmul.f32 %v1531, %v1555
  %v1603 = vmul.f32 %v1532, %v1555
  %v1604 = vmul.f32 %v1533, %v1555
  %v1605 = vmul.f32 %v1534, %v1555
  %v1606 = vmul.f32 %v1535, %v1555
  %v1607 = vmul.f32 %v1536, %v1555
  %v1608 = vmul.f32 %v1537, %v1555
  %v1609 = vmul.f32 %v1538, %v1555
  %v1610 = vmul.f32 %v1539, %v1555
  %v1611 = vmul.f32 %v1540, %v1555
  %v1612 = vmul.f32 %v1541, %v1555
  %v1613 = vmul.f32 %v1542, %v1555
  %v1614 = vmul.f32 %v1543, %v1555
  %v1615 = vmul.f32 %v1544, %v1555
  %v1616 = vmul.f32 %v1545, %v1555
  %v1617 = vmul.f32 %v1546, %v1555
  %v1618 = vmul.f32 %v1547, %v1555
  %v1619 = vmul.f32 %v1548, %v1555
  %v1620 = vmul.f32 %v1549, %v1555
  %v1621 = vld [vmem:[%s5] sm:$0x1]
  %v1623 = vlaneseq
  %v1624 = vshrl.u32 %v1623, 7
  %v1625 = vsub.s32 0, %v1624
  %v1626 = vrot.slane %v1621, %v1625
  %v1628 = vadd.f32 %v1557, %v1626
  %v1629 = vadd.f32 %v1558, %v1626
  %v1630 = vadd.f32 %v1559, %v1626
  %v1631 = vadd.f32 %v1560, %v1626
  %v1632 = vadd.f32 %v1561, %v1626
  %v1633 = vadd.f32 %v1562, %v1626
  %v1634 = vadd.f32 %v1563, %v1626
  %v1635 = vadd.f32 %v1564, %v1626
  %v1636 = vadd.f32 %v1565, %v1626
  %v1637 = vadd.f32 %v1566, %v1626
  %v1638 = vadd.f32 %v1567, %v1626
  %v1639 = vadd.f32 %v1568, %v1626
  %v1640 = vadd.f32 %v1569, %v1626
  %v1641 = vadd.f32 %v1570, %v1626
  %v1642 = vadd.f32 %v1571, %v1626
  %v1643 = vadd.f32 %v1572, %v1626
  %v1644 = vadd.f32 %v1573, %v1626
  %v1645 = vadd.f32 %v1574, %v1626
  %v1646 = vadd.f32 %v1575, %v1626
  %v1647 = vadd.f32 %v1576, %v1626
  %v1648 = vadd.f32 %v1577, %v1626
  %v1649 = vadd.f32 %v1578, %v1626
  %v1650 = vadd.f32 %v1579, %v1626
  %v1651 = vadd.f32 %v1580, %v1626
  %v1652 = vadd.f32 %v1581, %v1626
  %v1653 = vadd.f32 %v1582, %v1626
  %v1654 = vadd.f32 %v1583, %v1626
  %v1655 = vadd.f32 %v1584, %v1626
  %v1656 = vadd.f32 %v1585, %v1626
  %v1657 = vadd.f32 %v1586, %v1626
  %v1658 = vadd.f32 %v1587, %v1626
  %v1659 = vadd.f32 %v1588, %v1626
  %v1660 = vadd.f32 %v1589, %v1626
  %v1661 = vadd.f32 %v1590, %v1626
  %v1662 = vadd.f32 %v1591, %v1626
  %v1663 = vadd.f32 %v1592, %v1626
  %v1664 = vadd.f32 %v1593, %v1626
  %v1665 = vadd.f32 %v1594, %v1626
  %v1666 = vadd.f32 %v1595, %v1626
  %v1667 = vadd.f32 %v1596, %v1626
  %v1668 = vadd.f32 %v1597, %v1626
  %v1669 = vadd.f32 %v1598, %v1626
  %v1670 = vadd.f32 %v1599, %v1626
  %v1671 = vadd.f32 %v1600, %v1626
  %v1672 = vadd.f32 %v1601, %v1626
  %v1673 = vadd.f32 %v1602, %v1626
  %v1674 = vadd.f32 %v1603, %v1626
  %v1675 = vadd.f32 %v1604, %v1626
  %v1676 = vadd.f32 %v1605, %v1626
  %v1677 = vadd.f32 %v1606, %v1626
  %v1678 = vadd.f32 %v1607, %v1626
  %v1679 = vadd.f32 %v1608, %v1626
  %v1680 = vadd.f32 %v1609, %v1626
  %v1681 = vadd.f32 %v1610, %v1626
  %v1682 = vadd.f32 %v1611, %v1626
  %v1683 = vadd.f32 %v1612, %v1626
  %v1684 = vadd.f32 %v1613, %v1626
  %v1685 = vadd.f32 %v1614, %v1626
  %v1686 = vadd.f32 %v1615, %v1626
  %v1687 = vadd.f32 %v1616, %v1626
  %v1688 = vadd.f32 %v1617, %v1626
  %v1689 = vadd.f32 %v1618, %v1626
  %v1690 = vadd.f32 %v1619, %v1626
  %v1691 = vadd.f32 %v1620, %v1626
  %v1692 = vpack.c.bf16 %v1629, %v1628
  %v1693 = vpack.c.bf16 %v1631, %v1630
  %v1694 = vpack.c.bf16 %v1633, %v1632
  %v1695 = vpack.c.bf16 %v1635, %v1634
  %v1696 = vpack.c.bf16 %v1637, %v1636
  %v1697 = vpack.c.bf16 %v1639, %v1638
  %v1698 = vpack.c.bf16 %v1641, %v1640
  %v1699 = vpack.c.bf16 %v1643, %v1642
  %v1700 = vpack.c.bf16 %v1645, %v1644
  %v1701 = vpack.c.bf16 %v1647, %v1646
  %v1702 = vpack.c.bf16 %v1649, %v1648
  %v1703 = vpack.c.bf16 %v1651, %v1650
  %v1704 = vpack.c.bf16 %v1653, %v1652
  %v1705 = vpack.c.bf16 %v1655, %v1654
  %v1706 = vpack.c.bf16 %v1657, %v1656
  %v1707 = vpack.c.bf16 %v1659, %v1658
  %v1708 = vpack.c.bf16 %v1661, %v1660
  %v1709 = vpack.c.bf16 %v1663, %v1662
  %v1710 = vpack.c.bf16 %v1665, %v1664
  %v1711 = vpack.c.bf16 %v1667, %v1666
  %v1712 = vpack.c.bf16 %v1669, %v1668
  %v1713 = vpack.c.bf16 %v1671, %v1670
  %v1714 = vpack.c.bf16 %v1673, %v1672
  %v1715 = vpack.c.bf16 %v1675, %v1674
  %v1716 = vpack.c.bf16 %v1677, %v1676
  %v1717 = vpack.c.bf16 %v1679, %v1678
  %v1718 = vpack.c.bf16 %v1681, %v1680
  %v1719 = vpack.c.bf16 %v1683, %v1682
  %v1720 = vpack.c.bf16 %v1685, %v1684
  %v1721 = vpack.c.bf16 %v1687, %v1686
  %v1722 = vpack.c.bf16 %v1689, %v1688
  %v1723 = vpack.c.bf16 %v1691, %v1690
  %v1724 = vld [vmem:[%s6] sm:$0xf]
  %v1725 = vld [vmem:[%s7] sm:$0x1]
  %v1727 = vlaneseq
  %v1728 = vshrl.u32 %v1727, 7
  %v1729 = vsub.s32 0, %v1728
  %v1730 = vrot.slane %v1725, %v1729
  %v1733 = vsel %vm716, %v1692, 0
  %v1736 = vsel %vm716, %v1693, 0
  %v1739 = vsel %vm716, %v1694, 0
  %v1742 = vsel %vm716, %v1695, 0
  %v1745 = vsel %vm716, %v1696, 0
  %v1748 = vsel %vm716, %v1697, 0
  %v1751 = vsel %vm716, %v1698, 0
  %v1754 = vsel %vm716, %v1699, 0
  %v1757 = vsel %vm716, %v1700, 0
  %v1760 = vsel %vm716, %v1701, 0
  %v1763 = vsel %vm716, %v1702, 0
  %v1766 = vsel %vm716, %v1703, 0
  %v1769 = vsel %vm716, %v1704, 0
  %v1772 = vsel %vm716, %v1705, 0
  %v1775 = vsel %vm716, %v1706, 0
  %v1778 = vsel %vm716, %v1707, 0
  %v1781 = vsel %vm716, %v1708, 0
  %v1784 = vsel %vm716, %v1709, 0
  %v1787 = vsel %vm716, %v1710, 0
  %v1790 = vsel %vm716, %v1711, 0
  %v1793 = vsel %vm716, %v1712, 0
  %v1796 = vsel %vm716, %v1713, 0
  %v1799 = vsel %vm716, %v1714, 0
  %v1802 = vsel %vm716, %v1715, 0
  %v1805 = vsel %vm716, %v1716, 0
  %v1808 = vsel %vm716, %v1717, 0
  %v1811 = vsel %vm716, %v1718, 0
  %v1814 = vsel %vm716, %v1719, 0
  %v1817 = vsel %vm716, %v1720, 0
  %v1820 = vsel %vm716, %v1721, 0
  %v1823 = vsel %vm716, %v1722, 0
  %v1826 = vsel %vm716, %v1723, 0
  %vm1828 = vcmask 1043456
  %v1830 = vsel %vm1828, %v1724, 0
  %1832 = vmatprep.subr.bf16.mxu0 0
  %1833 = vmatpush1.bf16.msra.mxu0 %v1830
  %1834 = vmatprep.subr.bf16.mxu0 0
  %1835 = vmatpush1.bf16.msra.mxu0 0
  %1836 = vmatprep.subr.bf16.mxu0 0
  %1837 = vmatpush1.bf16.msra.mxu0 0
  %1838 = vmatprep.subr.bf16.mxu0 0
  %1839 = vmatpush1.bf16.msra.mxu0 0
  %1840 = vmatprep.subr.bf16.mxu0 0
  %1841 = vmatpush1.bf16.msra.mxu0 0
  %1842 = vmatprep.subr.bf16.mxu0 0
  %1843 = vmatpush1.bf16.msra.mxu0 0
  %1844 = vmatprep.subr.bf16.mxu0 0
  %1845 = vmatpush1.bf16.msra.mxu0 0
  %1846 = vmatprep.subr.bf16.mxu0 0
  %1847 = vmatpush1.bf16.msra.mxu0 0
  %1848 = vmatprep.subr.bf16.mxu0 0
  %1849 = vmatpush1.bf16.msra.mxu0 0
  %1850 = vmatprep.subr.bf16.mxu0 0
  %1851 = vmatpush1.bf16.msra.mxu0 0
  %1852 = vmatprep.subr.bf16.mxu0 0
  %1853 = vmatpush1.bf16.msra.mxu0 0
  %1854 = vmatprep.subr.bf16.mxu0 0
  %1855 = vmatpush1.bf16.msra.mxu0 0
  %1856 = vmatprep.subr.bf16.mxu0 0
  %1857 = vmatpush1.bf16.msra.mxu0 0
  %1858 = vmatprep.subr.bf16.mxu0 0
  %1859 = vmatpush1.bf16.msra.mxu0 0
  %1860 = vmatprep.subr.bf16.mxu0 0
  %1861 = vmatpush1.bf16.msra.mxu0 0
  %1862 = vmatprep.subr.bf16.mxu0 0
  %1863 = vmatpush1.bf16.msra.mxu0 0
  %1864 = vmatprep.mubr.bf16.mxu0 0
  %1865 = vmatmul.mubr.bf16.gmra.mrb[0].mxu0 %v1733
  %v1866 = vpop.f32.mrb[0].mxu0
  %v1867 = vadd.f32 %v1730, %v1866
  %v1868 = vpop.f32.mrb[0].mxu0
  %v1869 = vpop.f32.mrb[0].mxu0
  %v1870 = vadd.f32 %v1730, %v1869
  %v1871 = vpop.f32.mrb[0].mxu0
  %1872 = vmatprep.mubr.bf16.mxu0 0
  %1873 = vmatmul.mubr.bf16.gmra.mrb[0].mxu0 %v1736
  %v1874 = vpop.f32.mrb[0].mxu0
  %v1875 = vadd.f32 %v1730, %v1874
  %v1876 = vpop.f32.mrb[0].mxu0
  %v1877 = vpop.f32.mrb[0].mxu0
  %v1878 = vadd.f32 %v1730, %v1877
  %v1879 = vpop.f32.mrb[0].mxu0
  %1880 = vmatprep.mubr.bf16.mxu0 0
  %1881 = vmatmul.mubr.bf16.gmra.mrb[0].mxu0 %v1739
  %v1882 = vpop.f32.mrb[0].mxu0
  %v1883 = vadd.f32 %v1730, %v1882
  %v1884 = vpop.f32.mrb[0].mxu0
  %v1885 = vpop.f32.mrb[0].mxu0
  %v1886 = vadd.f32 %v1730, %v1885
  %v1887 = vpop.f32.mrb[0].mxu0
  %1888 = vmatprep.mubr.bf16.mxu0 0
  %1889 = vmatmul.mubr.bf16.gmra.mrb[0].mxu0 %v1742
  %v1890 = vpop.f32.mrb[0].mxu0
  %v1891 = vadd.f32 %v1730, %v1890
  %v1892 = vpop.f32.mrb[0].mxu0
  %v1893 = vpop.f32.mrb[0].mxu0
  %v1894 = vadd.f32 %v1730, %v1893
  %v1895 = vpop.f32.mrb[0].mxu0
  %1896 = vmatprep.mubr.bf16.mxu0 0
  %1897 = vmatmul.mubr.bf16.gmra.mrb[0].mxu0 %v1745
  %v1898 = vpop.f32.mrb[0].mxu0
  %v1899 = vadd.f32 %v1730, %v1898
  %v1900 = vpop.f32.mrb[0].mxu0
  %v1901 = vpop.f32.mrb[0].mxu0
  %v1902 = vadd.f32 %v1730, %v1901
  %v1903 = vpop.f32.mrb[0].mxu0
  %1904 = vmatprep.mubr.bf16.mxu0 0
  %1905 = vmatmul.mubr.bf16.gmra.mrb[0].mxu0 %v1748
  %v1906 = vpop.f32.mrb[0].mxu0
  %v1907 = vadd.f32 %v1730, %v1906
  %v1908 = vpop.f32.mrb[0].mxu0
  %v1909 = vpop.f32.mrb[0].mxu0
  %v1910 = vadd.f32 %v1730, %v1909
  %v1911 = vpop.f32.mrb[0].mxu0
  %1912 = vmatprep.mubr.bf16.mxu0 0
  %1913 = vmatmul.mubr.bf16.gmra.mrb[0].mxu0 %v1751
  %v1914 = vpop.f32.mrb[0].mxu0
  %v1915 = vadd.f32 %v1730, %v1914
  %v1916 = vpop.f32.mrb[0].mxu0
  %v1917 = vpop.f32.mrb[0].mxu0
  %v1918 = vadd.f32 %v1730, %v1917
  %v1919 = vpop.f32.mrb[0].mxu0
  %1920 = vmatprep.mubr.bf16.mxu0 0
  %1921 = vmatmul.mubr.bf16.gmra.mrb[0].mxu0 %v1754
  %v1922 = vpop.f32.mrb[0].mxu0
  %v1923 = vadd.f32 %v1730, %v1922
  %v1924 = vpop.f32.mrb[0].mxu0
  %v1925 = vpop.f32.mrb[0].mxu0
  %v1926 = vadd.f32 %v1730, %v1925
  %v1927 = vpop.f32.mrb[0].mxu0
  %1928 = vmatprep.mubr.bf16.mxu0 0
  %1929 = vmatmul.mubr.bf16.gmra.mrb[0].mxu0 %v1757
  %v1930 = vpop.f32.mrb[0].mxu0
  %v1931 = vadd.f32 %v1730, %v1930
  %v1932 = vpop.f32.mrb[0].mxu0
  %v1933 = vpop.f32.mrb[0].mxu0
  %v1934 = vadd.f32 %v1730, %v1933
  %v1935 = vpop.f32.mrb[0].mxu0
  %1936 = vmatprep.mubr.bf16.mxu0 0
  %1937 = vmatmul.mubr.bf16.gmra.mrb[0].mxu0 %v1760
  %v1938 = vpop.f32.mrb[0].mxu0
  %v1939 = vadd.f32 %v1730, %v1938
  %v1940 = vpop.f32.mrb[0].mxu0
  %v1941 = vpop.f32.mrb[0].mxu0
  %v1942 = vadd.f32 %v1730, %v1941
  %v1943 = vpop.f32.mrb[0].mxu0
  %1944 = vmatprep.mubr.bf16.mxu0 0
  %1945 = vmatmul.mubr.bf16.gmra.mrb[0].mxu0 %v1763
  %v1946 = vpop.f32.mrb[0].mxu0
  %v1947 = vadd.f32 %v1730, %v1946
  %v1948 = vpop.f32.mrb[0].mxu0
  %v1949 = vpop.f32.mrb[0].mxu0
  %v1950 = vadd.f32 %v1730, %v1949
  %v1951 = vpop.f32.mrb[0].mxu0
  %1952 = vmatprep.mubr.bf16.mxu0 0
  %1953 = vmatmul.mubr.bf16.gmra.mrb[0].mxu0 %v1766
  %v1954 = vpop.f32.mrb[0].mxu0
  %v1955 = vadd.f32 %v1730, %v1954
  %v1956 = vpop.f32.mrb[0].mxu0
  %v1957 = vpop.f32.mrb[0].mxu0
  %v1958 = vadd.f32 %v1730, %v1957
  %v1959 = vpop.f32.mrb[0].mxu0
  %1960 = vmatprep.mubr.bf16.mxu0 0
  %1961 = vmatmul.mubr.bf16.gmra.mrb[0].mxu0 %v1769
  %v1962 = vpop.f32.mrb[0].mxu0
  %v1963 = vadd.f32 %v1730, %v1962
  %v1964 = vpop.f32.mrb[0].mxu0
  %v1965 = vpop.f32.mrb[0].mxu0
  %v1966 = vadd.f32 %v1730, %v1965
  %v1967 = vpop.f32.mrb[0].mxu0
  %1968 = vmatprep.mubr.bf16.mxu0 0
  %1969 = vmatmul.mubr.bf16.gmra.mrb[0].mxu0 %v1772
  %v1970 = vpop.f32.mrb[0].mxu0
  %v1971 = vadd.f32 %v1730, %v1970
  %v1972 = vpop.f32.mrb[0].mxu0
  %v1973 = vpop.f32.mrb[0].mxu0
  %v1974 = vadd.f32 %v1730, %v1973
  %v1975 = vpop.f32.mrb[0].mxu0
  %1976 = vmatprep.mubr.bf16.mxu0 0
  %1977 = vmatmul.mubr.bf16.gmra.mrb[0].mxu0 %v1775
  %v1978 = vpop.f32.mrb[0].mxu0
  %v1979 = vadd.f32 %v1730, %v1978
  %v1980 = vpop.f32.mrb[0].mxu0
  %v1981 = vpop.f32.mrb[0].mxu0
  %v1982 = vadd.f32 %v1730, %v1981
  %v1983 = vpop.f32.mrb[0].mxu0
  %1984 = vmatprep.mubr.bf16.mxu0 0
  %1985 = vmatmul.mubr.bf16.gmra.mrb[0].mxu0 %v1778
  %v1986 = vpop.f32.mrb[0].mxu0
  %v1987 = vadd.f32 %v1730, %v1986
  %v1988 = vpop.f32.mrb[0].mxu0
  %v1989 = vpop.f32.mrb[0].mxu0
  %v1990 = vadd.f32 %v1730, %v1989
  %v1991 = vpop.f32.mrb[0].mxu0
  %1992 = vmatprep.mubr.bf16.mxu0 0
  %1993 = vmatmul.mubr.bf16.gmra.mrb[0].mxu0 %v1781
  %v1994 = vpop.f32.mrb[0].mxu0
  %v1995 = vadd.f32 %v1730, %v1994
  %v1996 = vpop.f32.mrb[0].mxu0
  %v1997 = vpop.f32.mrb[0].mxu0
  %v1998 = vadd.f32 %v1730, %v1997
  %v1999 = vpop.f32.mrb[0].mxu0
  %2000 = vmatprep.mubr.bf16.mxu0 0
  %2001 = vmatmul.mubr.bf16.gmra.mrb[0].mxu0 %v1784
  %v2002 = vpop.f32.mrb[0].mxu0
  %v2003 = vadd.f32 %v1730, %v2002
  %v2004 = vpop.f32.mrb[0].mxu0
  %v2005 = vpop.f32.mrb[0].mxu0
  %v2006 = vadd.f32 %v1730, %v2005
  %v2007 = vpop.f32.mrb[0].mxu0
  %2008 = vmatprep.mubr.bf16.mxu0 0
  %2009 = vmatmul.mubr.bf16.gmra.mrb[0].mxu0 %v1787
  %v2010 = vpop.f32.mrb[0].mxu0
  %v2011 = vadd.f32 %v1730, %v2010
  %v2012 = vpop.f32.mrb[0].mxu0
  %v2013 = vpop.f32.mrb[0].mxu0
  %v2014 = vadd.f32 %v1730, %v2013
  %v2015 = vpop.f32.mrb[0].mxu0
  %2016 = vmatprep.mubr.bf16.mxu0 0
  %2017 = vmatmul.mubr.bf16.gmra.mrb[0].mxu0 %v1790
  %v2018 = vpop.f32.mrb[0].mxu0
  %v2019 = vadd.f32 %v1730, %v2018
  %v2020 = vpop.f32.mrb[0].mxu0
  %v2021 = vpop.f32.mrb[0].mxu0
  %v2022 = vadd.f32 %v1730, %v2021
  %v2023 = vpop.f32.mrb[0].mxu0
  %2024 = vmatprep.mubr.bf16.mxu0 0
  %2025 = vmatmul.mubr.bf16.gmra.mrb[0].mxu0 %v1793
  %v2026 = vpop.f32.mrb[0].mxu0
  %v2027 = vadd.f32 %v1730, %v2026
  %v2028 = vpop.f32.mrb[0].mxu0
  %v2029 = vpop.f32.mrb[0].mxu0
  %v2030 = vadd.f32 %v1730, %v2029
  %v2031 = vpop.f32.mrb[0].mxu0
  %2032 = vmatprep.mubr.bf16.mxu0 0
  %2033 = vmatmul.mubr.bf16.gmra.mrb[0].mxu0 %v1796
  %v2034 = vpop.f32.mrb[0].mxu0
  %v2035 = vadd.f32 %v1730, %v2034
  %v2036 = vpop.f32.mrb[0].mxu0
  %v2037 = vpop.f32.mrb[0].mxu0
  %v2038 = vadd.f32 %v1730, %v2037
  %v2039 = vpop.f32.mrb[0].mxu0
  %2040 = vmatprep.mubr.bf16.mxu0 0
  %2041 = vmatmul.mubr.bf16.gmra.mrb[0].mxu0 %v1799
  %v2042 = vpop.f32.mrb[0].mxu0
  %v2043 = vadd.f32 %v1730, %v2042
  %v2044 = vpop.f32.mrb[0].mxu0
  %v2045 = vpop.f32.mrb[0].mxu0
  %v2046 = vadd.f32 %v1730, %v2045
  %v2047 = vpop.f32.mrb[0].mxu0
  %2048 = vmatprep.mubr.bf16.mxu0 0
  %2049 = vmatmul.mubr.bf16.gmra.mrb[0].mxu0 %v1802
  %v2050 = vpop.f32.mrb[0].mxu0
  %v2051 = vadd.f32 %v1730, %v2050
  %v2052 = vpop.f32.mrb[0].mxu0
  %v2053 = vpop.f32.mrb[0].mxu0
  %v2054 = vadd.f32 %v1730, %v2053
  %v2055 = vpop.f32.mrb[0].mxu0
  %2056 = vmatprep.mubr.bf16.mxu0 0
  %2057 = vmatmul.mubr.bf16.gmra.mrb[0].mxu0 %v1805
  %v2058 = vpop.f32.mrb[0].mxu0
  %v2059 = vadd.f32 %v1730, %v2058
  %v2060 = vpop.f32.mrb[0].mxu0
  %v2061 = vpop.f32.mrb[0].mxu0
  %v2062 = vadd.f32 %v1730, %v2061
  %v2063 = vpop.f32.mrb[0].mxu0
  %2064 = vmatprep.mubr.bf16.mxu0 0
  %2065 = vmatmul.mubr.bf16.gmra.mrb[0].mxu0 %v1808
  %v2066 = vpop.f32.mrb[0].mxu0
  %v2067 = vadd.f32 %v1730, %v2066
  %v2068 = vpop.f32.mrb[0].mxu0
  %v2069 = vpop.f32.mrb[0].mxu0
  %v2070 = vadd.f32 %v1730, %v2069
  %v2071 = vpop.f32.mrb[0].mxu0
  %2072 = vmatprep.mubr.bf16.mxu0 0
  %2073 = vmatmul.mubr.bf16.gmra.mrb[0].mxu0 %v1811
  %v2074 = vpop.f32.mrb[0].mxu0
  %v2075 = vadd.f32 %v1730, %v2074
  %v2076 = vpop.f32.mrb[0].mxu0
  %v2077 = vpop.f32.mrb[0].mxu0
  %v2078 = vadd.f32 %v1730, %v2077
  %v2079 = vpop.f32.mrb[0].mxu0
  %2080 = vmatprep.mubr.bf16.mxu0 0
  %2081 = vmatmul.mubr.bf16.gmra.mrb[0].mxu0 %v1814
  %v2082 = vpop.f32.mrb[0].mxu0
  %v2083 = vadd.f32 %v1730, %v2082
  %v2084 = vpop.f32.mrb[0].mxu0
  %v2085 = vpop.f32.mrb[0].mxu0
  %v2086 = vadd.f32 %v1730, %v2085
  %v2087 = vpop.f32.mrb[0].mxu0
  %2088 = vmatprep.mubr.bf16.mxu0 0
  %2089 = vmatmul.mubr.bf16.gmra.mrb[0].mxu0 %v1817
  %v2090 = vpop.f32.mrb[0].mxu0
  %v2091 = vadd.f32 %v1730, %v2090
  %v2092 = vpop.f32.mrb[0].mxu0
  %v2093 = vpop.f32.mrb[0].mxu0
  %v2094 = vadd.f32 %v1730, %v2093
  %v2095 = vpop.f32.mrb[0].mxu0
  %2096 = vmatprep.mubr.bf16.mxu0 0
  %2097 = vmatmul.mubr.bf16.gmra.mrb[0].mxu0 %v1820
  %v2098 = vpop.f32.mrb[0].mxu0
  %v2099 = vadd.f32 %v1730, %v2098
  %v2100 = vpop.f32.mrb[0].mxu0
  %v2101 = vpop.f32.mrb[0].mxu0
  %v2102 = vadd.f32 %v1730, %v2101
  %v2103 = vpop.f32.mrb[0].mxu0
  %2104 = vmatprep.mubr.bf16.mxu0 0
  %2105 = vmatmul.mubr.bf16.gmra.mrb[0].mxu0 %v1823
  %v2106 = vpop.f32.mrb[0].mxu0
  %v2107 = vadd.f32 %v1730, %v2106
  %v2108 = vpop.f32.mrb[0].mxu0
  %v2109 = vpop.f32.mrb[0].mxu0
  %v2110 = vadd.f32 %v1730, %v2109
  %v2111 = vpop.f32.mrb[0].mxu0
  %2112 = vmatprep.mubr.bf16.mxu0 0
  %2113 = vmatmul.mubr.bf16.gmra.mrb[0].mxu0 %v1826
  %v2114 = vpop.f32.mrb[0].mxu0
  %v2115 = vadd.f32 %v1730, %v2114
  %v2116 = vpop.f32.mrb[0].mxu0
  %v2117 = vpop.f32.mrb[0].mxu0
  %v2118 = vadd.f32 %v1730, %v2117
  %v2119 = vpop.f32.mrb[0].mxu0
  %2120 = vdwg.mxu0
  %v2121 = vld [vmem:[%s1] sm:$0xff]
  %v2122 = vld [vmem:[%s1 + $0x8] sm:$0xff]
  %v2123 = vld [vmem:[%s1 + $0x10] sm:$0xff]
  %v2124 = vld [vmem:[%s1 + $0x18] sm:$0xff]
  %v2125 = vld [vmem:[%s1 + $0x20] sm:$0xff]
  %v2126 = vld [vmem:[%s1 + $0x28] sm:$0xff]
  %v2127 = vld [vmem:[%s1 + $0x30] sm:$0xff]
  %v2128 = vld [vmem:[%s1 + $0x38] sm:$0xff]
  %v2129 = vld [vmem:[%s1 + $0x40] sm:$0xff]
  %v2130 = vld [vmem:[%s1 + $0x48] sm:$0xff]
  %v2131 = vld [vmem:[%s1 + $0x50] sm:$0xff]
  %v2132 = vld [vmem:[%s1 + $0x58] sm:$0xff]
  %v2133 = vld [vmem:[%s1 + $0x60] sm:$0xff]
  %v2134 = vld [vmem:[%s1 + $0x68] sm:$0xff]
  %v2135 = vld [vmem:[%s1 + $0x70] sm:$0xff]
  %v2136 = vld [vmem:[%s1 + $0x78] sm:$0xff]
  %v2137 = vld [vmem:[%s1 + $0x80] sm:$0xff]
  %v2138 = vld [vmem:[%s1 + $0x88] sm:$0xff]
  %v2139 = vld [vmem:[%s1 + $0x90] sm:$0xff]
  %v2140 = vld [vmem:[%s1 + $0x98] sm:$0xff]
  %v2141 = vld [vmem:[%s1 + $0xa0] sm:$0xff]
  %v2142 = vld [vmem:[%s1 + $0xa8] sm:$0xff]
  %v2143 = vld [vmem:[%s1 + $0xb0] sm:$0xff]
  %v2144 = vld [vmem:[%s1 + $0xb8] sm:$0xff]
  %v2145 = vld [vmem:[%s1 + $0xc0] sm:$0xff]
  %v2146 = vld [vmem:[%s1 + $0xc8] sm:$0xff]
  %v2147 = vld [vmem:[%s1 + $0xd0] sm:$0xff]
  %v2148 = vld [vmem:[%s1 + $0xd8] sm:$0xff]
  %v2149 = vld [vmem:[%s1 + $0xe0] sm:$0xff]
  %v2150 = vld [vmem:[%s1 + $0xe8] sm:$0xff]
  %v2151 = vld [vmem:[%s1 + $0xf0] sm:$0xff]
  %v2152 = vld [vmem:[%s1 + $0xf8] sm:$0xff]
  %v2153 = vld [vmem:[%s1 + $0x100] sm:$0xff]
  %v2154 = vld [vmem:[%s1 + $0x108] sm:$0xff]
  %v2155 = vld [vmem:[%s1 + $0x110] sm:$0xff]
  %v2156 = vld [vmem:[%s1 + $0x118] sm:$0xff]
  %v2157 = vld [vmem:[%s1 + $0x120] sm:$0xff]
  %v2158 = vld [vmem:[%s1 + $0x128] sm:$0xff]
  %v2159 = vld [vmem:[%s1 + $0x130] sm:$0xff]
  %v2160 = vld [vmem:[%s1 + $0x138] sm:$0xff]
  %v2161 = vld [vmem:[%s1 + $0x140] sm:$0xff]
  %v2162 = vld [vmem:[%s1 + $0x148] sm:$0xff]
  %v2163 = vld [vmem:[%s1 + $0x150] sm:$0xff]
  %v2164 = vld [vmem:[%s1 + $0x158] sm:$0xff]
  %v2165 = vld [vmem:[%s1 + $0x160] sm:$0xff]
  %v2166 = vld [vmem:[%s1 + $0x168] sm:$0xff]
  %v2167 = vld [vmem:[%s1 + $0x170] sm:$0xff]
  %v2168 = vld [vmem:[%s1 + $0x178] sm:$0xff]
  %v2169 = vld [vmem:[%s1 + $0x180] sm:$0xff]
  %v2170 = vld [vmem:[%s1 + $0x188] sm:$0xff]
  %v2171 = vld [vmem:[%s1 + $0x190] sm:$0xff]
  %v2172 = vld [vmem:[%s1 + $0x198] sm:$0xff]
  %v2173 = vld [vmem:[%s1 + $0x1a0] sm:$0xff]
  %v2174 = vld [vmem:[%s1 + $0x1a8] sm:$0xff]
  %v2175 = vld [vmem:[%s1 + $0x1b0] sm:$0xff]
  %v2176 = vld [vmem:[%s1 + $0x1b8] sm:$0xff]
  %v2177 = vld [vmem:[%s1 + $0x1c0] sm:$0xff]
  %v2178 = vld [vmem:[%s1 + $0x1c8] sm:$0xff]
  %v2179 = vld [vmem:[%s1 + $0x1d0] sm:$0xff]
  %v2180 = vld [vmem:[%s1 + $0x1d8] sm:$0xff]
  %v2181 = vld [vmem:[%s1 + $0x1e0] sm:$0xff]
  %v2182 = vld [vmem:[%s1 + $0x1e8] sm:$0xff]
  %v2183 = vld [vmem:[%s1 + $0x1f0] sm:$0xff]
  %v2184 = vld [vmem:[%s1 + $0x1f8] sm:$0xff]
  %v2185 = vadd.f32 %v1867, %v2121
  %v2186 = vadd.f32 %v1870, %v2122
  %v2187 = vadd.f32 %v1875, %v2123
  %v2188 = vadd.f32 %v1878, %v2124
  %v2189 = vadd.f32 %v1883, %v2125
  %v2190 = vadd.f32 %v1886, %v2126
  %v2191 = vadd.f32 %v1891, %v2127
  %v2192 = vadd.f32 %v1894, %v2128
  %v2193 = vadd.f32 %v1899, %v2129
  %v2194 = vadd.f32 %v1902, %v2130
  %v2195 = vadd.f32 %v1907, %v2131
  %v2196 = vadd.f32 %v1910, %v2132
  %v2197 = vadd.f32 %v1915, %v2133
  %v2198 = vadd.f32 %v1918, %v2134
  %v2199 = vadd.f32 %v1923, %v2135
  %v2200 = vadd.f32 %v1926, %v2136
  %v2201 = vadd.f32 %v1931, %v2137
  %v2202 = vadd.f32 %v1934, %v2138
  %v2203 = vadd.f32 %v1939, %v2139
  %v2204 = vadd.f32 %v1942, %v2140
  %v2205 = vadd.f32 %v1947, %v2141
  %v2206 = vadd.f32 %v1950, %v2142
  %v2207 = vadd.f32 %v1955, %v2143
  %v2208 = vadd.f32 %v1958, %v2144
  %v2209 = vadd.f32 %v1963, %v2145
  %v2210 = vadd.f32 %v1966, %v2146
  %v2211 = vadd.f32 %v1971, %v2147
  %v2212 = vadd.f32 %v1974, %v2148
  %v2213 = vadd.f32 %v1979, %v2149
  %v2214 = vadd.f32 %v1982, %v2150
  %v2215 = vadd.f32 %v1987, %v2151
  %v2216 = vadd.f32 %v1990, %v2152
  %v2217 = vadd.f32 %v1995, %v2153
  %v2218 = vadd.f32 %v1998, %v2154
  %v2219 = vadd.f32 %v2003, %v2155
  %v2220 = vadd.f32 %v2006, %v2156
  %v2221 = vadd.f32 %v2011, %v2157
  %v2222 = vadd.f32 %v2014, %v2158
  %v2223 = vadd.f32 %v2019, %v2159
  %v2224 = vadd.f32 %v2022, %v2160
  %v2225 = vadd.f32 %v2027, %v2161
  %v2226 = vadd.f32 %v2030, %v2162
  %v2227 = vadd.f32 %v2035, %v2163
  %v2228 = vadd.f32 %v2038, %v2164
  %v2229 = vadd.f32 %v2043, %v2165
  %v2230 = vadd.f32 %v2046, %v2166
  %v2231 = vadd.f32 %v2051, %v2167
  %v2232 = vadd.f32 %v2054, %v2168
  %v2233 = vadd.f32 %v2059, %v2169
  %v2234 = vadd.f32 %v2062, %v2170
  %v2235 = vadd.f32 %v2067, %v2171
  %v2236 = vadd.f32 %v2070, %v2172
  %v2237 = vadd.f32 %v2075, %v2173
  %v2238 = vadd.f32 %v2078, %v2174
  %v2239 = vadd.f32 %v2083, %v2175
  %v2240 = vadd.f32 %v2086, %v2176
  %v2241 = vadd.f32 %v2091, %v2177
  %v2242 = vadd.f32 %v2094, %v2178
  %v2243 = vadd.f32 %v2099, %v2179
  %v2244 = vadd.f32 %v2102, %v2180
  %v2245 = vadd.f32 %v2107, %v2181
  %v2246 = vadd.f32 %v2110, %v2182
  %v2247 = vadd.f32 %v2115, %v2183
  %v2248 = vadd.f32 %v2118, %v2184
  %2249 = vst.msk [vmem:[%s8] sm:$0xff] %vm262, %v2185
  %2250 = vst.msk [vmem:[%s8 + $0x8] sm:$0xff] %vm262, %v2186
  %2251 = vst.msk [vmem:[%s8 + $0x10] sm:$0xff] %vm262, %v2187
  %2252 = vst.msk [vmem:[%s8 + $0x18] sm:$0xff] %vm262, %v2188
  %2253 = vst.msk [vmem:[%s8 + $0x20] sm:$0xff] %vm262, %v2189
  %2254 = vst.msk [vmem:[%s8 + $0x28] sm:$0xff] %vm262, %v2190
  %2255 = vst.msk [vmem:[%s8 + $0x30] sm:$0xff] %vm262, %v2191
  %2256 = vst.msk [vmem:[%s8 + $0x38] sm:$0xff] %vm262, %v2192
  %2257 = vst.msk [vmem:[%s8 + $0x40] sm:$0xff] %vm262, %v2193
  %2258 = vst.msk [vmem:[%s8 + $0x48] sm:$0xff] %vm262, %v2194
  %2259 = vst.msk [vmem:[%s8 + $0x50] sm:$0xff] %vm262, %v2195
  %2260 = vst.msk [vmem:[%s8 + $0x58] sm:$0xff] %vm262, %v2196
  %2261 = vst.msk [vmem:[%s8 + $0x60] sm:$0xff] %vm262, %v2197
  %2262 = vst.msk [vmem:[%s8 + $0x68] sm:$0xff] %vm262, %v2198
  %2263 = vst.msk [vmem:[%s8 + $0x70] sm:$0xff] %vm262, %v2199
  %2264 = vst.msk [vmem:[%s8 + $0x78] sm:$0xff] %vm262, %v2200
  %2265 = vst.msk [vmem:[%s8 + $0x80] sm:$0xff] %vm262, %v2201
  %2266 = vst.msk [vmem:[%s8 + $0x88] sm:$0xff] %vm262, %v2202
  %2267 = vst.msk [vmem:[%s8 + $0x90] sm:$0xff] %vm262, %v2203
  %2268 = vst.msk [vmem:[%s8 + $0x98] sm:$0xff] %vm262, %v2204
  %2269 = vst.msk [vmem:[%s8 + $0xa0] sm:$0xff] %vm262, %v2205
  %2270 = vst.msk [vmem:[%s8 + $0xa8] sm:$0xff] %vm262, %v2206
  %2271 = vst.msk [vmem:[%s8 + $0xb0] sm:$0xff] %vm262, %v2207
  %2272 = vst.msk [vmem:[%s8 + $0xb8] sm:$0xff] %vm262, %v2208
  %2273 = vst.msk [vmem:[%s8 + $0xc0] sm:$0xff] %vm262, %v2209
  %2274 = vst.msk [vmem:[%s8 + $0xc8] sm:$0xff] %vm262, %v2210
  %2275 = vst.msk [vmem:[%s8 + $0xd0] sm:$0xff] %vm262, %v2211
  %2276 = vst.msk [vmem:[%s8 + $0xd8] sm:$0xff] %vm262, %v2212
  %2277 = vst.msk [vmem:[%s8 + $0xe0] sm:$0xff] %vm262, %v2213
  %2278 = vst.msk [vmem:[%s8 + $0xe8] sm:$0xff] %vm262, %v2214
  %2279 = vst.msk [vmem:[%s8 + $0xf0] sm:$0xff] %vm262, %v2215
  %2280 = vst.msk [vmem:[%s8 + $0xf8] sm:$0xff] %vm262, %v2216
  %2281 = vst.msk [vmem:[%s8 + $0x100] sm:$0xff] %vm262, %v2217
  %2282 = vst.msk [vmem:[%s8 + $0x108] sm:$0xff] %vm262, %v2218
  %2283 = vst.msk [vmem:[%s8 + $0x110] sm:$0xff] %vm262, %v2219
  %2284 = vst.msk [vmem:[%s8 + $0x118] sm:$0xff] %vm262, %v2220
  %2285 = vst.msk [vmem:[%s8 + $0x120] sm:$0xff] %vm262, %v2221
  %2286 = vst.msk [vmem:[%s8 + $0x128] sm:$0xff] %vm262, %v2222
  %2287 = vst.msk [vmem:[%s8 + $0x130] sm:$0xff] %vm262, %v2223
  %2288 = vst.msk [vmem:[%s8 + $0x138] sm:$0xff] %vm262, %v2224
  %2289 = vst.msk [vmem:[%s8 + $0x140] sm:$0xff] %vm262, %v2225
  %2290 = vst.msk [vmem:[%s8 + $0x148] sm:$0xff] %vm262, %v2226
  %2291 = vst.msk [vmem:[%s8 + $0x150] sm:$0xff] %vm262, %v2227
  %2292 = vst.msk [vmem:[%s8 + $0x158] sm:$0xff] %vm262, %v2228
  %2293 = vst.msk [vmem:[%s8 + $0x160] sm:$0xff] %vm262, %v2229
  %2294 = vst.msk [vmem:[%s8 + $0x168] sm:$0xff] %vm262, %v2230
  %2295 = vst.msk [vmem:[%s8 + $0x170] sm:$0xff] %vm262, %v2231
  %2296 = vst.msk [vmem:[%s8 + $0x178] sm:$0xff] %vm262, %v2232
  %2297 = vst.msk [vmem:[%s8 + $0x180] sm:$0xff] %vm262, %v2233
  %2298 = vst.msk [vmem:[%s8 + $0x188] sm:$0xff] %vm262, %v2234
  %2299 = vst.msk [vmem:[%s8 + $0x190] sm:$0xff] %vm262, %v2235
  %2300 = vst.msk [vmem:[%s8 + $0x198] sm:$0xff] %vm262, %v2236
  %2301 = vst.msk [vmem:[%s8 + $0x1a0] sm:$0xff] %vm262, %v2237
  %2302 = vst.msk [vmem:[%s8 + $0x1a8] sm:$0xff] %vm262, %v2238
  %2303 = vst.msk [vmem:[%s8 + $0x1b0] sm:$0xff] %vm262, %v2239
  %2304 = vst.msk [vmem:[%s8 + $0x1b8] sm:$0xff] %vm262, %v2240
  %2305 = vst.msk [vmem:[%s8 + $0x1c0] sm:$0xff] %vm262, %v2241
  %2306 = vst.msk [vmem:[%s8 + $0x1c8] sm:$0xff] %vm262, %v2242
  %2307 = vst.msk [vmem:[%s8 + $0x1d0] sm:$0xff] %vm262, %v2243
  %2308 = vst.msk [vmem:[%s8 + $0x1d8] sm:$0xff] %vm262, %v2244
  %2309 = vst.msk [vmem:[%s8 + $0x1e0] sm:$0xff] %vm262, %v2245
  %2310 = vst.msk [vmem:[%s8 + $0x1e8] sm:$0xff] %vm262, %v2246
  %2311 = vst.msk [vmem:[%s8 + $0x1f0] sm:$0xff] %vm262, %v2247
  %2312 = vst.msk [vmem:[%s8 + $0x1f8] sm:$0xff] %vm262, %v2248
  // Predicated region
  $region34: #{factor_fno2d_block.5} parent=0 // pred_check
    _
  $region35: #{factor_fno2d_block.5} parent=0 // pred_check_branch
    %2314 = sbr.rel (0) target = $region37
  $region36: #{factor_fno2d_block.5} parent=0 // pred_region
    _
  $region37: #{factor_fno2d_block.5} parent=0 // pred_fallthru
    _
  // Predicated region
  $region38: #{factor_fno2d_block.5} parent=0 // pred_check
    _
  $region39: #{factor_fno2d_block.5} parent=0 // pred_check_branch
    %2316 = sbr.rel (0) target = $region41
  $region40: #{factor_fno2d_block.5} parent=0 // pred_region
    _
  $region41: #{factor_fno2d_block.5} parent=0 // pred_fallthru
    _

</llo_original>
